<compile_context>
chip_gen: v5e
topology: v5e:2x2
jax: 0.10.0
libtpu: 0.0.40
codegen_flags: <defaults>
</compile_context>

<pallas_src>
import functools

import jax
import jax.numpy as jnp
from jax.experimental import pallas as pl
from jax.experimental.pallas import tpu as pltpu


def _round_up(x, m):
    return ((x + m - 1) // m) * m


# ---------------------------------------------------------------------------
# Pallas kernel: message passing + all dense heads (geometry is precomputed)
# ---------------------------------------------------------------------------
def _decoder_kernel(
    idx_i_row_ref,   # [1, Ep] int32 : nbrs[:,0] (scatter targets), lane-major
    idx_j_col_ref,   # [Ep, 1] int32 : nbrs[:,1] (gather sources)
    rbf_ref,         # [Ep, n_rbf] f32  (precomputed ExpNormal basis)
    env_ref,         # [Ep, 1] f32      (cosine cutoff envelope; 0 on padded edges)
    s_ref,           # [Np, F] f32      (S ++ res_embed(cg_z); zero padded rows)
    wff_ref,         # [C, 6, F, F] bf16 (msgW1,msgW2,denseW1,denseW2,torW1,torW2)
    wd_ref,          # [C, n_rbf, F] bf16 (distance-embed linear)
    bf_ref,          # [C, 7, F] f32 (msg b1,msg b2,dist b,dense b1,dense b2,tor b1,tor b2)
    bba_w1_ref, bba_b1_ref, bba_w2_ref, bba_b2_ref,     # backbone_angle head (f32)
    bbt_w1a_ref, bbt_w1b_ref, bbt_b1_ref, bbt_w2_ref, bbt_b2_ref,  # backbone_torsion
    ft_w1_ref, ft_b1_ref, ft_w2_ref, ft_b2_ref,         # final_torsion head (f32)
    out_ref,         # [Np, 16] f32 : [bb_angle(3) | bb_torsion(3) | sc_torsion(10)]
    *, num_conv,
):
    f32 = jnp.float32
    bf16 = jnp.bfloat16

    def silu(x):
        # x * sigmoid(x); reciprocal runs on the EUP (its own VLIW slot).
        return x * pl.reciprocal(1.0 + jnp.exp(-x), approx=True)

    def bmm(a, w_bf16):  # bf16 MXU matmul with f32 accumulation
        return jnp.dot(a.astype(bf16), w_bf16, preferred_element_type=f32)

    def fmm(a, w):       # tiny f32 matmul (head layers; negligible FLOPs)
        return jnp.dot(a, w, preferred_element_type=f32)

    idx_i = idx_i_row_ref[...]            # [1, Ep]
    idx_j = idx_j_col_ref[...]            # [Ep, 1]
    rbf = rbf_ref[...]                    # [Ep, n_rbf]
    env = env_ref[...]                    # [Ep, 1]
    S = s_ref[...]                        # [Np, F]
    Ep = idx_j.shape[0]
    Np = S.shape[0]

    # One-hot gather matrix [Ep, Np] and PRE-TRANSPOSED scatter matrix [Np, Ep].
    # (0/1 values are exact in bf16; building g_iT transposed avoids an XLU pass
    #  per conv iteration and keeps the scatter as a plain MXU matmul.)
    g_j = (idx_j == jax.lax.broadcasted_iota(jnp.int32, (Ep, Np), 1)).astype(bf16)
    g_iT = (jax.lax.broadcasted_iota(jnp.int32, (Np, Ep), 0) == idx_i).astype(bf16)

    # ---------------- message passing ----------------
    for c in range(num_conv):
        b = bf_ref[c]                     # [7, F]
        # InvariantDense: Linear -> swish -> (Dropout p=0) -> Linear
        h = silu(bmm(S, wff_ref[c, 0]) + b[0:1, :])
        h = bmm(h, wff_ref[c, 1]) + b[1:2, :]
        phi = jnp.dot(g_j, h.astype(bf16), preferred_element_type=f32)    # gather [Ep,F]
        # DistanceEmbed: Linear(rbf) * envelope
        w_s = (bmm(rbf, wd_ref[c]) + b[2:3, :]) * env
        msg = phi * w_s                                                   # [Ep, F]
        # scatter_add over nbrs[:, 0]
        v = jnp.dot(g_iT, msg.astype(bf16), preferred_element_type=f32)   # [Np, F]
        # dense block: swish -> Linear -> swish -> Linear, residual add
        u = silu(v)
        u = silu(bmm(u, wff_ref[c, 2]) + b[3:4, :])
        u = bmm(u, wff_ref[c, 3]) + b[4:5, :]
        S = S + u

    # ---------------- backbone angle head ----------------
    a = silu(S)
    a = silu(fmm(a, bba_w1_ref[...]) + bba_b1_ref[...])
    bb_angle = fmm(a, bba_w2_ref[...]) + bba_b2_ref[...]

    # ---------------- backbone torsion head ----------------
    # silu(concat([S, bb_angle])) @ W1 == silu(S) @ W1a + silu(bb_angle) @ W1b
    # (avoids a lane-dim concat / relayout inside the kernel)
    t = (fmm(silu(S), bbt_w1a_ref[...]) + fmm(silu(bb_angle), bbt_w1b_ref[...])
         + bbt_b1_ref[...])
    t = silu(t)
    bb_torsion = fmm(t, bbt_w2_ref[...]) + bbt_b2_ref[...]

    # ---------------- sidechain torsion blocks ----------------
    for c in range(num_conv):
        b = bf_ref[c]
        u = silu(S)
        u = silu(bmm(u, wff_ref[c, 4]) + b[5:6, :])
        u = bmm(u, wff_ref[c, 5]) + b[6:7, :]
        S = S + u

    q = silu(S)
    q = silu(fmm(q, ft_w1_ref[...]) + ft_b1_ref[...])
    sc_torsion = fmm(q, ft_w2_ref[...]) + ft_b2_ref[...]

    # single lane-packed output slab -> one HBM writeback
    out_ref[:, 0:3] = bb_angle
    out_ref[:, 3:6] = bb_torsion
    out_ref[:, 6:16] = sc_torsion


# ---------------------------------------------------------------------------
# Parameter init (deterministic, synthetic weights; no checkpoint loading)
# ---------------------------------------------------------------------------
def init_params(key, n_atom_basis, n_rbf, num_conv, cutoff):
    F = n_atom_basis + 4
    keys = iter(jax.random.split(key, 256))

    def lin(kin, kout):
        w = jax.random.normal(next(keys), (kin, kout), jnp.float32) / jnp.sqrt(kin)
        b = 0.01 * jax.random.normal(next(keys), (1, kout), jnp.float32)
        return w, b

    p = {}
    # embedding tables
    p["res_embed"] = jax.random.normal(next(keys), (25, 4), jnp.float32)
    p["backbone_dist"] = jax.random.normal(next(keys), (25, 3), jnp.float32)
    p["sidechain_dist"] = jax.random.normal(next(keys), (25, 10), jnp.float32)
    p["sidechain_angle"] = jax.random.normal(next(keys), (25, 10), jnp.float32)

    wff, wd, bf = [], [], []
    for _ in range(num_conv):
        mw1, mb1 = lin(F, F)
        mw2, mb2 = lin(F, F)
        dwd, dbd = lin(n_rbf, F)
        dw1, db1 = lin(F, F)
        dw2, db2 = lin(F, F)
        tw1, tb1 = lin(F, F)
        tw2, tb2 = lin(F, F)
        wff.append(jnp.stack([mw1, mw2, dw1, dw2, tw1, tw2], axis=0))
        wd.append(dwd)
        bf.append(jnp.concatenate([mb1, mb2, dbd, db1, db2, tb1, tb2], axis=0))
    p["wff"] = jnp.stack(wff, axis=0)        # [C, 6, F, F]
    p["wd"] = jnp.stack(wd, axis=0)          # [C, n_rbf, F]
    p["bf"] = jnp.stack(bf, axis=0)          # [C, 7, F]

    p["bba_w1"], p["bba_b1"] = lin(F, 3)
    p["bba_w2"], p["bba_b2"] = lin(3, 3)
    p["bbt_w1"], p["bbt_b1"] = lin(F + 3, 3)
    p["bbt_w2"], p["bbt_b2"] = lin(3, 3)
    p["ft_w1"], p["ft_b1"] = lin(F, 10)
    p["ft_w2"], p["ft_b2"] = lin(10, 10)

    # ExpNormalBasis constants
    p["mu"] = jnp.linspace(jnp.exp(-cutoff), 1.0, n_rbf, dtype=jnp.float32)[None, :]
    p["beta"] = jnp.full(
        (1, n_rbf), (2.0 / n_rbf * (1.0 - jnp.exp(-cutoff))) ** -2, jnp.float32
    )
    return p


# ---------------------------------------------------------------------------
# Wrapper (glue: make_directed, embeddings, geometry/RBF precompute, padding)
# ---------------------------------------------------------------------------
def zmat_internal_decoder(params, cg_z, cg_xyz, cg_nbr_list, mapping, S, *,
                          cutoff, num_conv):
    del mapping  # unused in the PyTorch forward as well
    f32 = jnp.float32
    bf16 = jnp.bfloat16

    # make_directed
    nbrs = jnp.concatenate([cg_nbr_list, cg_nbr_list[:, ::-1]], axis=0).astype(jnp.int32)
    idx_i, idx_j = nbrs[:, 0], nbrs[:, 1]

    # --- geometry / RBF preprocessing hoisted out of the kernel (XLA gather) ---
    r_ij = cg_xyz[idx_j].astype(f32) - cg_xyz[idx_i].astype(f32)
    dist = jnp.linalg.norm(r_ij, axis=-1, keepdims=True)                 # [E, 1]
    mu, beta = params["mu"], params["beta"]
    rbf = jnp.exp(-beta * (jnp.exp(-dist) - mu) ** 2)                    # [E, n_rbf]
    env = jnp.where(dist < cutoff,
                    0.5 * (jnp.cos(jnp.pi * dist / cutoff) + 1.0), 0.0)  # [E, 1]
    # TODO(synk): the unused `unit` vector from preprocess_r is not computed (no-op).

    res_e = params["res_embed"][cg_z]            # [N, 4]
    bb_dist = params["backbone_dist"][cg_z]      # [N, 3]
    sc_dist = params["sidechain_dist"][cg_z]     # [N, 10]
    sc_angle = params["sidechain_angle"][cg_z]   # [N, 10]
    s_in = jnp.concatenate([S, res_e], axis=-1).astype(f32)              # [N, F]

    N, F = s_in.shape
    E = int(nbrs.shape[0])
    n_rbf = int(rbf.shape[-1])
    C = num_conv

    # --- pad rows / edges to sublane multiples (padded edges are inert: env=0) ---
    Npad = _round_up(N, 8)
    Epad = _round_up(E, 8)
    s_pad = jnp.zeros((Npad, F), f32).at[:N].set(s_in)
    rbf_pad = jnp.zeros((Epad, n_rbf), f32).at[:E].set(rbf)
    env_pad = jnp.zeros((Epad, 1), f32).at[:E].set(env)
    idx_i_row = jnp.zeros((1, Epad), jnp.int32).at[0, :E].set(idx_i)
    idx_j_col = jnp.zeros((Epad, 1), jnp.int32).at[:E, 0].set(idx_j)

    # conv-loop weights as bf16 MXU operands; biases and tiny head weights stay f32.
    wff = params["wff"].astype(bf16)             # [C, 6, F, F]
    wd = params["wd"].astype(bf16)               # [C, n_rbf, F]
    bbt_w1a = params["bbt_w1"][:F]               # [F, 3]
    bbt_w1b = params["bbt_w1"][F:]               # [3, 3]

    inputs = (
        idx_i_row, idx_j_col, rbf_pad, env_pad, s_pad,
        wff, wd, params["bf"],
        params["bba_w1"], params["bba_b1"], params["bba_w2"], params["bba_b2"],
        bbt_w1a, bbt_w1b, params["bbt_b1"], params["bbt_w2"], params["bbt_b2"],
        params["ft_w1"], params["ft_b1"], params["ft_w2"], params["ft_b2"],
    )

    # advisory cost estimate so XLA can overlap the custom call with wrapper glue
    F2 = F * F
    conv_flops = 2 * (4 * Npad * F2          # InvariantDense + dense block (4x FxF)
                      + Epad * Npad * F      # one-hot gather
                      + Epad * n_rbf * F     # distance embed
                      + Npad * Epad * F      # one-hot scatter
                      + 2 * Npad * F2)       # sidechain torsion block
    head_flops = 2 * Npad * (F * 3 + 9 + (F + 3) * 3 + 9 + F * 10 + 100)
    flops = int(C * conv_flops + head_flops)
    transcendentals = int(2 * (5 * C + 4) * Npad * F)
    bytes_accessed = int(sum(int(x.size) * x.dtype.itemsize for x in inputs)
                         + Npad * 16 * 4)

    # explicit VMEM budget (2x margin over the dominant live arrays)
    vmem_est = (2 * Epad * Npad * 2           # g_j + g_iT (bf16)
                + 4 * Epad * F * 4            # phi / w_s / msg intermediates
                + 8 * Npad * F * 4            # S / h / u / v intermediates
                + int(wff.size) * 2 + int(wd.size) * 2 + int(params["bf"].size) * 4
                + (Npad * (16 + F) + Epad * (n_rbf + 2)) * 4)
    vmem_limit = int(min(max(2 * vmem_est, 32 * 1024 * 1024), 64 * 1024 * 1024))

    kern = functools.partial(_decoder_kernel, num_conv=num_conv)
    vmem = pl.BlockSpec(memory_space=pltpu.MemorySpace.VMEM)
    out = pl.pallas_call(
        kern,
        out_shape=jax.ShapeDtypeStruct((Npad, 16), f32),
        in_specs=[vmem] * len(inputs),
        out_specs=vmem,
        compiler_params=pltpu.CompilerParams(vmem_limit_bytes=vmem_limit),
        cost_estimate=pl.CostEstimate(flops=flops,
                                      transcendentals=transcendentals,
                                      bytes_accessed=bytes_accessed),
    )(*inputs)

    bb_angle = out[:N, 0:3]
    bb_torsion = out[:N, 3:6]
    sc_torsion = out[:N, 6:16]

    ic_bb = jnp.stack([bb_dist, bb_angle, bb_torsion], axis=-1)          # [N, 3, 3]
    ic_sc = jnp.stack([sc_dist, sc_angle, sc_torsion], axis=-1)          # [N, 10, 3]
    ic_recon = jnp.concatenate([ic_bb, ic_sc], axis=-2)                  # [N, 13, 3]
    return None, ic_recon


# ---------------------------------------------------------------------------
# Pure-JAX reference (same math, XLA ops, full f32) for correctness check
# ---------------------------------------------------------------------------
def reference_forward(params, cg_z, cg_xyz, cg_nbr_list, S, *, cutoff, num_conv):
    silu = jax.nn.silu
    nbrs = jnp.concatenate([cg_nbr_list, cg_nbr_list[:, ::-1]], axis=0)
    idx_i, idx_j = nbrs[:, 0], nbrs[:, 1]
    r_ij = cg_xyz[idx_j] - cg_xyz[idx_i]
    dist = jnp.linalg.norm(r_ij, axis=-1, keepdims=True)

    res_e = params["res_embed"][cg_z]
    bb_dist = params["backbone_dist"][cg_z]
    sc_dist = params["sidechain_dist"][cg_z]
    sc_angle = params["sidechain_angle"][cg_z]
    Sf = jnp.concatenate([S, res_e], axis=-1)

    mu, beta = params["mu"], params["beta"]
    rbf = jnp.exp(-beta * (jnp.exp(-dist) - mu) ** 2)
    env = jnp.where(dist < cutoff, 0.5 * (jnp.cos(jnp.pi * dist / cutoff) + 1.0), 0.0)

    wff, wd, bf = params["wff"], params["wd"], params["bf"]
    for c in range(num_conv):
        h = silu(Sf @ wff[c, 0] + bf[c, 0]) @ wff[c, 1] + bf[c, 1]
        phi = h[idx_j]
        w_s = (rbf @ wd[c] + bf[c, 2]) * env
        msg = phi * w_s
        v = jnp.zeros_like(Sf).at[idx_i].add(msg)
        Sf = Sf + (silu(silu(v) @ wff[c, 2] + bf[c, 3]) @ wff[c, 3] + bf[c, 4])

    bb_angle = (silu(silu(Sf) @ params["bba_w1"] + params["bba_b1"])
                @ params["bba_w2"] + params["bba_b2"])
    s_cat = jnp.concatenate([Sf, bb_angle], axis=-1)
    bb_torsion = (silu(silu(s_cat) @ params["bbt_w1"] + params["bbt_b1"])
                  @ params["bbt_w2"] + params["bbt_b2"])
    for c in range(num_conv):
        Sf = Sf + (silu(silu(Sf) @ wff[c, 4] + bf[c, 5]) @ wff[c, 5] + bf[c, 6])
    sc_torsion = (silu(silu(Sf) @ params["ft_w1"] + params["ft_b1"])
                  @ params["ft_w2"] + params["ft_b2"])

    ic_bb = jnp.stack([bb_dist, bb_angle, bb_torsion], axis=-1)
    ic_sc = jnp.stack([sc_dist, sc_angle, sc_torsion], axis=-1)
    return None, jnp.concatenate([ic_bb, ic_sc], axis=-2)


if __name__ == "__main__":
    key = jax.random.PRNGKey(0)
    k1, k2, k3, kp = jax.random.split(key, 4)

    # batch 8 chains of 16 residues along the row dim -> M = 128 rows for the MXU
    B = 8
    Nres = 16
    N = B * Nres        # 128 CG beads total
    n_atom_basis = 32   # -> F = 36
    n_rbf = 8
    num_conv = 2
    cutoff = 10.0

    cg_z = jax.random.randint(k1, (N,), 0, 25)
    cg_xyz = jax.random.uniform(k2, (N, 3), jnp.float32, 0.0, 5.0)
    S = jax.random.normal(k3, (N, n_atom_basis), jnp.float32)
    # per-structure chain neighbor lists, offset into the batched row space;
    # make_directed doubles them inside the wrapper
    chains = []
    for b in range(B):
        idx = jnp.arange(Nres - 1, dtype=jnp.int32) + b * Nres
        chains.append(jnp.stack([idx, idx + 1], axis=-1))
    cg_nbr_list = jnp.concatenate(chains, axis=0)        # [B*(Nres-1), 2]
    mapping = None  # unused by the forward pass

    params = init_params(kp, n_atom_basis, n_rbf, num_conv, cutoff)

    _, ic_recon = zmat_internal_decoder(
        params, cg_z, cg_xyz, cg_nbr_list, mapping, S,
        cutoff=cutoff, num_conv=num_conv)
    ic_recon = jax.block_until_ready(ic_recon)

    _, ic_ref = reference_forward(
        params, cg_z, cg_xyz, cg_nbr_list, S, cutoff=cutoff, num_conv=num_conv)

    assert ic_recon.shape == (N, 13, 3), ic_recon.shape
    max_err = float(jnp.max(jnp.abs(ic_recon - ic_ref)))
    assert jnp.allclose(ic_recon, ic_ref, rtol=5e-2, atol=5e-2), max_err
    # TODO(synk): Dropout(p=0.0) inside InvariantMessage is a no-op and is omitted.
    print("KERNEL_OK")
</pallas_src>

<mosaic_0001>
module attributes {stable_mosaic.version = 11 : i64} {
  func.func @_decoder_kernel(%arg0: memref<1x240xi32, #tpu.memory_space<vmem>>, %arg1: memref<240x1xi32, #tpu.memory_space<vmem>>, %arg2: memref<240x8xf32, #tpu.memory_space<vmem>>, %arg3: memref<240x1xf32, #tpu.memory_space<vmem>>, %arg4: memref<128x36xf32, #tpu.memory_space<vmem>>, %arg5: memref<2x6x36x36xbf16, #tpu.memory_space<vmem>>, %arg6: memref<2x8x36xbf16, #tpu.memory_space<vmem>>, %arg7: memref<2x7x36xf32, #tpu.memory_space<vmem>>, %arg8: memref<36x3xf32, #tpu.memory_space<vmem>>, %arg9: memref<1x3xf32, #tpu.memory_space<vmem>>, %arg10: memref<3x3xf32, #tpu.memory_space<vmem>>, %arg11: memref<1x3xf32, #tpu.memory_space<vmem>>, %arg12: memref<36x3xf32, #tpu.memory_space<vmem>>, %arg13: memref<3x3xf32, #tpu.memory_space<vmem>>, %arg14: memref<1x3xf32, #tpu.memory_space<vmem>>, %arg15: memref<3x3xf32, #tpu.memory_space<vmem>>, %arg16: memref<1x3xf32, #tpu.memory_space<vmem>>, %arg17: memref<36x10xf32, #tpu.memory_space<vmem>>, %arg18: memref<1x10xf32, #tpu.memory_space<vmem>>, %arg19: memref<10x10xf32, #tpu.memory_space<vmem>>, %arg20: memref<1x10xf32, #tpu.memory_space<vmem>>, %arg21: memref<128x16xf32, #tpu.memory_space<vmem>>) attributes {dimension_semantics = [], scalar_prefetch = 0 : i64, scratch_operands = 0 : i64, tpu.core_type = #tpu.core_type<tc>} {
    %c0 = arith.constant 0 : index
    %c0_0 = arith.constant 0 : index
    %0 = vector.load %arg0[%c0, %c0_0] : memref<1x240xi32, #tpu.memory_space<vmem>>, vector<1x240xi32>
    %c0_1 = arith.constant 0 : index
    %c0_2 = arith.constant 0 : index
    %1 = vector.load %arg1[%c0_1, %c0_2] : memref<240x1xi32, #tpu.memory_space<vmem>>, vector<240x1xi32>
    %c0_3 = arith.constant 0 : index
    %c0_4 = arith.constant 0 : index
    %2 = vector.load %arg2[%c0_3, %c0_4] : memref<240x8xf32, #tpu.memory_space<vmem>>, vector<240x8xf32>
    %c0_5 = arith.constant 0 : index
    %c0_6 = arith.constant 0 : index
    %3 = vector.load %arg3[%c0_5, %c0_6] : memref<240x1xf32, #tpu.memory_space<vmem>>, vector<240x1xf32>
    %c0_7 = arith.constant 0 : index
    %c0_8 = arith.constant 0 : index
    %4 = vector.load %arg4[%c0_7, %c0_8] : memref<128x36xf32, #tpu.memory_space<vmem>>, vector<128x36xf32>
    %5 = tpu.iota {dimensions = array<i32: 1>} : vector<240x128xi32>
    %6 = vector.broadcast %1 : vector<240x1xi32> to vector<240x128xi32>
    %7 = arith.cmpi eq, %6, %5 : vector<240x128xi32>
    %8 = arith.extui %7 : vector<240x128xi1> to vector<240x128xi32>
    %9 = arith.sitofp %8 : vector<240x128xi32> to vector<240x128xf32>
    %10 = arith.truncf %9 : vector<240x128xf32> to vector<240x128xbf16>
    %11 = tpu.iota {dimensions = array<i32: 0>} : vector<128x240xi32>
    %12 = vector.broadcast %0 : vector<1x240xi32> to vector<128x240xi32>
    %13 = arith.cmpi eq, %11, %12 : vector<128x240xi32>
    %14 = arith.extui %13 : vector<128x240xi1> to vector<128x240xi32>
    %15 = arith.sitofp %14 : vector<128x240xi32> to vector<128x240xf32>
    %16 = arith.truncf %15 : vector<128x240xf32> to vector<128x240xbf16>
    %c0_9 = arith.constant 0 : index
    %c0_10 = arith.constant 0 : index
    %c0_11 = arith.constant 0 : index
    %17 = vector.load %arg7[%c0_9, %c0_10, %c0_11] : memref<2x7x36xf32, #tpu.memory_space<vmem>>, vector<1x7x36xf32>
    %18 = vector.shape_cast %17 : vector<1x7x36xf32> to vector<7x36xf32>
    %c0_12 = arith.constant 0 : index
    %c0_13 = arith.constant 0 : index
    %c0_14 = arith.constant 0 : index
    %c0_15 = arith.constant 0 : index
    %19 = vector.load %arg5[%c0_12, %c0_13, %c0_14, %c0_15] : memref<2x6x36x36xbf16, #tpu.memory_space<vmem>>, vector<1x1x36x36xbf16>
    %20 = vector.shape_cast %19 : vector<1x1x36x36xbf16> to vector<36x36xbf16>
    %21 = arith.truncf %4 : vector<128x36xf32> to vector<128x36xbf16>
    %cst = arith.constant dense<0.000000e+00> : vector<128x36xf32>
    %22 = tpu.matmul %21, %20, %cst {dimension_numbers = #tpu.dot_dimension_numbers<[1], [0], [0], [1], [0, 0, 1, 1], [], []>} : vector<128x36xbf16>, vector<36x36xbf16>, vector<128x36xf32> -> vector<128x36xf32>
    %23 = vector.extract_strided_slice %18 {offsets = [0, 0], sizes = [1, 36], strides = [1, 1]} : vector<7x36xf32> to vector<1x36xf32>
    %24 = vector.broadcast %23 : vector<1x36xf32> to vector<128x36xf32>
    %25 = arith.addf %22, %24 : vector<128x36xf32>
    %cst_16 = arith.constant 0.000000e+00 : f32
    %26 = vector.broadcast %cst_16 : f32 to vector<128x36xf32>
    %27 = arith.subf %26, %25 : vector<128x36xf32>
    %28 = math.exp %27 : vector<128x36xf32>
    %cst_17 = arith.constant 1.000000e+00 : f32
    %29 = vector.broadcast %cst_17 : f32 to vector<128x36xf32>
    %30 = arith.addf %29, %28 : vector<128x36xf32>
    %31 = tpu.reciprocal %30 {approx = true} : vector<128x36xf32> -> vector<128x36xf32>
    %32 = arith.mulf %25, %31 : vector<128x36xf32>
    %c0_18 = arith.constant 0 : index
    %c1 = arith.constant 1 : index
    %c0_19 = arith.constant 0 : index
    %c0_20 = arith.constant 0 : index
    %33 = vector.load %arg5[%c0_18, %c1, %c0_19, %c0_20] : memref<2x6x36x36xbf16, #tpu.memory_space<vmem>>, vector<1x1x36x36xbf16>
    %34 = vector.shape_cast %33 : vector<1x1x36x36xbf16> to vector<36x36xbf16>
    %35 = arith.truncf %32 : vector<128x36xf32> to vector<128x36xbf16>
    %cst_21 = arith.constant dense<0.000000e+00> : vector<128x36xf32>
    %36 = tpu.matmul %35, %34, %cst_21 {dimension_numbers = #tpu.dot_dimension_numbers<[1], [0], [0], [1], [0, 0, 1, 1], [], []>} : vector<128x36xbf16>, vector<36x36xbf16>, vector<128x36xf32> -> vector<128x36xf32>
    %37 = vector.extract_strided_slice %18 {offsets = [1, 0], sizes = [1, 36], strides = [1, 1]} : vector<7x36xf32> to vector<1x36xf32>
    %38 = vector.broadcast %37 : vector<1x36xf32> to vector<128x36xf32>
    %39 = arith.addf %36, %38 : vector<128x36xf32>
    %40 = arith.truncf %39 : vector<128x36xf32> to vector<128x36xbf16>
    %cst_22 = arith.constant dense<0.000000e+00> : vector<240x36xf32>
    %41 = tpu.matmul %10, %40, %cst_22 {dimension_numbers = #tpu.dot_dimension_numbers<[1], [0], [0], [1], [0, 0, 1, 1], [], []>} : vector<240x128xbf16>, vector<128x36xbf16>, vector<240x36xf32> -> vector<240x36xf32>
    %c0_23 = arith.constant 0 : index
    %c0_24 = arith.constant 0 : index
    %c0_25 = arith.constant 0 : index
    %42 = vector.load %arg6[%c0_23, %c0_24, %c0_25] : memref<2x8x36xbf16, #tpu.memory_space<vmem>>, vector<1x8x36xbf16>
    %43 = vector.shape_cast %42 : vector<1x8x36xbf16> to vector<8x36xbf16>
    %44 = arith.truncf %2 : vector<240x8xf32> to vector<240x8xbf16>
    %cst_26 = arith.constant dense<0.000000e+00> : vector<240x36xf32>
    %45 = tpu.matmul %44, %43, %cst_26 {dimension_numbers = #tpu.dot_dimension_numbers<[1], [0], [0], [1], [0, 0, 1, 1], [], []>} : vector<240x8xbf16>, vector<8x36xbf16>, vector<240x36xf32> -> vector<240x36xf32>
    %46 = vector.extract_strided_slice %18 {offsets = [2, 0], sizes = [1, 36], strides = [1, 1]} : vector<7x36xf32> to vector<1x36xf32>
    %47 = vector.broadcast %46 : vector<1x36xf32> to vector<240x36xf32>
    %48 = arith.addf %45, %47 : vector<240x36xf32>
    %49 = vector.broadcast %3 : vector<240x1xf32> to vector<240x36xf32>
    %50 = arith.mulf %48, %49 : vector<240x36xf32>
    %51 = arith.mulf %41, %50 : vector<240x36xf32>
    %52 = arith.truncf %51 : vector<240x36xf32> to vector<240x36xbf16>
    %cst_27 = arith.constant dense<0.000000e+00> : vector<128x36xf32>
    %53 = tpu.matmul %16, %52, %cst_27 {dimension_numbers = #tpu.dot_dimension_numbers<[1], [0], [0], [1], [0, 0, 1, 1], [], []>} : vector<128x240xbf16>, vector<240x36xbf16>, vector<128x36xf32> -> vector<128x36xf32>
    %cst_28 = arith.constant 0.000000e+00 : f32
    %54 = vector.broadcast %cst_28 : f32 to vector<128x36xf32>
    %55 = arith.subf %54, %53 : vector<128x36xf32>
    %56 = math.exp %55 : vector<128x36xf32>
    %cst_29 = arith.constant 1.000000e+00 : f32
    %57 = vector.broadcast %cst_29 : f32 to vector<128x36xf32>
    %58 = arith.addf %57, %56 : vector<128x36xf32>
    %59 = tpu.reciprocal %58 {approx = true} : vector<128x36xf32> -> vector<128x36xf32>
    %60 = arith.mulf %53, %59 : vector<128x36xf32>
    %c0_30 = arith.constant 0 : index
    %c2 = arith.constant 2 : index
    %c0_31 = arith.constant 0 : index
    %c0_32 = arith.constant 0 : index
    %61 = vector.load %arg5[%c0_30, %c2, %c0_31, %c0_32] : memref<2x6x36x36xbf16, #tpu.memory_space<vmem>>, vector<1x1x36x36xbf16>
    %62 = vector.shape_cast %61 : vector<1x1x36x36xbf16> to vector<36x36xbf16>
    %63 = arith.truncf %60 : vector<128x36xf32> to vector<128x36xbf16>
    %cst_33 = arith.constant dense<0.000000e+00> : vector<128x36xf32>
    %64 = tpu.matmul %63, %62, %cst_33 {dimension_numbers = #tpu.dot_dimension_numbers<[1], [0], [0], [1], [0, 0, 1, 1], [], []>} : vector<128x36xbf16>, vector<36x36xbf16>, vector<128x36xf32> -> vector<128x36xf32>
    %65 = vector.extract_strided_slice %18 {offsets = [3, 0], sizes = [1, 36], strides = [1, 1]} : vector<7x36xf32> to vector<1x36xf32>
    %66 = vector.broadcast %65 : vector<1x36xf32> to vector<128x36xf32>
    %67 = arith.addf %64, %66 : vector<128x36xf32>
    %cst_34 = arith.constant 0.000000e+00 : f32
    %68 = vector.broadcast %cst_34 : f32 to vector<128x36xf32>
    %69 = arith.subf %68, %67 : vector<128x36xf32>
    %70 = math.exp %69 : vector<128x36xf32>
    %cst_35 = arith.constant 1.000000e+00 : f32
    %71 = vector.broadcast %cst_35 : f32 to vector<128x36xf32>
    %72 = arith.addf %71, %70 : vector<128x36xf32>
    %73 = tpu.reciprocal %72 {approx = true} : vector<128x36xf32> -> vector<128x36xf32>
    %74 = arith.mulf %67, %73 : vector<128x36xf32>
    %c0_36 = arith.constant 0 : index
    %c3 = arith.constant 3 : index
    %c0_37 = arith.constant 0 : index
    %c0_38 = arith.constant 0 : index
    %75 = vector.load %arg5[%c0_36, %c3, %c0_37, %c0_38] : memref<2x6x36x36xbf16, #tpu.memory_space<vmem>>, vector<1x1x36x36xbf16>
    %76 = vector.shape_cast %75 : vector<1x1x36x36xbf16> to vector<36x36xbf16>
    %77 = arith.truncf %74 : vector<128x36xf32> to vector<128x36xbf16>
    %cst_39 = arith.constant dense<0.000000e+00> : vector<128x36xf32>
    %78 = tpu.matmul %77, %76, %cst_39 {dimension_numbers = #tpu.dot_dimension_numbers<[1], [0], [0], [1], [0, 0, 1, 1], [], []>} : vector<128x36xbf16>, vector<36x36xbf16>, vector<128x36xf32> -> vector<128x36xf32>
    %79 = vector.extract_strided_slice %18 {offsets = [4, 0], sizes = [1, 36], strides = [1, 1]} : vector<7x36xf32> to vector<1x36xf32>
    %80 = vector.broadcast %79 : vector<1x36xf32> to vector<128x36xf32>
    %81 = arith.addf %78, %80 : vector<128x36xf32>
    %82 = arith.addf %4, %81 : vector<128x36xf32>
    %c1_40 = arith.constant 1 : index
    %c0_41 = arith.constant 0 : index
    %c0_42 = arith.constant 0 : index
    %83 = vector.load %arg7[%c1_40, %c0_41, %c0_42] : memref<2x7x36xf32, #tpu.memory_space<vmem>>, vector<1x7x36xf32>
    %84 = vector.shape_cast %83 : vector<1x7x36xf32> to vector<7x36xf32>
    %c1_43 = arith.constant 1 : index
    %c0_44 = arith.constant 0 : index
    %c0_45 = arith.constant 0 : index
    %c0_46 = arith.constant 0 : index
    %85 = vector.load %arg5[%c1_43, %c0_44, %c0_45, %c0_46] : memref<2x6x36x36xbf16, #tpu.memory_space<vmem>>, vector<1x1x36x36xbf16>
    %86 = vector.shape_cast %85 : vector<1x1x36x36xbf16> to vector<36x36xbf16>
    %87 = arith.truncf %82 : vector<128x36xf32> to vector<128x36xbf16>
    %cst_47 = arith.constant dense<0.000000e+00> : vector<128x36xf32>
    %88 = tpu.matmul %87, %86, %cst_47 {dimension_numbers = #tpu.dot_dimension_numbers<[1], [0], [0], [1], [0, 0, 1, 1], [], []>} : vector<128x36xbf16>, vector<36x36xbf16>, vector<128x36xf32> -> vector<128x36xf32>
    %89 = vector.extract_strided_slice %84 {offsets = [0, 0], sizes = [1, 36], strides = [1, 1]} : vector<7x36xf32> to vector<1x36xf32>
    %90 = vector.broadcast %89 : vector<1x36xf32> to vector<128x36xf32>
    %91 = arith.addf %88, %90 : vector<128x36xf32>
    %cst_48 = arith.constant 0.000000e+00 : f32
    %92 = vector.broadcast %cst_48 : f32 to vector<128x36xf32>
    %93 = arith.subf %92, %91 : vector<128x36xf32>
    %94 = math.exp %93 : vector<128x36xf32>
    %cst_49 = arith.constant 1.000000e+00 : f32
    %95 = vector.broadcast %cst_49 : f32 to vector<128x36xf32>
    %96 = arith.addf %95, %94 : vector<128x36xf32>
    %97 = tpu.reciprocal %96 {approx = true} : vector<128x36xf32> -> vector<128x36xf32>
    %98 = arith.mulf %91, %97 : vector<128x36xf32>
    %c1_50 = arith.constant 1 : index
    %c1_51 = arith.constant 1 : index
    %c0_52 = arith.constant 0 : index
    %c0_53 = arith.constant 0 : index
    %99 = vector.load %arg5[%c1_50, %c1_51, %c0_52, %c0_53] : memref<2x6x36x36xbf16, #tpu.memory_space<vmem>>, vector<1x1x36x36xbf16>
    %100 = vector.shape_cast %99 : vector<1x1x36x36xbf16> to vector<36x36xbf16>
    %101 = arith.truncf %98 : vector<128x36xf32> to vector<128x36xbf16>
    %cst_54 = arith.constant dense<0.000000e+00> : vector<128x36xf32>
    %102 = tpu.matmul %101, %100, %cst_54 {dimension_numbers = #tpu.dot_dimension_numbers<[1], [0], [0], [1], [0, 0, 1, 1], [], []>} : vector<128x36xbf16>, vector<36x36xbf16>, vector<128x36xf32> -> vector<128x36xf32>
    %103 = vector.extract_strided_slice %84 {offsets = [1, 0], sizes = [1, 36], strides = [1, 1]} : vector<7x36xf32> to vector<1x36xf32>
    %104 = vector.broadcast %103 : vector<1x36xf32> to vector<128x36xf32>
    %105 = arith.addf %102, %104 : vector<128x36xf32>
    %106 = arith.truncf %105 : vector<128x36xf32> to vector<128x36xbf16>
    %cst_55 = arith.constant dense<0.000000e+00> : vector<240x36xf32>
    %107 = tpu.matmul %10, %106, %cst_55 {dimension_numbers = #tpu.dot_dimension_numbers<[1], [0], [0], [1], [0, 0, 1, 1], [], []>} : vector<240x128xbf16>, vector<128x36xbf16>, vector<240x36xf32> -> vector<240x36xf32>
    %c1_56 = arith.constant 1 : index
    %c0_57 = arith.constant 0 : index
    %c0_58 = arith.constant 0 : index
    %108 = vector.load %arg6[%c1_56, %c0_57, %c0_58] : memref<2x8x36xbf16, #tpu.memory_space<vmem>>, vector<1x8x36xbf16>
    %109 = vector.shape_cast %108 : vector<1x8x36xbf16> to vector<8x36xbf16>
    %110 = arith.truncf %2 : vector<240x8xf32> to vector<240x8xbf16>
    %cst_59 = arith.constant dense<0.000000e+00> : vector<240x36xf32>
    %111 = tpu.matmul %110, %109, %cst_59 {dimension_numbers = #tpu.dot_dimension_numbers<[1], [0], [0], [1], [0, 0, 1, 1], [], []>} : vector<240x8xbf16>, vector<8x36xbf16>, vector<240x36xf32> -> vector<240x36xf32>
    %112 = vector.extract_strided_slice %84 {offsets = [2, 0], sizes = [1, 36], strides = [1, 1]} : vector<7x36xf32> to vector<1x36xf32>
    %113 = vector.broadcast %112 : vector<1x36xf32> to vector<240x36xf32>
    %114 = arith.addf %111, %113 : vector<240x36xf32>
    %115 = vector.broadcast %3 : vector<240x1xf32> to vector<240x36xf32>
    %116 = arith.mulf %114, %115 : vector<240x36xf32>
    %117 = arith.mulf %107, %116 : vector<240x36xf32>
    %118 = arith.truncf %117 : vector<240x36xf32> to vector<240x36xbf16>
    %cst_60 = arith.constant dense<0.000000e+00> : vector<128x36xf32>
    %119 = tpu.matmul %16, %118, %cst_60 {dimension_numbers = #tpu.dot_dimension_numbers<[1], [0], [0], [1], [0, 0, 1, 1], [], []>} : vector<128x240xbf16>, vector<240x36xbf16>, vector<128x36xf32> -> vector<128x36xf32>
    %cst_61 = arith.constant 0.000000e+00 : f32
    %120 = vector.broadcast %cst_61 : f32 to vector<128x36xf32>
    %121 = arith.subf %120, %119 : vector<128x36xf32>
    %122 = math.exp %121 : vector<128x36xf32>
    %cst_62 = arith.constant 1.000000e+00 : f32
    %123 = vector.broadcast %cst_62 : f32 to vector<128x36xf32>
    %124 = arith.addf %123, %122 : vector<128x36xf32>
    %125 = tpu.reciprocal %124 {approx = true} : vector<128x36xf32> -> vector<128x36xf32>
    %126 = arith.mulf %119, %125 : vector<128x36xf32>
    %c1_63 = arith.constant 1 : index
    %c2_64 = arith.constant 2 : index
    %c0_65 = arith.constant 0 : index
    %c0_66 = arith.constant 0 : index
    %127 = vector.load %arg5[%c1_63, %c2_64, %c0_65, %c0_66] : memref<2x6x36x36xbf16, #tpu.memory_space<vmem>>, vector<1x1x36x36xbf16>
    %128 = vector.shape_cast %127 : vector<1x1x36x36xbf16> to vector<36x36xbf16>
    %129 = arith.truncf %126 : vector<128x36xf32> to vector<128x36xbf16>
    %cst_67 = arith.constant dense<0.000000e+00> : vector<128x36xf32>
    %130 = tpu.matmul %129, %128, %cst_67 {dimension_numbers = #tpu.dot_dimension_numbers<[1], [0], [0], [1], [0, 0, 1, 1], [], []>} : vector<128x36xbf16>, vector<36x36xbf16>, vector<128x36xf32> -> vector<128x36xf32>
    %131 = vector.extract_strided_slice %84 {offsets = [3, 0], sizes = [1, 36], strides = [1, 1]} : vector<7x36xf32> to vector<1x36xf32>
    %132 = vector.broadcast %131 : vector<1x36xf32> to vector<128x36xf32>
    %133 = arith.addf %130, %132 : vector<128x36xf32>
    %cst_68 = arith.constant 0.000000e+00 : f32
    %134 = vector.broadcast %cst_68 : f32 to vector<128x36xf32>
    %135 = arith.subf %134, %133 : vector<128x36xf32>
    %136 = math.exp %135 : vector<128x36xf32>
    %cst_69 = arith.constant 1.000000e+00 : f32
    %137 = vector.broadcast %cst_69 : f32 to vector<128x36xf32>
    %138 = arith.addf %137, %136 : vector<128x36xf32>
    %139 = tpu.reciprocal %138 {approx = true} : vector<128x36xf32> -> vector<128x36xf32>
    %140 = arith.mulf %133, %139 : vector<128x36xf32>
    %c1_70 = arith.constant 1 : index
    %c3_71 = arith.constant 3 : index
    %c0_72 = arith.constant 0 : index
    %c0_73 = arith.constant 0 : index
    %141 = vector.load %arg5[%c1_70, %c3_71, %c0_72, %c0_73] : memref<2x6x36x36xbf16, #tpu.memory_space<vmem>>, vector<1x1x36x36xbf16>
    %142 = vector.shape_cast %141 : vector<1x1x36x36xbf16> to vector<36x36xbf16>
    %143 = arith.truncf %140 : vector<128x36xf32> to vector<128x36xbf16>
    %cst_74 = arith.constant dense<0.000000e+00> : vector<128x36xf32>
    %144 = tpu.matmul %143, %142, %cst_74 {dimension_numbers = #tpu.dot_dimension_numbers<[1], [0], [0], [1], [0, 0, 1, 1], [], []>} : vector<128x36xbf16>, vector<36x36xbf16>, vector<128x36xf32> -> vector<128x36xf32>
    %145 = vector.extract_strided_slice %84 {offsets = [4, 0], sizes = [1, 36], strides = [1, 1]} : vector<7x36xf32> to vector<1x36xf32>
    %146 = vector.broadcast %145 : vector<1x36xf32> to vector<128x36xf32>
    %147 = arith.addf %144, %146 : vector<128x36xf32>
    %148 = arith.addf %82, %147 : vector<128x36xf32>
    %cst_75 = arith.constant 0.000000e+00 : f32
    %149 = vector.broadcast %cst_75 : f32 to vector<128x36xf32>
    %150 = arith.subf %149, %148 : vector<128x36xf32>
    %151 = math.exp %150 : vector<128x36xf32>
    %cst_76 = arith.constant 1.000000e+00 : f32
    %152 = vector.broadcast %cst_76 : f32 to vector<128x36xf32>
    %153 = arith.addf %152, %151 : vector<128x36xf32>
    %154 = tpu.reciprocal %153 {approx = true} : vector<128x36xf32> -> vector<128x36xf32>
    %155 = arith.mulf %148, %154 : vector<128x36xf32>
    %c0_77 = arith.constant 0 : index
    %c0_78 = arith.constant 0 : index
    %156 = vector.load %arg8[%c0_77, %c0_78] : memref<36x3xf32, #tpu.memory_space<vmem>>, vector<36x3xf32>
    %cst_79 = arith.constant dense<0.000000e+00> : vector<128x3xf32>
    %157 = tpu.matmul %155, %156, %cst_79 {dimension_numbers = #tpu.dot_dimension_numbers<[1], [0], [0], [1], [0, 0, 1, 1], [], []>} : vector<128x36xf32>, vector<36x3xf32>, vector<128x3xf32> -> vector<128x3xf32>
    %c0_80 = arith.constant 0 : index
    %c0_81 = arith.constant 0 : index
    %158 = vector.load %arg9[%c0_80, %c0_81] : memref<1x3xf32, #tpu.memory_space<vmem>>, vector<1x3xf32>
    %159 = vector.broadcast %158 : vector<1x3xf32> to vector<128x3xf32>
    %160 = arith.addf %157, %159 : vector<128x3xf32>
    %cst_82 = arith.constant 0.000000e+00 : f32
    %161 = vector.broadcast %cst_82 : f32 to vector<128x3xf32>
    %162 = arith.subf %161, %160 : vector<128x3xf32>
    %163 = math.exp %162 : vector<128x3xf32>
    %cst_83 = arith.constant 1.000000e+00 : f32
    %164 = vector.broadcast %cst_83 : f32 to vector<128x3xf32>
    %165 = arith.addf %164, %163 : vector<128x3xf32>
    %166 = tpu.reciprocal %165 {approx = true} : vector<128x3xf32> -> vector<128x3xf32>
    %167 = arith.mulf %160, %166 : vector<128x3xf32>
    %c0_84 = arith.constant 0 : index
    %c0_85 = arith.constant 0 : index
    %168 = vector.load %arg10[%c0_84, %c0_85] : memref<3x3xf32, #tpu.memory_space<vmem>>, vector<3x3xf32>
    %cst_86 = arith.constant dense<0.000000e+00> : vector<128x3xf32>
    %169 = tpu.matmul %167, %168, %cst_86 {dimension_numbers = #tpu.dot_dimension_numbers<[1], [0], [0], [1], [0, 0, 1, 1], [], []>} : vector<128x3xf32>, vector<3x3xf32>, vector<128x3xf32> -> vector<128x3xf32>
    %c0_87 = arith.constant 0 : index
    %c0_88 = arith.constant 0 : index
    %170 = vector.load %arg11[%c0_87, %c0_88] : memref<1x3xf32, #tpu.memory_space<vmem>>, vector<1x3xf32>
    %171 = vector.broadcast %170 : vector<1x3xf32> to vector<128x3xf32>
    %172 = arith.addf %169, %171 : vector<128x3xf32>
    %cst_89 = arith.constant 0.000000e+00 : f32
    %173 = vector.broadcast %cst_89 : f32 to vector<128x36xf32>
    %174 = arith.subf %173, %148 : vector<128x36xf32>
    %175 = math.exp %174 : vector<128x36xf32>
    %cst_90 = arith.constant 1.000000e+00 : f32
    %176 = vector.broadcast %cst_90 : f32 to vector<128x36xf32>
    %177 = arith.addf %176, %175 : vector<128x36xf32>
    %178 = tpu.reciprocal %177 {approx = true} : vector<128x36xf32> -> vector<128x36xf32>
    %179 = arith.mulf %148, %178 : vector<128x36xf32>
    %c0_91 = arith.constant 0 : index
    %c0_92 = arith.constant 0 : index
    %180 = vector.load %arg12[%c0_91, %c0_92] : memref<36x3xf32, #tpu.memory_space<vmem>>, vector<36x3xf32>
    %cst_93 = arith.constant dense<0.000000e+00> : vector<128x3xf32>
    %181 = tpu.matmul %179, %180, %cst_93 {dimension_numbers = #tpu.dot_dimension_numbers<[1], [0], [0], [1], [0, 0, 1, 1], [], []>} : vector<128x36xf32>, vector<36x3xf32>, vector<128x3xf32> -> vector<128x3xf32>
    %cst_94 = arith.constant 0.000000e+00 : f32
    %182 = vector.broadcast %cst_94 : f32 to vector<128x3xf32>
    %183 = arith.subf %182, %172 : vector<128x3xf32>
    %184 = math.exp %183 : vector<128x3xf32>
    %cst_95 = arith.constant 1.000000e+00 : f32
    %185 = vector.broadcast %cst_95 : f32 to vector<128x3xf32>
    %186 = arith.addf %185, %184 : vector<128x3xf32>
    %187 = tpu.reciprocal %186 {approx = true} : vector<128x3xf32> -> vector<128x3xf32>
    %188 = arith.mulf %172, %187 : vector<128x3xf32>
    %c0_96 = arith.constant 0 : index
    %c0_97 = arith.constant 0 : index
    %189 = vector.load %arg13[%c0_96, %c0_97] : memref<3x3xf32, #tpu.memory_space<vmem>>, vector<3x3xf32>
    %cst_98 = arith.constant dense<0.000000e+00> : vector<128x3xf32>
    %190 = tpu.matmul %188, %189, %cst_98 {dimension_numbers = #tpu.dot_dimension_numbers<[1], [0], [0], [1], [0, 0, 1, 1], [], []>} : vector<128x3xf32>, vector<3x3xf32>, vector<128x3xf32> -> vector<128x3xf32>
    %191 = arith.addf %181, %190 : vector<128x3xf32>
    %c0_99 = arith.constant 0 : index
    %c0_100 = arith.constant 0 : index
    %192 = vector.load %arg14[%c0_99, %c0_100] : memref<1x3xf32, #tpu.memory_space<vmem>>, vector<1x3xf32>
    %193 = vector.broadcast %192 : vector<1x3xf32> to vector<128x3xf32>
    %194 = arith.addf %191, %193 : vector<128x3xf32>
    %cst_101 = arith.constant 0.000000e+00 : f32
    %195 = vector.broadcast %cst_101 : f32 to vector<128x3xf32>
    %196 = arith.subf %195, %194 : vector<128x3xf32>
    %197 = math.exp %196 : vector<128x3xf32>
    %cst_102 = arith.constant 1.000000e+00 : f32
    %198 = vector.broadcast %cst_102 : f32 to vector<128x3xf32>
    %199 = arith.addf %198, %197 : vector<128x3xf32>
    %200 = tpu.reciprocal %199 {approx = true} : vector<128x3xf32> -> vector<128x3xf32>
    %201 = arith.mulf %194, %200 : vector<128x3xf32>
    %c0_103 = arith.constant 0 : index
    %c0_104 = arith.constant 0 : index
    %202 = vector.load %arg15[%c0_103, %c0_104] : memref<3x3xf32, #tpu.memory_space<vmem>>, vector<3x3xf32>
    %cst_105 = arith.constant dense<0.000000e+00> : vector<128x3xf32>
    %203 = tpu.matmul %201, %202, %cst_105 {dimension_numbers = #tpu.dot_dimension_numbers<[1], [0], [0], [1], [0, 0, 1, 1], [], []>} : vector<128x3xf32>, vector<3x3xf32>, vector<128x3xf32> -> vector<128x3xf32>
    %c0_106 = arith.constant 0 : index
    %c0_107 = arith.constant 0 : index
    %204 = vector.load %arg16[%c0_106, %c0_107] : memref<1x3xf32, #tpu.memory_space<vmem>>, vector<1x3xf32>
    %205 = vector.broadcast %204 : vector<1x3xf32> to vector<128x3xf32>
    %206 = arith.addf %203, %205 : vector<128x3xf32>
    %c0_108 = arith.constant 0 : index
    %c0_109 = arith.constant 0 : index
    %c0_110 = arith.constant 0 : index
    %207 = vector.load %arg7[%c0_108, %c0_109, %c0_110] : memref<2x7x36xf32, #tpu.memory_space<vmem>>, vector<1x7x36xf32>
    %208 = vector.shape_cast %207 : vector<1x7x36xf32> to vector<7x36xf32>
    %cst_111 = arith.constant 0.000000e+00 : f32
    %209 = vector.broadcast %cst_111 : f32 to vector<128x36xf32>
    %210 = arith.subf %209, %148 : vector<128x36xf32>
    %211 = math.exp %210 : vector<128x36xf32>
    %cst_112 = arith.constant 1.000000e+00 : f32
    %212 = vector.broadcast %cst_112 : f32 to vector<128x36xf32>
    %213 = arith.addf %212, %211 : vector<128x36xf32>
    %214 = tpu.reciprocal %213 {approx = true} : vector<128x36xf32> -> vector<128x36xf32>
    %215 = arith.mulf %148, %214 : vector<128x36xf32>
    %c0_113 = arith.constant 0 : index
    %c4 = arith.constant 4 : index
    %c0_114 = arith.constant 0 : index
    %c0_115 = arith.constant 0 : index
    %216 = vector.load %arg5[%c0_113, %c4, %c0_114, %c0_115] : memref<2x6x36x36xbf16, #tpu.memory_space<vmem>>, vector<1x1x36x36xbf16>
    %217 = vector.shape_cast %216 : vector<1x1x36x36xbf16> to vector<36x36xbf16>
    %218 = arith.truncf %215 : vector<128x36xf32> to vector<128x36xbf16>
    %cst_116 = arith.constant dense<0.000000e+00> : vector<128x36xf32>
    %219 = tpu.matmul %218, %217, %cst_116 {dimension_numbers = #tpu.dot_dimension_numbers<[1], [0], [0], [1], [0, 0, 1, 1], [], []>} : vector<128x36xbf16>, vector<36x36xbf16>, vector<128x36xf32> -> vector<128x36xf32>
    %220 = vector.extract_strided_slice %208 {offsets = [5, 0], sizes = [1, 36], strides = [1, 1]} : vector<7x36xf32> to vector<1x36xf32>
    %221 = vector.broadcast %220 : vector<1x36xf32> to vector<128x36xf32>
    %222 = arith.addf %219, %221 : vector<128x36xf32>
    %cst_117 = arith.constant 0.000000e+00 : f32
    %223 = vector.broadcast %cst_117 : f32 to vector<128x36xf32>
    %224 = arith.subf %223, %222 : vector<128x36xf32>
    %225 = math.exp %224 : vector<128x36xf32>
    %cst_118 = arith.constant 1.000000e+00 : f32
    %226 = vector.broadcast %cst_118 : f32 to vector<128x36xf32>
    %227 = arith.addf %226, %225 : vector<128x36xf32>
    %228 = tpu.reciprocal %227 {approx = true} : vector<128x36xf32> -> vector<128x36xf32>
    %229 = arith.mulf %222, %228 : vector<128x36xf32>
    %c0_119 = arith.constant 0 : index
    %c5 = arith.constant 5 : index
    %c0_120 = arith.constant 0 : index
    %c0_121 = arith.constant 0 : index
    %230 = vector.load %arg5[%c0_119, %c5, %c0_120, %c0_121] : memref<2x6x36x36xbf16, #tpu.memory_space<vmem>>, vector<1x1x36x36xbf16>
    %231 = vector.shape_cast %230 : vector<1x1x36x36xbf16> to vector<36x36xbf16>
    %232 = arith.truncf %229 : vector<128x36xf32> to vector<128x36xbf16>
    %cst_122 = arith.constant dense<0.000000e+00> : vector<128x36xf32>
    %233 = tpu.matmul %232, %231, %cst_122 {dimension_numbers = #tpu.dot_dimension_numbers<[1], [0], [0], [1], [0, 0, 1, 1], [], []>} : vector<128x36xbf16>, vector<36x36xbf16>, vector<128x36xf32> -> vector<128x36xf32>
    %234 = vector.extract_strided_slice %208 {offsets = [6, 0], sizes = [1, 36], strides = [1, 1]} : vector<7x36xf32> to vector<1x36xf32>
    %235 = vector.broadcast %234 : vector<1x36xf32> to vector<128x36xf32>
    %236 = arith.addf %233, %235 : vector<128x36xf32>
    %237 = arith.addf %148, %236 : vector<128x36xf32>
    %c1_123 = arith.constant 1 : index
    %c0_124 = arith.constant 0 : index
    %c0_125 = arith.constant 0 : index
    %238 = vector.load %arg7[%c1_123, %c0_124, %c0_125] : memref<2x7x36xf32, #tpu.memory_space<vmem>>, vector<1x7x36xf32>
    %239 = vector.shape_cast %238 : vector<1x7x36xf32> to vector<7x36xf32>
    %cst_126 = arith.constant 0.000000e+00 : f32
    %240 = vector.broadcast %cst_126 : f32 to vector<128x36xf32>
    %241 = arith.subf %240, %237 : vector<128x36xf32>
    %242 = math.exp %241 : vector<128x36xf32>
    %cst_127 = arith.constant 1.000000e+00 : f32
    %243 = vector.broadcast %cst_127 : f32 to vector<128x36xf32>
    %244 = arith.addf %243, %242 : vector<128x36xf32>
    %245 = tpu.reciprocal %244 {approx = true} : vector<128x36xf32> -> vector<128x36xf32>
    %246 = arith.mulf %237, %245 : vector<128x36xf32>
    %c1_128 = arith.constant 1 : index
    %c4_129 = arith.constant 4 : index
    %c0_130 = arith.constant 0 : index
    %c0_131 = arith.constant 0 : index
    %247 = vector.load %arg5[%c1_128, %c4_129, %c0_130, %c0_131] : memref<2x6x36x36xbf16, #tpu.memory_space<vmem>>, vector<1x1x36x36xbf16>
    %248 = vector.shape_cast %247 : vector<1x1x36x36xbf16> to vector<36x36xbf16>
    %249 = arith.truncf %246 : vector<128x36xf32> to vector<128x36xbf16>
    %cst_132 = arith.constant dense<0.000000e+00> : vector<128x36xf32>
    %250 = tpu.matmul %249, %248, %cst_132 {dimension_numbers = #tpu.dot_dimension_numbers<[1], [0], [0], [1], [0, 0, 1, 1], [], []>} : vector<128x36xbf16>, vector<36x36xbf16>, vector<128x36xf32> -> vector<128x36xf32>
    %251 = vector.extract_strided_slice %239 {offsets = [5, 0], sizes = [1, 36], strides = [1, 1]} : vector<7x36xf32> to vector<1x36xf32>
    %252 = vector.broadcast %251 : vector<1x36xf32> to vector<128x36xf32>
    %253 = arith.addf %250, %252 : vector<128x36xf32>
    %cst_133 = arith.constant 0.000000e+00 : f32
    %254 = vector.broadcast %cst_133 : f32 to vector<128x36xf32>
    %255 = arith.subf %254, %253 : vector<128x36xf32>
    %256 = math.exp %255 : vector<128x36xf32>
    %cst_134 = arith.constant 1.000000e+00 : f32
    %257 = vector.broadcast %cst_134 : f32 to vector<128x36xf32>
    %258 = arith.addf %257, %256 : vector<128x36xf32>
    %259 = tpu.reciprocal %258 {approx = true} : vector<128x36xf32> -> vector<128x36xf32>
    %260 = arith.mulf %253, %259 : vector<128x36xf32>
    %c1_135 = arith.constant 1 : index
    %c5_136 = arith.constant 5 : index
    %c0_137 = arith.constant 0 : index
    %c0_138 = arith.constant 0 : index
    %261 = vector.load %arg5[%c1_135, %c5_136, %c0_137, %c0_138] : memref<2x6x36x36xbf16, #tpu.memory_space<vmem>>, vector<1x1x36x36xbf16>
    %262 = vector.shape_cast %261 : vector<1x1x36x36xbf16> to vector<36x36xbf16>
    %263 = arith.truncf %260 : vector<128x36xf32> to vector<128x36xbf16>
    %cst_139 = arith.constant dense<0.000000e+00> : vector<128x36xf32>
    %264 = tpu.matmul %263, %262, %cst_139 {dimension_numbers = #tpu.dot_dimension_numbers<[1], [0], [0], [1], [0, 0, 1, 1], [], []>} : vector<128x36xbf16>, vector<36x36xbf16>, vector<128x36xf32> -> vector<128x36xf32>
    %265 = vector.extract_strided_slice %239 {offsets = [6, 0], sizes = [1, 36], strides = [1, 1]} : vector<7x36xf32> to vector<1x36xf32>
    %266 = vector.broadcast %265 : vector<1x36xf32> to vector<128x36xf32>
    %267 = arith.addf %264, %266 : vector<128x36xf32>
    %268 = arith.addf %237, %267 : vector<128x36xf32>
    %cst_140 = arith.constant 0.000000e+00 : f32
    %269 = vector.broadcast %cst_140 : f32 to vector<128x36xf32>
    %270 = arith.subf %269, %268 : vector<128x36xf32>
    %271 = math.exp %270 : vector<128x36xf32>
    %cst_141 = arith.constant 1.000000e+00 : f32
    %272 = vector.broadcast %cst_141 : f32 to vector<128x36xf32>
    %273 = arith.addf %272, %271 : vector<128x36xf32>
    %274 = tpu.reciprocal %273 {approx = true} : vector<128x36xf32> -> vector<128x36xf32>
    %275 = arith.mulf %268, %274 : vector<128x36xf32>
    %c0_142 = arith.constant 0 : index
    %c0_143 = arith.constant 0 : index
    %276 = vector.load %arg17[%c0_142, %c0_143] : memref<36x10xf32, #tpu.memory_space<vmem>>, vector<36x10xf32>
    %cst_144 = arith.constant dense<0.000000e+00> : vector<128x10xf32>
    %277 = tpu.matmul %275, %276, %cst_144 {dimension_numbers = #tpu.dot_dimension_numbers<[1], [0], [0], [1], [0, 0, 1, 1], [], []>} : vector<128x36xf32>, vector<36x10xf32>, vector<128x10xf32> -> vector<128x10xf32>
    %c0_145 = arith.constant 0 : index
    %c0_146 = arith.constant 0 : index
    %278 = vector.load %arg18[%c0_145, %c0_146] : memref<1x10xf32, #tpu.memory_space<vmem>>, vector<1x10xf32>
    %279 = vector.broadcast %278 : vector<1x10xf32> to vector<128x10xf32>
    %280 = arith.addf %277, %279 : vector<128x10xf32>
    %cst_147 = arith.constant 0.000000e+00 : f32
    %281 = vector.broadcast %cst_147 : f32 to vector<128x10xf32>
    %282 = arith.subf %281, %280 : vector<128x10xf32>
    %283 = math.exp %282 : vector<128x10xf32>
    %cst_148 = arith.constant 1.000000e+00 : f32
    %284 = vector.broadcast %cst_148 : f32 to vector<128x10xf32>
    %285 = arith.addf %284, %283 : vector<128x10xf32>
    %286 = tpu.reciprocal %285 {approx = true} : vector<128x10xf32> -> vector<128x10xf32>
    %287 = arith.mulf %280, %286 : vector<128x10xf32>
    %c0_149 = arith.constant 0 : index
    %c0_150 = arith.constant 0 : index
    %288 = vector.load %arg19[%c0_149, %c0_150] : memref<10x10xf32, #tpu.memory_space<vmem>>, vector<10x10xf32>
    %cst_151 = arith.constant dense<0.000000e+00> : vector<128x10xf32>
    %289 = tpu.matmul %287, %288, %cst_151 {dimension_numbers = #tpu.dot_dimension_numbers<[1], [0], [0], [1], [0, 0, 1, 1], [], []>} : vector<128x10xf32>, vector<10x10xf32>, vector<128x10xf32> -> vector<128x10xf32>
    %c0_152 = arith.constant 0 : index
    %c0_153 = arith.constant 0 : index
    %290 = vector.load %arg20[%c0_152, %c0_153] : memref<1x10xf32, #tpu.memory_space<vmem>>, vector<1x10xf32>
    %291 = vector.broadcast %290 : vector<1x10xf32> to vector<128x10xf32>
    %292 = arith.addf %289, %291 : vector<128x10xf32>
    %c0_154 = arith.constant 0 : index
    %c0_155 = arith.constant 0 : index
    %293 = vector.load %arg21[%c0_154, %c0_155] : memref<128x16xf32, #tpu.memory_space<vmem>>, vector<128x3xf32>
    tpu.vector_store %arg21[%c0_154, %c0_155], %172 {strides = array<i32>} : memref<128x16xf32, #tpu.memory_space<vmem>>, vector<128x3xf32>,
    %c0_156 = arith.constant 0 : index
    %c3_157 = arith.constant 3 : index
    %294 = vector.load %arg21[%c0_156, %c3_157] : memref<128x16xf32, #tpu.memory_space<vmem>>, vector<128x3xf32>
    tpu.vector_store %arg21[%c0_156, %c3_157], %206 {strides = array<i32>} : memref<128x16xf32, #tpu.memory_space<vmem>>, vector<128x3xf32>,
    %c0_158 = arith.constant 0 : index
    %c6 = arith.constant 6 : index
    %295 = vector.load %arg21[%c0_158, %c6] : memref<128x16xf32, #tpu.memory_space<vmem>>, vector<128x10xf32>
    tpu.vector_store %arg21[%c0_158, %c6], %292 {strides = array<i32>} : memref<128x16xf32, #tpu.memory_space<vmem>>, vector<128x10xf32>,
    return
  }
}

</mosaic_0001>

<llo_original>
// kernel: tpu_custom_call.1
$region0: #{tpu_custom_call.1}
  #allocation0 [shape = 'u32[]', space=smem, size = 0x4, offset = 0x4, fixed_abs, tag = 'smem constant byte address 0x4 - core index']
  #allocation1 [shape = 'u32[72,128]{1,0:T(1,128)}', space=vmem, size = 0x9000, scoped, tag = 'internal scratch']
  %s0 = inlined_call_operand.vmem [shape: s32[1,240], index: 0, kind: input, shape index: {}]
  %s1 = inlined_call_operand.vmem [shape: s32[240,1], index: 1, kind: input, shape index: {}]
  %s2 = inlined_call_operand.vmem [shape: f32[240,8], index: 2, kind: input, shape index: {}]
  %s3 = inlined_call_operand.vmem [shape: f32[240,1], index: 3, kind: input, shape index: {}]
  %s4 = inlined_call_operand.vmem [shape: f32[128,36], index: 4, kind: input, shape index: {}]
  %s5 = inlined_call_operand.vmem [shape: bf16[2,6,36,36], index: 5, kind: input, shape index: {}]
  %s6 = inlined_call_operand.vmem [shape: bf16[2,8,36], index: 6, kind: input, shape index: {}]
  %s7 = inlined_call_operand.vmem [shape: f32[2,7,36], index: 7, kind: input, shape index: {}]
  %s8 = inlined_call_operand.vmem [shape: f32[36,3], index: 8, kind: input, shape index: {}]
  %s9 = inlined_call_operand.vmem [shape: f32[1,3], index: 9, kind: input, shape index: {}]
  %s10 = inlined_call_operand.vmem [shape: f32[3,3], index: 10, kind: input, shape index: {}]
  %s11 = inlined_call_operand.vmem [shape: f32[1,3], index: 11, kind: input, shape index: {}]
  %s12 = inlined_call_operand.vmem [shape: f32[36,3], index: 12, kind: input, shape index: {}]
  %s13 = inlined_call_operand.vmem [shape: f32[3,3], index: 13, kind: input, shape index: {}]
  %s14 = inlined_call_operand.vmem [shape: f32[1,3], index: 14, kind: input, shape index: {}]
  %s15 = inlined_call_operand.vmem [shape: f32[3,3], index: 15, kind: input, shape index: {}]
  %s16 = inlined_call_operand.vmem [shape: f32[1,3], index: 16, kind: input, shape index: {}]
  %s17 = inlined_call_operand.vmem [shape: f32[36,10], index: 17, kind: input, shape index: {}]
  %s18 = inlined_call_operand.vmem [shape: f32[1,10], index: 18, kind: input, shape index: {}]
  %s19 = inlined_call_operand.vmem [shape: f32[10,10], index: 19, kind: input, shape index: {}]
  %s20 = inlined_call_operand.vmem [shape: f32[1,10], index: 20, kind: input, shape index: {}]
  %s21 = inlined_call_operand.vmem [shape: f32[128,16], index: 21, kind: output, shape index: {}]
  %s22 = sld [smem:[#allocation0]]
  $region94: #{tpu_custom_call.1} parent=0
    _
  %s24 = ssub.s32 1, %s22
  %s25 = scalar_select 0, %s24, %s22
  // Predicated region
  $region2: #{tpu_custom_call.1} parent=0 // pred_check
    _
  $region3: #{tpu_custom_call.1} parent=0 // pred_check_branch
    %27 = sbr.rel (0) target = $region5
  $region4: #{tpu_custom_call.1} parent=0 // pred_region
    _
  $region5: #{tpu_custom_call.1} parent=0 // pred_fallthru
    _
  // Predicated region
  $region6: #{tpu_custom_call.1} parent=0 // pred_check
    _
  $region7: #{tpu_custom_call.1} parent=0 // pred_check_branch
    %29 = sbr.rel (0) target = $region9
  $region8: #{tpu_custom_call.1} parent=0 // pred_region
    _
  $region9: #{tpu_custom_call.1} parent=0 // pred_fallthru
    _
  // Predicated region
  $region10: #{tpu_custom_call.1} parent=0 // pred_check
    _
  $region11: #{tpu_custom_call.1} parent=0 // pred_check_branch
    %31 = sbr.rel (0) target = $region13
  $region12: #{tpu_custom_call.1} parent=0 // pred_region
    _
  $region13: #{tpu_custom_call.1} parent=0 // pred_fallthru
    _
  // Predicated region
  $region14: #{tpu_custom_call.1} parent=0 // pred_check
    _
  $region15: #{tpu_custom_call.1} parent=0 // pred_check_branch
    %33 = sbr.rel (0) target = $region17
  $region16: #{tpu_custom_call.1} parent=0 // pred_region
    _
  $region17: #{tpu_custom_call.1} parent=0 // pred_fallthru
    _
  // Predicated region
  $region18: #{tpu_custom_call.1} parent=0 // pred_check
    _
  $region19: #{tpu_custom_call.1} parent=0 // pred_check_branch
    %35 = sbr.rel (0) target = $region21
  $region20: #{tpu_custom_call.1} parent=0 // pred_region
    _
  $region21: #{tpu_custom_call.1} parent=0 // pred_fallthru
    _
  // Predicated region
  $region22: #{tpu_custom_call.1} parent=0 // pred_check
    _
  $region23: #{tpu_custom_call.1} parent=0 // pred_check_branch
    %37 = sbr.rel (0) target = $region25
  $region24: #{tpu_custom_call.1} parent=0 // pred_region
    _
  $region25: #{tpu_custom_call.1} parent=0 // pred_fallthru
    _
  // Predicated region
  $region26: #{tpu_custom_call.1} parent=0 // pred_check
    _
  $region27: #{tpu_custom_call.1} parent=0 // pred_check_branch
    %39 = sbr.rel (0) target = $region29
  $region28: #{tpu_custom_call.1} parent=0 // pred_region
    _
  $region29: #{tpu_custom_call.1} parent=0 // pred_fallthru
    _
  // Predicated region
  $region30: #{tpu_custom_call.1} parent=0 // pred_check
    _
  $region31: #{tpu_custom_call.1} parent=0 // pred_check_branch
    %41 = sbr.rel (0) target = $region33
  $region32: #{tpu_custom_call.1} parent=0 // pred_region
    _
  $region33: #{tpu_custom_call.1} parent=0 // pred_fallthru
    _
  // Predicated region
  $region34: #{tpu_custom_call.1} parent=0 // pred_check
    _
  $region35: #{tpu_custom_call.1} parent=0 // pred_check_branch
    %43 = sbr.rel (0) target = $region37
  $region36: #{tpu_custom_call.1} parent=0 // pred_region
    _
  $region37: #{tpu_custom_call.1} parent=0 // pred_fallthru
    _
  // Predicated region
  $region38: #{tpu_custom_call.1} parent=0 // pred_check
    _
  $region39: #{tpu_custom_call.1} parent=0 // pred_check_branch
    %45 = sbr.rel (0) target = $region41
  $region40: #{tpu_custom_call.1} parent=0 // pred_region
    _
  $region41: #{tpu_custom_call.1} parent=0 // pred_fallthru
    _
  // Predicated region
  $region42: #{tpu_custom_call.1} parent=0 // pred_check
    _
  $region43: #{tpu_custom_call.1} parent=0 // pred_check_branch
    %47 = sbr.rel (0) target = $region45
  $region44: #{tpu_custom_call.1} parent=0 // pred_region
    _
  $region45: #{tpu_custom_call.1} parent=0 // pred_fallthru
    _
  // Predicated region
  $region46: #{tpu_custom_call.1} parent=0 // pred_check
    _
  $region47: #{tpu_custom_call.1} parent=0 // pred_check_branch
    %49 = sbr.rel (0) target = $region49
  $region48: #{tpu_custom_call.1} parent=0 // pred_region
    _
  $region49: #{tpu_custom_call.1} parent=0 // pred_fallthru
    _
  // Predicated region
  $region50: #{tpu_custom_call.1} parent=0 // pred_check
    _
  $region51: #{tpu_custom_call.1} parent=0 // pred_check_branch
    %51 = sbr.rel (0) target = $region53
  $region52: #{tpu_custom_call.1} parent=0 // pred_region
    _
  $region53: #{tpu_custom_call.1} parent=0 // pred_fallthru
    _
  // Predicated region
  $region54: #{tpu_custom_call.1} parent=0 // pred_check
    _
  $region55: #{tpu_custom_call.1} parent=0 // pred_check_branch
    %53 = sbr.rel (0) target = $region57
  $region56: #{tpu_custom_call.1} parent=0 // pred_region
    _
  $region57: #{tpu_custom_call.1} parent=0 // pred_fallthru
    _
  // Predicated region
  $region58: #{tpu_custom_call.1} parent=0 // pred_check
    _
  $region59: #{tpu_custom_call.1} parent=0 // pred_check_branch
    %55 = sbr.rel (0) target = $region61
  $region60: #{tpu_custom_call.1} parent=0 // pred_region
    _
  $region61: #{tpu_custom_call.1} parent=0 // pred_fallthru
    _
  // Predicated region
  $region62: #{tpu_custom_call.1} parent=0 // pred_check
    _
  $region63: #{tpu_custom_call.1} parent=0 // pred_check_branch
    %57 = sbr.rel (0) target = $region65
  $region64: #{tpu_custom_call.1} parent=0 // pred_region
    _
  $region65: #{tpu_custom_call.1} parent=0 // pred_fallthru
    _
  // Predicated region
  $region66: #{tpu_custom_call.1} parent=0 // pred_check
    _
  $region67: #{tpu_custom_call.1} parent=0 // pred_check_branch
    %59 = sbr.rel (0) target = $region69
  $region68: #{tpu_custom_call.1} parent=0 // pred_region
    _
  $region69: #{tpu_custom_call.1} parent=0 // pred_fallthru
    _
  // Predicated region
  $region70: #{tpu_custom_call.1} parent=0 // pred_check
    _
  $region71: #{tpu_custom_call.1} parent=0 // pred_check_branch
    %61 = sbr.rel (0) target = $region73
  $region72: #{tpu_custom_call.1} parent=0 // pred_region
    _
  $region73: #{tpu_custom_call.1} parent=0 // pred_fallthru
    _
  // Predicated region
  $region74: #{tpu_custom_call.1} parent=0 // pred_check
    _
  $region75: #{tpu_custom_call.1} parent=0 // pred_check_branch
    %63 = sbr.rel (0) target = $region77
  $region76: #{tpu_custom_call.1} parent=0 // pred_region
    _
  $region77: #{tpu_custom_call.1} parent=0 // pred_fallthru
    _
  // Predicated region
  $region78: #{tpu_custom_call.1} parent=0 // pred_check
    _
  $region79: #{tpu_custom_call.1} parent=0 // pred_check_branch
    %65 = sbr.rel (0) target = $region81
  $region80: #{tpu_custom_call.1} parent=0 // pred_region
    _
  $region81: #{tpu_custom_call.1} parent=0 // pred_fallthru
    _
  // Predicated region
  $region82: #{tpu_custom_call.1} parent=0 // pred_check
    _
  $region83: #{tpu_custom_call.1} parent=0 // pred_check_branch
    %67 = sbr.rel (0) target = $region85
  $region84: #{tpu_custom_call.1} parent=0 // pred_region
    _
  $region85: #{tpu_custom_call.1} parent=0 // pred_fallthru
    _
  %v69 = vld [vmem:[%s0] sm:$0x3]
  %v70 = vld [vmem:[%s1] sm:$0xff]
  %v71 = vld [vmem:[%s1 + $0x8] sm:$0xff]
  %v72 = vld [vmem:[%s1 + $0x10] sm:$0xff]
  %v73 = vld [vmem:[%s1 + $0x18] sm:$0xff]
  %v74 = vld [vmem:[%s1 + $0x20] sm:$0xff]
  %v75 = vld [vmem:[%s1 + $0x28] sm:$0xff]
  %v76 = vld [vmem:[%s1 + $0x30] sm:$0xff]
  %v77 = vld [vmem:[%s1 + $0x38] sm:$0xff]
  %v78 = vld [vmem:[%s1 + $0x40] sm:$0xff]
  %v79 = vld [vmem:[%s1 + $0x48] sm:$0xff]
  %v80 = vld [vmem:[%s1 + $0x50] sm:$0xff]
  %v81 = vld [vmem:[%s1 + $0x58] sm:$0xff]
  %v82 = vld [vmem:[%s1 + $0x60] sm:$0xff]
  %v83 = vld [vmem:[%s1 + $0x68] sm:$0xff]
  %v84 = vld [vmem:[%s1 + $0x70] sm:$0xff]
  %v85 = vld [vmem:[%s1 + $0x78] sm:$0xff]
  %v86 = vld [vmem:[%s1 + $0x80] sm:$0xff]
  %v87 = vld [vmem:[%s1 + $0x88] sm:$0xff]
  %v88 = vld [vmem:[%s1 + $0x90] sm:$0xff]
  %v89 = vld [vmem:[%s1 + $0x98] sm:$0xff]
  %v90 = vld [vmem:[%s1 + $0xa0] sm:$0xff]
  %v91 = vld [vmem:[%s1 + $0xa8] sm:$0xff]
  %v92 = vld [vmem:[%s1 + $0xb0] sm:$0xff]
  %v93 = vld [vmem:[%s1 + $0xb8] sm:$0xff]
  %v94 = vld [vmem:[%s1 + $0xc0] sm:$0xff]
  %v95 = vld [vmem:[%s1 + $0xc8] sm:$0xff]
  %v96 = vld [vmem:[%s1 + $0xd0] sm:$0xff]
  %v97 = vld [vmem:[%s1 + $0xd8] sm:$0xff]
  %v98 = vld [vmem:[%s1 + $0xe0] sm:$0xff]
  %v99 = vld [vmem:[%s1 + $0xe8] sm:$0xff]
  %v100 = vld [vmem:[%s2] sm:$0xff]
  %v101 = vld [vmem:[%s2 + $0x8] sm:$0xff]
  %v102 = vld [vmem:[%s2 + $0x10] sm:$0xff]
  %v103 = vld [vmem:[%s2 + $0x18] sm:$0xff]
  %v104 = vld [vmem:[%s2 + $0x20] sm:$0xff]
  %v105 = vld [vmem:[%s2 + $0x28] sm:$0xff]
  %v106 = vld [vmem:[%s2 + $0x30] sm:$0xff]
  %v107 = vld [vmem:[%s2 + $0x38] sm:$0xff]
  %v108 = vld [vmem:[%s2 + $0x40] sm:$0xff]
  %v109 = vld [vmem:[%s2 + $0x48] sm:$0xff]
  %v110 = vld [vmem:[%s2 + $0x50] sm:$0xff]
  %v111 = vld [vmem:[%s2 + $0x58] sm:$0xff]
  %v112 = vld [vmem:[%s2 + $0x60] sm:$0xff]
  %v113 = vld [vmem:[%s2 + $0x68] sm:$0xff]
  %v114 = vld [vmem:[%s2 + $0x70] sm:$0xff]
  %v115 = vld [vmem:[%s2 + $0x78] sm:$0xff]
  %v116 = vld [vmem:[%s2 + $0x80] sm:$0xff]
  %v117 = vld [vmem:[%s2 + $0x88] sm:$0xff]
  %v118 = vld [vmem:[%s2 + $0x90] sm:$0xff]
  %v119 = vld [vmem:[%s2 + $0x98] sm:$0xff]
  %v120 = vld [vmem:[%s2 + $0xa0] sm:$0xff]
  %v121 = vld [vmem:[%s2 + $0xa8] sm:$0xff]
  %v122 = vld [vmem:[%s2 + $0xb0] sm:$0xff]
  %v123 = vld [vmem:[%s2 + $0xb8] sm:$0xff]
  %v124 = vld [vmem:[%s2 + $0xc0] sm:$0xff]
  %v125 = vld [vmem:[%s2 + $0xc8] sm:$0xff]
  %v126 = vld [vmem:[%s2 + $0xd0] sm:$0xff]
  %v127 = vld [vmem:[%s2 + $0xd8] sm:$0xff]
  %v128 = vld [vmem:[%s2 + $0xe0] sm:$0xff]
  %v129 = vld [vmem:[%s2 + $0xe8] sm:$0xff]
  %v130 = vld [vmem:[%s3] sm:$0xff]
  %v131 = vld [vmem:[%s3 + $0x8] sm:$0xff]
  %v132 = vld [vmem:[%s3 + $0x10] sm:$0xff]
  %v133 = vld [vmem:[%s3 + $0x18] sm:$0xff]
  %v134 = vld [vmem:[%s3 + $0x20] sm:$0xff]
  %v135 = vld [vmem:[%s3 + $0x28] sm:$0xff]
  %v136 = vld [vmem:[%s3 + $0x30] sm:$0xff]
  %v137 = vld [vmem:[%s3 + $0x38] sm:$0xff]
  %v138 = vld [vmem:[%s3 + $0x40] sm:$0xff]
  %v139 = vld [vmem:[%s3 + $0x48] sm:$0xff]
  %v140 = vld [vmem:[%s3 + $0x50] sm:$0xff]
  %v141 = vld [vmem:[%s3 + $0x58] sm:$0xff]
  %v142 = vld [vmem:[%s3 + $0x60] sm:$0xff]
  %v143 = vld [vmem:[%s3 + $0x68] sm:$0xff]
  %v144 = vld [vmem:[%s3 + $0x70] sm:$0xff]
  %v145 = vld [vmem:[%s3 + $0x78] sm:$0xff]
  %v146 = vld [vmem:[%s3 + $0x80] sm:$0xff]
  %v147 = vld [vmem:[%s3 + $0x88] sm:$0xff]
  %v148 = vld [vmem:[%s3 + $0x90] sm:$0xff]
  %v149 = vld [vmem:[%s3 + $0x98] sm:$0xff]
  %v150 = vld [vmem:[%s3 + $0xa0] sm:$0xff]
  %v151 = vld [vmem:[%s3 + $0xa8] sm:$0xff]
  %v152 = vld [vmem:[%s3 + $0xb0] sm:$0xff]
  %v153 = vld [vmem:[%s3 + $0xb8] sm:$0xff]
  %v154 = vld [vmem:[%s3 + $0xc0] sm:$0xff]
  %v155 = vld [vmem:[%s3 + $0xc8] sm:$0xff]
  %v156 = vld [vmem:[%s3 + $0xd0] sm:$0xff]
  %v157 = vld [vmem:[%s3 + $0xd8] sm:$0xff]
  %v158 = vld [vmem:[%s3 + $0xe0] sm:$0xff]
  %v159 = vld [vmem:[%s3 + $0xe8] sm:$0xff]
  %v160 = vld [vmem:[%s4] sm:$0xff]
  %v161 = vld [vmem:[%s4 + $0x8] sm:$0xff]
  %v162 = vld [vmem:[%s4 + $0x10] sm:$0xff]
  %v163 = vld [vmem:[%s4 + $0x18] sm:$0xff]
  %v164 = vld [vmem:[%s4 + $0x20] sm:$0xff]
  %v165 = vld [vmem:[%s4 + $0x28] sm:$0xff]
  %v166 = vld [vmem:[%s4 + $0x30] sm:$0xff]
  %v167 = vld [vmem:[%s4 + $0x38] sm:$0xff]
  %v168 = vld [vmem:[%s4 + $0x40] sm:$0xff]
  %v169 = vld [vmem:[%s4 + $0x48] sm:$0xff]
  %v170 = vld [vmem:[%s4 + $0x50] sm:$0xff]
  %v171 = vld [vmem:[%s4 + $0x58] sm:$0xff]
  %v172 = vld [vmem:[%s4 + $0x60] sm:$0xff]
  %v173 = vld [vmem:[%s4 + $0x68] sm:$0xff]
  %v174 = vld [vmem:[%s4 + $0x70] sm:$0xff]
  %v175 = vld [vmem:[%s4 + $0x78] sm:$0xff]
  %v176 = vlaneseq
  %v177 = vand.u32 %v176, 127
  %178 = vset.pattern.permute.xlu0 0
  %179 = vperm.xlu0 %178, %v70
  %v180 = vpop.permute.xlu0 %179
  %181 = vset.pattern.permute.xlu0 0
  %182 = vperm.xlu0 %181, %v71
  %v183 = vpop.permute.xlu0 %182
  %184 = vset.pattern.permute.xlu0 0
  %185 = vperm.xlu0 %184, %v72
  %v186 = vpop.permute.xlu0 %185
  %187 = vset.pattern.permute.xlu0 0
  %188 = vperm.xlu0 %187, %v73
  %v189 = vpop.permute.xlu0 %188
  %190 = vset.pattern.permute.xlu0 0
  %191 = vperm.xlu0 %190, %v74
  %v192 = vpop.permute.xlu0 %191
  %193 = vset.pattern.permute.xlu0 0
  %194 = vperm.xlu0 %193, %v75
  %v195 = vpop.permute.xlu0 %194
  %196 = vset.pattern.permute.xlu0 0
  %197 = vperm.xlu0 %196, %v76
  %v198 = vpop.permute.xlu0 %197
  %199 = vset.pattern.permute.xlu0 0
  %200 = vperm.xlu0 %199, %v77
  %v201 = vpop.permute.xlu0 %200
  %202 = vset.pattern.permute.xlu0 0
  %203 = vperm.xlu0 %202, %v78
  %v204 = vpop.permute.xlu0 %203
  %205 = vset.pattern.permute.xlu0 0
  %206 = vperm.xlu0 %205, %v79
  %v207 = vpop.permute.xlu0 %206
  %208 = vset.pattern.permute.xlu0 0
  %209 = vperm.xlu0 %208, %v80
  %v210 = vpop.permute.xlu0 %209
  %211 = vset.pattern.permute.xlu0 0
  %212 = vperm.xlu0 %211, %v81
  %v213 = vpop.permute.xlu0 %212
  %214 = vset.pattern.permute.xlu0 0
  %215 = vperm.xlu0 %214, %v82
  %v216 = vpop.permute.xlu0 %215
  %217 = vset.pattern.permute.xlu0 0
  %218 = vperm.xlu0 %217, %v83
  %v219 = vpop.permute.xlu0 %218
  %220 = vset.pattern.permute.xlu0 0
  %221 = vperm.xlu0 %220, %v84
  %v222 = vpop.permute.xlu0 %221
  %223 = vset.pattern.permute.xlu0 0
  %224 = vperm.xlu0 %223, %v85
  %v225 = vpop.permute.xlu0 %224
  %226 = vset.pattern.permute.xlu0 0
  %227 = vperm.xlu0 %226, %v86
  %v228 = vpop.permute.xlu0 %227
  %229 = vset.pattern.permute.xlu0 0
  %230 = vperm.xlu0 %229, %v87
  %v231 = vpop.permute.xlu0 %230
  %232 = vset.pattern.permute.xlu0 0
  %233 = vperm.xlu0 %232, %v88
  %v234 = vpop.permute.xlu0 %233
  %235 = vset.pattern.permute.xlu0 0
  %236 = vperm.xlu0 %235, %v89
  %v237 = vpop.permute.xlu0 %236
  %238 = vset.pattern.permute.xlu0 0
  %239 = vperm.xlu0 %238, %v90
  %v240 = vpop.permute.xlu0 %239
  %241 = vset.pattern.permute.xlu0 0
  %242 = vperm.xlu0 %241, %v91
  %v243 = vpop.permute.xlu0 %242
  %244 = vset.pattern.permute.xlu0 0
  %245 = vperm.xlu0 %244, %v92
  %v246 = vpop.permute.xlu0 %245
  %247 = vset.pattern.permute.xlu0 0
  %248 = vperm.xlu0 %247, %v93
  %v249 = vpop.permute.xlu0 %248
  %250 = vset.pattern.permute.xlu0 0
  %251 = vperm.xlu0 %250, %v94
  %v252 = vpop.permute.xlu0 %251
  %253 = vset.pattern.permute.xlu0 0
  %254 = vperm.xlu0 %253, %v95
  %v255 = vpop.permute.xlu0 %254
  %256 = vset.pattern.permute.xlu0 0
  %257 = vperm.xlu0 %256, %v96
  %v258 = vpop.permute.xlu0 %257
  %259 = vset.pattern.permute.xlu0 0
  %260 = vperm.xlu0 %259, %v97
  %v261 = vpop.permute.xlu0 %260
  %262 = vset.pattern.permute.xlu0 0
  %263 = vperm.xlu0 %262, %v98
  %v264 = vpop.permute.xlu0 %263
  %265 = vset.pattern.permute.xlu0 0
  %266 = vperm.xlu0 %265, %v99
  %v267 = vpop.permute.xlu0 %266
  %vm268 = vcmp.eq.s32.totalorder %v180, %v177
  %vm269 = vcmp.eq.s32.totalorder %v183, %v177
  %vm270 = vcmp.eq.s32.totalorder %v186, %v177
  %vm271 = vcmp.eq.s32.totalorder %v189, %v177
  %vm272 = vcmp.eq.s32.totalorder %v192, %v177
  %vm273 = vcmp.eq.s32.totalorder %v195, %v177
  %vm274 = vcmp.eq.s32.totalorder %v198, %v177
  %vm275 = vcmp.eq.s32.totalorder %v201, %v177
  %vm276 = vcmp.eq.s32.totalorder %v204, %v177
  %vm277 = vcmp.eq.s32.totalorder %v207, %v177
  %vm278 = vcmp.eq.s32.totalorder %v210, %v177
  %vm279 = vcmp.eq.s32.totalorder %v213, %v177
  %vm280 = vcmp.eq.s32.totalorder %v216, %v177
  %vm281 = vcmp.eq.s32.totalorder %v219, %v177
  %vm282 = vcmp.eq.s32.totalorder %v222, %v177
  %vm283 = vcmp.eq.s32.totalorder %v225, %v177
  %vm284 = vcmp.eq.s32.totalorder %v228, %v177
  %vm285 = vcmp.eq.s32.totalorder %v231, %v177
  %vm286 = vcmp.eq.s32.totalorder %v234, %v177
  %vm287 = vcmp.eq.s32.totalorder %v237, %v177
  %vm288 = vcmp.eq.s32.totalorder %v240, %v177
  %vm289 = vcmp.eq.s32.totalorder %v243, %v177
  %vm290 = vcmp.eq.s32.totalorder %v246, %v177
  %vm291 = vcmp.eq.s32.totalorder %v249, %v177
  %vm292 = vcmp.eq.s32.totalorder %v252, %v177
  %vm293 = vcmp.eq.s32.totalorder %v255, %v177
  %vm294 = vcmp.eq.s32.totalorder %v258, %v177
  %vm295 = vcmp.eq.s32.totalorder %v261, %v177
  %vm296 = vcmp.eq.s32.totalorder %v264, %v177
  %vm297 = vcmp.eq.s32.totalorder %v267, %v177
  %v298 = vsel %vm268, 1, 0
  %v299 = vsel %vm269, 1, 0
  %v300 = vsel %vm270, 1, 0
  %v301 = vsel %vm271, 1, 0
  %v302 = vsel %vm272, 1, 0
  %v303 = vsel %vm273, 1, 0
  %v304 = vsel %vm274, 1, 0
  %v305 = vsel %vm275, 1, 0
  %v306 = vsel %vm276, 1, 0
  %v307 = vsel %vm277, 1, 0
  %v308 = vsel %vm278, 1, 0
  %v309 = vsel %vm279, 1, 0
  %v310 = vsel %vm280, 1, 0
  %v311 = vsel %vm281, 1, 0
  %v312 = vsel %vm282, 1, 0
  %v313 = vsel %vm283, 1, 0
  %v314 = vsel %vm284, 1, 0
  %v315 = vsel %vm285, 1, 0
  %v316 = vsel %vm286, 1, 0
  %v317 = vsel %vm287, 1, 0
  %v318 = vsel %vm288, 1, 0
  %v319 = vsel %vm289, 1, 0
  %v320 = vsel %vm290, 1, 0
  %v321 = vsel %vm291, 1, 0
  %v322 = vsel %vm292, 1, 0
  %v323 = vsel %vm293, 1, 0
  %v324 = vsel %vm294, 1, 0
  %v325 = vsel %vm295, 1, 0
  %v326 = vsel %vm296, 1, 0
  %v327 = vsel %vm297, 1, 0
  %v328 = vcvt.s32.f32 %v298
  %v329 = vcvt.s32.f32 %v299
  %v330 = vcvt.s32.f32 %v300
  %v331 = vcvt.s32.f32 %v301
  %v332 = vcvt.s32.f32 %v302
  %v333 = vcvt.s32.f32 %v303
  %v334 = vcvt.s32.f32 %v304
  %v335 = vcvt.s32.f32 %v305
  %v336 = vcvt.s32.f32 %v306
  %v337 = vcvt.s32.f32 %v307
  %v338 = vcvt.s32.f32 %v308
  %v339 = vcvt.s32.f32 %v309
  %v340 = vcvt.s32.f32 %v310
  %v341 = vcvt.s32.f32 %v311
  %v342 = vcvt.s32.f32 %v312
  %v343 = vcvt.s32.f32 %v313
  %v344 = vcvt.s32.f32 %v314
  %v345 = vcvt.s32.f32 %v315
  %v346 = vcvt.s32.f32 %v316
  %v347 = vcvt.s32.f32 %v317
  %v348 = vcvt.s32.f32 %v318
  %v349 = vcvt.s32.f32 %v319
  %v350 = vcvt.s32.f32 %v320
  %v351 = vcvt.s32.f32 %v321
  %v352 = vcvt.s32.f32 %v322
  %v353 = vcvt.s32.f32 %v323
  %v354 = vcvt.s32.f32 %v324
  %v355 = vcvt.s32.f32 %v325
  %v356 = vcvt.s32.f32 %v326
  %v357 = vcvt.s32.f32 %v327
  %v358 = vpack.c.bf16 %v329, %v328
  %v359 = vpack.c.bf16 %v331, %v330
  %v360 = vpack.c.bf16 %v333, %v332
  %v361 = vpack.c.bf16 %v335, %v334
  %v362 = vpack.c.bf16 %v337, %v336
  %v363 = vpack.c.bf16 %v339, %v338
  %v364 = vpack.c.bf16 %v341, %v340
  %v365 = vpack.c.bf16 %v343, %v342
  %v366 = vpack.c.bf16 %v345, %v344
  %v367 = vpack.c.bf16 %v347, %v346
  %v368 = vpack.c.bf16 %v349, %v348
  %v369 = vpack.c.bf16 %v351, %v350
  %v370 = vpack.c.bf16 %v353, %v352
  %v371 = vpack.c.bf16 %v355, %v354
  %v372 = vpack.c.bf16 %v357, %v356
  %v373 = vlaneseq
  %v374 = vshrl.u32 %v373, 7
  %v375 = vadd.s32 %v374, 8
  %v376 = vadd.s32 %v374, 16
  %v377 = vadd.s32 %v374, 24
  %v378 = vadd.s32 %v374, 32
  %v379 = vadd.s32 %v374, 40
  %v380 = vadd.s32 %v374, 48
  %v381 = vadd.s32 %v374, 56
  %v382 = vadd.s32 %v374, 64
  %v383 = vadd.s32 %v374, 72
  %v384 = vadd.s32 %v374, 80
  %v385 = vadd.s32 %v374, 88
  %v386 = vadd.s32 %v374, 96
  %v387 = vadd.s32 %v374, 104
  %v388 = vadd.s32 %v374, 112
  %v389 = vadd.s32 %v374, 120
  %v390 = vperm.slane %v69, 0
  %v391 = vperm.slane %v69, 1
  %vm392 = vcmp.eq.s32.totalorder %v374, %v390
  %vm393 = vcmp.eq.s32.totalorder %v374, %v391
  %vm394 = vcmp.eq.s32.totalorder %v375, %v390
  %vm395 = vcmp.eq.s32.totalorder %v375, %v391
  %vm396 = vcmp.eq.s32.totalorder %v376, %v390
  %vm397 = vcmp.eq.s32.totalorder %v376, %v391
  %vm398 = vcmp.eq.s32.totalorder %v377, %v390
  %vm399 = vcmp.eq.s32.totalorder %v377, %v391
  %vm400 = vcmp.eq.s32.totalorder %v378, %v390
  %vm401 = vcmp.eq.s32.totalorder %v378, %v391
  %vm402 = vcmp.eq.s32.totalorder %v379, %v390
  %vm403 = vcmp.eq.s32.totalorder %v379, %v391
  %vm404 = vcmp.eq.s32.totalorder %v380, %v390
  %vm405 = vcmp.eq.s32.totalorder %v380, %v391
  %vm406 = vcmp.eq.s32.totalorder %v381, %v390
  %vm407 = vcmp.eq.s32.totalorder %v381, %v391
  %vm408 = vcmp.eq.s32.totalorder %v382, %v390
  %vm409 = vcmp.eq.s32.totalorder %v382, %v391
  %vm410 = vcmp.eq.s32.totalorder %v383, %v390
  %vm411 = vcmp.eq.s32.totalorder %v383, %v391
  %vm412 = vcmp.eq.s32.totalorder %v384, %v390
  %vm413 = vcmp.eq.s32.totalorder %v384, %v391
  %vm414 = vcmp.eq.s32.totalorder %v385, %v390
  %vm415 = vcmp.eq.s32.totalorder %v385, %v391
  %vm416 = vcmp.eq.s32.totalorder %v386, %v390
  %vm417 = vcmp.eq.s32.totalorder %v386, %v391
  %vm418 = vcmp.eq.s32.totalorder %v387, %v390
  %vm419 = vcmp.eq.s32.totalorder %v387, %v391
  %vm420 = vcmp.eq.s32.totalorder %v388, %v390
  %vm421 = vcmp.eq.s32.totalorder %v388, %v391
  %vm422 = vcmp.eq.s32.totalorder %v389, %v390
  %vm423 = vcmp.eq.s32.totalorder %v389, %v391
  %v424 = vsel %vm392, 1, 0
  %v425 = vsel %vm393, 1, 0
  %v426 = vsel %vm394, 1, 0
  %v427 = vsel %vm395, 1, 0
  %v428 = vsel %vm396, 1, 0
  %v429 = vsel %vm397, 1, 0
  %v430 = vsel %vm398, 1, 0
  %v431 = vsel %vm399, 1, 0
  %v432 = vsel %vm400, 1, 0
  %v433 = vsel %vm401, 1, 0
  %v434 = vsel %vm402, 1, 0
  %v435 = vsel %vm403, 1, 0
  %v436 = vsel %vm404, 1, 0
  %v437 = vsel %vm405, 1, 0
  %v438 = vsel %vm406, 1, 0
  %v439 = vsel %vm407, 1, 0
  %v440 = vsel %vm408, 1, 0
  %v441 = vsel %vm409, 1, 0
  %v442 = vsel %vm410, 1, 0
  %v443 = vsel %vm411, 1, 0
  %v444 = vsel %vm412, 1, 0
  %v445 = vsel %vm413, 1, 0
  %v446 = vsel %vm414, 1, 0
  %v447 = vsel %vm415, 1, 0
  %v448 = vsel %vm416, 1, 0
  %v449 = vsel %vm417, 1, 0
  %v450 = vsel %vm418, 1, 0
  %v451 = vsel %vm419, 1, 0
  %v452 = vsel %vm420, 1, 0
  %v453 = vsel %vm421, 1, 0
  %v454 = vsel %vm422, 1, 0
  %v455 = vsel %vm423, 1, 0
  %v456 = vcvt.s32.f32 %v424
  %v457 = vcvt.s32.f32 %v425
  %v458 = vcvt.s32.f32 %v426
  %v459 = vcvt.s32.f32 %v427
  %v460 = vcvt.s32.f32 %v428
  %v461 = vcvt.s32.f32 %v429
  %v462 = vcvt.s32.f32 %v430
  %v463 = vcvt.s32.f32 %v431
  %v464 = vcvt.s32.f32 %v432
  %v465 = vcvt.s32.f32 %v433
  %v466 = vcvt.s32.f32 %v434
  %v467 = vcvt.s32.f32 %v435
  %v468 = vcvt.s32.f32 %v436
  %v469 = vcvt.s32.f32 %v437
  %v470 = vcvt.s32.f32 %v438
  %v471 = vcvt.s32.f32 %v439
  %v472 = vcvt.s32.f32 %v440
  %v473 = vcvt.s32.f32 %v441
  %v474 = vcvt.s32.f32 %v442
  %v475 = vcvt.s32.f32 %v443
  %v476 = vcvt.s32.f32 %v444
  %v477 = vcvt.s32.f32 %v445
  %v478 = vcvt.s32.f32 %v446
  %v479 = vcvt.s32.f32 %v447
  %v480 = vcvt.s32.f32 %v448
  %v481 = vcvt.s32.f32 %v449
  %v482 = vcvt.s32.f32 %v450
  %v483 = vcvt.s32.f32 %v451
  %v484 = vcvt.s32.f32 %v452
  %v485 = vcvt.s32.f32 %v453
  %v486 = vcvt.s32.f32 %v454
  %v487 = vcvt.s32.f32 %v455
  %v488 = vpack.c.bf16 %v458, %v456
  %v489 = vpack.c.bf16 %v459, %v457
  %v490 = vpack.c.bf16 %v462, %v460
  %v491 = vpack.c.bf16 %v463, %v461
  %v492 = vpack.c.bf16 %v466, %v464
  %v493 = vpack.c.bf16 %v467, %v465
  %v494 = vpack.c.bf16 %v470, %v468
  %v495 = vpack.c.bf16 %v471, %v469
  %v496 = vpack.c.bf16 %v474, %v472
  %v497 = vpack.c.bf16 %v475, %v473
  %v498 = vpack.c.bf16 %v478, %v476
  %v499 = vpack.c.bf16 %v479, %v477
  %v500 = vpack.c.bf16 %v482, %v480
  %v501 = vpack.c.bf16 %v483, %v481
  %v502 = vpack.c.bf16 %v486, %v484
  %v503 = vpack.c.bf16 %v487, %v485
  %v504 = vld [vmem:[%s7] sm:$0x7f]
  %v505 = vld [vmem:[%s5] sm:$0xf]
  %v506 = vld [vmem:[%s5 + $0x4] sm:$0xf]
  %v507 = vld [vmem:[%s5 + $0x8] sm:$0xf]
  %v508 = vld [vmem:[%s5 + $0xc] sm:$0xf]
  %v509 = vld [vmem:[%s5 + $0x10] sm:$0x3]
  %v510 = vpack.c.bf16 %v161, %v160
  %v511 = vpack.c.bf16 %v163, %v162
  %v512 = vpack.c.bf16 %v165, %v164
  %v513 = vpack.c.bf16 %v167, %v166
  %v514 = vpack.c.bf16 %v169, %v168
  %v515 = vpack.c.bf16 %v171, %v170
  %v516 = vpack.c.bf16 %v173, %v172
  %v517 = vpack.c.bf16 %v175, %v174
  %v518 = vperm.slane %v504, 0
  %v524 = vunpack.c.l.b16 %v505
  %v525 = vunpack.c.l.b16 %v506
  %v526 = vunpack.c.l.b16 %v507
  %v527 = vunpack.c.l.b16 %v508
  %v528 = vunpack.c.l.b16 %v509
  %v529 = vpack.c.b16 %v525, %v524
  %v530 = vpack.c.b16 %v527, %v526
  %v531 = vpack.c.b16 %v528, %v528
  %vm534 = vcmask 293888
  %v536 = vsel %vm534, %v510, 0
  %v539 = vsel %vm534, %v511, 0
  %v542 = vsel %vm534, %v512, 0
  %v545 = vsel %vm534, %v513, 0
  %v548 = vsel %vm534, %v514, 0
  %v551 = vsel %vm534, %v515, 0
  %v554 = vsel %vm534, %v516, 0
  %v557 = vsel %vm534, %v517, 0
  %vm559 = vcmask 1041408
  %v561 = vsel %vm559, %v531, 0
  %563 = vmatpush.bf16.msra.mxu0 0
  %564 = vmatpush.bf16.msra.mxu0 0
  %565 = vmatpush.bf16.msra.mxu0 0
  %566 = vmatpush.bf16.msra.mxu0 0
  %567 = vmatpush.bf16.msra.mxu0 0
  %568 = vmatpush.bf16.msra.mxu0 %v561
  %569 = vmatpush.bf16.msra.mxu0 %v530
  %570 = vmatpush.bf16.msra.mxu0 %v529
  %571 = vmatmul.bf16.gmra.mxu0 %v536
  %v572 = vpop.f32.mrf.mxu0
  %v573 = vadd.f32 %v518, %v572
  %v574 = vpop.f32.mrf.mxu0
  %v575 = vadd.f32 %v518, %v574
  %576 = vmatmul.bf16.gmra.mxu0 %v539
  %v577 = vpop.f32.mrf.mxu0
  %v578 = vadd.f32 %v518, %v577
  %v579 = vpop.f32.mrf.mxu0
  %v580 = vadd.f32 %v518, %v579
  %581 = vmatmul.bf16.gmra.mxu0 %v542
  %v582 = vpop.f32.mrf.mxu0
  %v583 = vadd.f32 %v518, %v582
  %v584 = vpop.f32.mrf.mxu0
  %v585 = vadd.f32 %v518, %v584
  %586 = vmatmul.bf16.gmra.mxu0 %v545
  %v587 = vpop.f32.mrf.mxu0
  %v588 = vadd.f32 %v518, %v587
  %v589 = vpop.f32.mrf.mxu0
  %v590 = vadd.f32 %v518, %v589
  %591 = vmatmul.bf16.gmra.mxu0 %v548
  %v592 = vpop.f32.mrf.mxu0
  %v593 = vadd.f32 %v518, %v592
  %v594 = vpop.f32.mrf.mxu0
  %v595 = vadd.f32 %v518, %v594
  %596 = vmatmul.bf16.gmra.mxu0 %v551
  %v597 = vpop.f32.mrf.mxu0
  %v598 = vadd.f32 %v518, %v597
  %v599 = vpop.f32.mrf.mxu0
  %v600 = vadd.f32 %v518, %v599
  %601 = vmatmul.bf16.gmra.mxu0 %v554
  %v602 = vpop.f32.mrf.mxu0
  %v603 = vadd.f32 %v518, %v602
  %v604 = vpop.f32.mrf.mxu0
  %v605 = vadd.f32 %v518, %v604
  %606 = vmatmul.bf16.gmra.mxu0 %v557
  %v607 = vpop.f32.mrf.mxu0
  %v608 = vadd.f32 %v518, %v607
  %v609 = vpop.f32.mrf.mxu0
  %v610 = vadd.f32 %v518, %v609
  %611 = vdwg.mxu0
  %v612 = vsub.f32 0.0, %v573
  %v613 = vsub.f32 0.0, %v575
  %v614 = vsub.f32 0.0, %v578
  %v615 = vsub.f32 0.0, %v580
  %v616 = vsub.f32 0.0, %v583
  %v617 = vsub.f32 0.0, %v585
  %v618 = vsub.f32 0.0, %v588
  %v619 = vsub.f32 0.0, %v590
  %v620 = vsub.f32 0.0, %v593
  %v621 = vsub.f32 0.0, %v595
  %v622 = vsub.f32 0.0, %v598
  %v623 = vsub.f32 0.0, %v600
  %v624 = vsub.f32 0.0, %v603
  %v625 = vsub.f32 0.0, %v605
  %v626 = vsub.f32 0.0, %v608
  %v627 = vsub.f32 0.0, %v610
  %v628 = vmul.f32 %v612, 1.442695
  %v629 = vpow.pop %v628
  %v630 = vmul.f32 %v613, 1.442695
  %v631 = vpow.pop %v630
  %v632 = vmul.f32 %v614, 1.442695
  %v633 = vpow.pop %v632
  %v634 = vmul.f32 %v615, 1.442695
  %v635 = vpow.pop %v634
  %v636 = vmul.f32 %v616, 1.442695
  %v637 = vpow.pop %v636
  %v638 = vmul.f32 %v617, 1.442695
  %v639 = vpow.pop %v638
  %v640 = vmul.f32 %v618, 1.442695
  %v641 = vpow.pop %v640
  %v642 = vmul.f32 %v619, 1.442695
  %v643 = vpow.pop %v642
  %v644 = vmul.f32 %v620, 1.442695
  %v645 = vpow.pop %v644
  %v646 = vmul.f32 %v621, 1.442695
  %v647 = vpow.pop %v646
  %v648 = vmul.f32 %v622, 1.442695
  %v649 = vpow.pop %v648
  %v650 = vmul.f32 %v623, 1.442695
  %v651 = vpow.pop %v650
  %v652 = vmul.f32 %v624, 1.442695
  %v653 = vpow.pop %v652
  %v654 = vmul.f32 %v625, 1.442695
  %v655 = vpow.pop %v654
  %v656 = vmul.f32 %v626, 1.442695
  %v657 = vpow.pop %v656
  %v658 = vmul.f32 %v627, 1.442695
  %v659 = vpow.pop %v658
  %v660 = vadd.f32 %v629, 1.0
  %v661 = vadd.f32 %v631, 1.0
  %v662 = vadd.f32 %v633, 1.0
  %v663 = vadd.f32 %v635, 1.0
  %v664 = vadd.f32 %v637, 1.0
  %v665 = vadd.f32 %v639, 1.0
  %v666 = vadd.f32 %v641, 1.0
  %v667 = vadd.f32 %v643, 1.0
  %v668 = vadd.f32 %v645, 1.0
  %v669 = vadd.f32 %v647, 1.0
  %v670 = vadd.f32 %v649, 1.0
  %v671 = vadd.f32 %v651, 1.0
  %v672 = vadd.f32 %v653, 1.0
  %v673 = vadd.f32 %v655, 1.0
  %v674 = vadd.f32 %v657, 1.0
  %v675 = vadd.f32 %v659, 1.0
  %v676 = vrcp.pop %v660
  %v677 = vrcp.pop %v661
  %v678 = vrcp.pop %v662
  %v679 = vrcp.pop %v663
  %v680 = vrcp.pop %v664
  %v681 = vrcp.pop %v665
  %v682 = vrcp.pop %v666
  %v683 = vrcp.pop %v667
  %v684 = vrcp.pop %v668
  %v685 = vrcp.pop %v669
  %v686 = vrcp.pop %v670
  %v687 = vrcp.pop %v671
  %v688 = vrcp.pop %v672
  %v689 = vrcp.pop %v673
  %v690 = vrcp.pop %v674
  %v691 = vrcp.pop %v675
  %v692 = vmul.f32 %v573, %v676
  %v693 = vmul.f32 %v575, %v677
  %v694 = vmul.f32 %v578, %v678
  %v695 = vmul.f32 %v580, %v679
  %v696 = vmul.f32 %v583, %v680
  %v697 = vmul.f32 %v585, %v681
  %v698 = vmul.f32 %v588, %v682
  %v699 = vmul.f32 %v590, %v683
  %v700 = vmul.f32 %v593, %v684
  %v701 = vmul.f32 %v595, %v685
  %v702 = vmul.f32 %v598, %v686
  %v703 = vmul.f32 %v600, %v687
  %v704 = vmul.f32 %v603, %v688
  %v705 = vmul.f32 %v605, %v689
  %v706 = vmul.f32 %v608, %v690
  %v707 = vmul.f32 %v610, %v691
  %s708 = scalar_lea.vmem %s5, 20
  %v709 = vld [vmem:[%s708] sm:$0xf]
  %v710 = vld [vmem:[%s708 + $0x4] sm:$0xf]
  %v711 = vld [vmem:[%s708 + $0x8] sm:$0xf]
  %v712 = vld [vmem:[%s708 + $0xc] sm:$0xf]
  %v713 = vld [vmem:[%s708 + $0x10] sm:$0x3]
  %v714 = vpack.c.bf16 %v693, %v692
  %v715 = vpack.c.bf16 %v695, %v694
  %v716 = vpack.c.bf16 %v697, %v696
  %v717 = vpack.c.bf16 %v699, %v698
  %v718 = vpack.c.bf16 %v701, %v700
  %v719 = vpack.c.bf16 %v703, %v702
  %v720 = vpack.c.bf16 %v705, %v704
  %v721 = vpack.c.bf16 %v707, %v706
  %v722 = vperm.slane %v504, 1
  %v728 = vunpack.c.l.b16 %v709
  %v729 = vunpack.c.l.b16 %v710
  %v730 = vunpack.c.l.b16 %v711
  %v731 = vunpack.c.l.b16 %v712
  %v732 = vunpack.c.l.b16 %v713
  %v733 = vpack.c.b16 %v729, %v728
  %v734 = vpack.c.b16 %v731, %v730
  %v735 = vpack.c.b16 %v732, %v732
  %v739 = vsel %vm534, %v714, 0
  %v742 = vsel %vm534, %v715, 0
  %v745 = vsel %vm534, %v716, 0
  %v748 = vsel %vm534, %v717, 0
  %v751 = vsel %vm534, %v718, 0
  %v754 = vsel %vm534, %v719, 0
  %v757 = vsel %vm534, %v720, 0
  %v760 = vsel %vm534, %v721, 0
  %v763 = vsel %vm559, %v735, 0
  %765 = vmatpush.bf16.msra.mxu0 0
  %766 = vmatpush.bf16.msra.mxu0 0
  %767 = vmatpush.bf16.msra.mxu0 0
  %768 = vmatpush.bf16.msra.mxu0 0
  %769 = vmatpush.bf16.msra.mxu0 0
  %770 = vmatpush.bf16.msra.mxu0 %v763
  %771 = vmatpush.bf16.msra.mxu0 %v734
  %772 = vmatpush.bf16.msra.mxu0 %v733
  %773 = vmatmul.bf16.gmra.mxu0 %v739
  %v774 = vpop.f32.mrf.mxu0
  %v775 = vadd.f32 %v722, %v774
  %v776 = vpop.f32.mrf.mxu0
  %v777 = vadd.f32 %v722, %v776
  %778 = vmatmul.bf16.gmra.mxu0 %v742
  %v779 = vpop.f32.mrf.mxu0
  %v780 = vadd.f32 %v722, %v779
  %v781 = vpop.f32.mrf.mxu0
  %v782 = vadd.f32 %v722, %v781
  %783 = vmatmul.bf16.gmra.mxu0 %v745
  %v784 = vpop.f32.mrf.mxu0
  %v785 = vadd.f32 %v722, %v784
  %v786 = vpop.f32.mrf.mxu0
  %v787 = vadd.f32 %v722, %v786
  %788 = vmatmul.bf16.gmra.mxu0 %v748
  %v789 = vpop.f32.mrf.mxu0
  %v790 = vadd.f32 %v722, %v789
  %v791 = vpop.f32.mrf.mxu0
  %v792 = vadd.f32 %v722, %v791
  %793 = vmatmul.bf16.gmra.mxu0 %v751
  %v794 = vpop.f32.mrf.mxu0
  %v795 = vadd.f32 %v722, %v794
  %v796 = vpop.f32.mrf.mxu0
  %v797 = vadd.f32 %v722, %v796
  %798 = vmatmul.bf16.gmra.mxu0 %v754
  %v799 = vpop.f32.mrf.mxu0
  %v800 = vadd.f32 %v722, %v799
  %v801 = vpop.f32.mrf.mxu0
  %v802 = vadd.f32 %v722, %v801
  %803 = vmatmul.bf16.gmra.mxu0 %v757
  %v804 = vpop.f32.mrf.mxu0
  %v805 = vadd.f32 %v722, %v804
  %v806 = vpop.f32.mrf.mxu0
  %v807 = vadd.f32 %v722, %v806
  %808 = vmatmul.bf16.gmra.mxu0 %v760
  %v809 = vpop.f32.mrf.mxu0
  %v810 = vadd.f32 %v722, %v809
  %v811 = vpop.f32.mrf.mxu0
  %v812 = vadd.f32 %v722, %v811
  %813 = vdwg.mxu0
  %v814 = vpack.c.bf16 %v777, %v775
  %v815 = vpack.c.bf16 %v782, %v780
  %v816 = vpack.c.bf16 %v787, %v785
  %v817 = vpack.c.bf16 %v792, %v790
  %v818 = vpack.c.bf16 %v797, %v795
  %v819 = vpack.c.bf16 %v802, %v800
  %v820 = vpack.c.bf16 %v807, %v805
  %v821 = vpack.c.bf16 %v812, %v810
  %822 = vmatpush.bf16.msra.mxu0 %v821
  %823 = vmatpush.bf16.msra.mxu0 %v820
  %824 = vmatpush.bf16.msra.mxu0 %v819
  %825 = vmatpush.bf16.msra.mxu0 %v818
  %826 = vmatpush.bf16.msra.mxu0 %v817
  %827 = vmatpush.bf16.msra.mxu0 %v816
  %828 = vmatpush.bf16.msra.mxu0 %v815
  %829 = vmatpush.bf16.msra.mxu0 %v814
  %830 = vmatmul.bf16.gmra.mxu0 %v358
  %v831 = vpop.f32.mrf.mxu0
  %v832 = vadd.f32 0.0, %v831
  %v833 = vpop.f32.mrf.mxu0
  %v834 = vadd.f32 0.0, %v833
  %835 = vmatmul.bf16.gmra.mxu0 %v359
  %v836 = vpop.f32.mrf.mxu0
  %v837 = vadd.f32 0.0, %v836
  %v838 = vpop.f32.mrf.mxu0
  %v839 = vadd.f32 0.0, %v838
  %840 = vmatmul.bf16.gmra.mxu0 %v360
  %v841 = vpop.f32.mrf.mxu0
  %v842 = vadd.f32 0.0, %v841
  %v843 = vpop.f32.mrf.mxu0
  %v844 = vadd.f32 0.0, %v843
  %845 = vmatmul.bf16.gmra.mxu0 %v361
  %v846 = vpop.f32.mrf.mxu0
  %v847 = vadd.f32 0.0, %v846
  %v848 = vpop.f32.mrf.mxu0
  %v849 = vadd.f32 0.0, %v848
  %850 = vmatmul.bf16.gmra.mxu0 %v362
  %v851 = vpop.f32.mrf.mxu0
  %v852 = vadd.f32 0.0, %v851
  %v853 = vpop.f32.mrf.mxu0
  %v854 = vadd.f32 0.0, %v853
  %855 = vmatmul.bf16.gmra.mxu0 %v363
  %v856 = vpop.f32.mrf.mxu0
  %v857 = vadd.f32 0.0, %v856
  %v858 = vpop.f32.mrf.mxu0
  %v859 = vadd.f32 0.0, %v858
  %860 = vmatmul.bf16.gmra.mxu0 %v364
  %v861 = vpop.f32.mrf.mxu0
  %v862 = vadd.f32 0.0, %v861
  %v863 = vpop.f32.mrf.mxu0
  %v864 = vadd.f32 0.0, %v863
  %865 = vmatmul.bf16.gmra.mxu0 %v365
  %v866 = vpop.f32.mrf.mxu0
  %v867 = vadd.f32 0.0, %v866
  %v868 = vpop.f32.mrf.mxu0
  %v869 = vadd.f32 0.0, %v868
  %870 = vmatmul.bf16.gmra.mxu0 %v366
  %v871 = vpop.f32.mrf.mxu0
  %v872 = vadd.f32 0.0, %v871
  %v873 = vpop.f32.mrf.mxu0
  %v874 = vadd.f32 0.0, %v873
  %875 = vmatmul.bf16.gmra.mxu0 %v367
  %v876 = vpop.f32.mrf.mxu0
  %v877 = vadd.f32 0.0, %v876
  %v878 = vpop.f32.mrf.mxu0
  %v879 = vadd.f32 0.0, %v878
  %880 = vmatmul.bf16.gmra.mxu0 %v368
  %v881 = vpop.f32.mrf.mxu0
  %v882 = vadd.f32 0.0, %v881
  %v883 = vpop.f32.mrf.mxu0
  %v884 = vadd.f32 0.0, %v883
  %885 = vmatmul.bf16.gmra.mxu0 %v369
  %v886 = vpop.f32.mrf.mxu0
  %v887 = vadd.f32 0.0, %v886
  %v888 = vpop.f32.mrf.mxu0
  %v889 = vadd.f32 0.0, %v888
  %890 = vmatmul.bf16.gmra.mxu0 %v370
  %v891 = vpop.f32.mrf.mxu0
  %v892 = vadd.f32 0.0, %v891
  %v893 = vpop.f32.mrf.mxu0
  %v894 = vadd.f32 0.0, %v893
  %895 = vmatmul.bf16.gmra.mxu0 %v371
  %v896 = vpop.f32.mrf.mxu0
  %v897 = vadd.f32 0.0, %v896
  %v898 = vpop.f32.mrf.mxu0
  %v899 = vadd.f32 0.0, %v898
  %900 = vmatmul.bf16.gmra.mxu0 %v372
  %v901 = vpop.f32.mrf.mxu0
  %v902 = vadd.f32 0.0, %v901
  %v903 = vpop.f32.mrf.mxu0
  %v904 = vadd.f32 0.0, %v903
  %905 = vdwg.mxu0
  %v906 = vld [vmem:[%s6] sm:$0xf]
  %v907 = vpack.c.bf16 %v101, %v100
  %v908 = vpack.c.bf16 %v103, %v102
  %v909 = vpack.c.bf16 %v105, %v104
  %v910 = vpack.c.bf16 %v107, %v106
  %v911 = vpack.c.bf16 %v109, %v108
  %v912 = vpack.c.bf16 %v111, %v110
  %v913 = vpack.c.bf16 %v113, %v112
  %v914 = vpack.c.bf16 %v115, %v114
  %v915 = vpack.c.bf16 %v117, %v116
  %v916 = vpack.c.bf16 %v119, %v118
  %v917 = vpack.c.bf16 %v121, %v120
  %v918 = vpack.c.bf16 %v123, %v122
  %v919 = vpack.c.bf16 %v125, %v124
  %v920 = vpack.c.bf16 %v127, %v126
  %v921 = vpack.c.bf16 %v129, %v128
  %v922 = vperm.slane %v504, 2
  %vm923 = vcmask 64512
  %v925 = vsel %vm923, %v907, 0
  %v928 = vsel %vm923, %v908, 0
  %v931 = vsel %vm923, %v909, 0
  %v934 = vsel %vm923, %v910, 0
  %v937 = vsel %vm923, %v911, 0
  %v940 = vsel %vm923, %v912, 0
  %v943 = vsel %vm923, %v913, 0
  %v946 = vsel %vm923, %v914, 0
  %v949 = vsel %vm923, %v915, 0
  %v952 = vsel %vm923, %v916, 0
  %v955 = vsel %vm923, %v917, 0
  %v958 = vsel %vm923, %v918, 0
  %v961 = vsel %vm923, %v919, 0
  %v964 = vsel %vm923, %v920, 0
  %v967 = vsel %vm923, %v921, 0
  %vm969 = vcmask 1043456
  %v971 = vsel %vm969, %v906, 0
  %973 = vmatpush.bf16.msra.mxu0 0
  %974 = vmatpush.bf16.msra.mxu0 0
  %975 = vmatpush.bf16.msra.mxu0 0
  %976 = vmatpush.bf16.msra.mxu0 0
  %977 = vmatpush.bf16.msra.mxu0 0
  %978 = vmatpush.bf16.msra.mxu0 0
  %979 = vmatpush.bf16.msra.mxu0 0
  %980 = vmatpush.bf16.msra.mxu0 %v971
  %981 = vmatmul.bf16.gmra.mxu0 %v925
  %v982 = vpop.f32.mrf.mxu0
  %v983 = vadd.f32 %v922, %v982
  %v984 = vpop.f32.mrf.mxu0
  %v985 = vadd.f32 %v922, %v984
  %986 = vmatmul.bf16.gmra.mxu0 %v928
  %v987 = vpop.f32.mrf.mxu0
  %v988 = vadd.f32 %v922, %v987
  %v989 = vpop.f32.mrf.mxu0
  %v990 = vadd.f32 %v922, %v989
  %991 = vmatmul.bf16.gmra.mxu0 %v931
  %v992 = vpop.f32.mrf.mxu0
  %v993 = vadd.f32 %v922, %v992
  %v994 = vpop.f32.mrf.mxu0
  %v995 = vadd.f32 %v922, %v994
  %996 = vmatmul.bf16.gmra.mxu0 %v934
  %v997 = vpop.f32.mrf.mxu0
  %v998 = vadd.f32 %v922, %v997
  %v999 = vpop.f32.mrf.mxu0
  %v1000 = vadd.f32 %v922, %v999
  %1001 = vmatmul.bf16.gmra.mxu0 %v937
  %v1002 = vpop.f32.mrf.mxu0
  %v1003 = vadd.f32 %v922, %v1002
  %v1004 = vpop.f32.mrf.mxu0
  %v1005 = vadd.f32 %v922, %v1004
  %1006 = vmatmul.bf16.gmra.mxu0 %v940
  %v1007 = vpop.f32.mrf.mxu0
  %v1008 = vadd.f32 %v922, %v1007
  %v1009 = vpop.f32.mrf.mxu0
  %v1010 = vadd.f32 %v922, %v1009
  %1011 = vmatmul.bf16.gmra.mxu0 %v943
  %v1012 = vpop.f32.mrf.mxu0
  %v1013 = vadd.f32 %v922, %v1012
  %v1014 = vpop.f32.mrf.mxu0
  %v1015 = vadd.f32 %v922, %v1014
  %1016 = vmatmul.bf16.gmra.mxu0 %v946
  %v1017 = vpop.f32.mrf.mxu0
  %v1018 = vadd.f32 %v922, %v1017
  %v1019 = vpop.f32.mrf.mxu0
  %v1020 = vadd.f32 %v922, %v1019
  %1021 = vmatmul.bf16.gmra.mxu0 %v949
  %v1022 = vpop.f32.mrf.mxu0
  %v1023 = vadd.f32 %v922, %v1022
  %v1024 = vpop.f32.mrf.mxu0
  %v1025 = vadd.f32 %v922, %v1024
  %1026 = vmatmul.bf16.gmra.mxu0 %v952
  %v1027 = vpop.f32.mrf.mxu0
  %v1028 = vadd.f32 %v922, %v1027
  %v1029 = vpop.f32.mrf.mxu0
  %v1030 = vadd.f32 %v922, %v1029
  %1031 = vmatmul.bf16.gmra.mxu0 %v955
  %v1032 = vpop.f32.mrf.mxu0
  %v1033 = vadd.f32 %v922, %v1032
  %v1034 = vpop.f32.mrf.mxu0
  %v1035 = vadd.f32 %v922, %v1034
  %1036 = vmatmul.bf16.gmra.mxu0 %v958
  %v1037 = vpop.f32.mrf.mxu0
  %v1038 = vadd.f32 %v922, %v1037
  %v1039 = vpop.f32.mrf.mxu0
  %v1040 = vadd.f32 %v922, %v1039
  %1041 = vmatmul.bf16.gmra.mxu0 %v961
  %v1042 = vpop.f32.mrf.mxu0
  %v1043 = vadd.f32 %v922, %v1042
  %v1044 = vpop.f32.mrf.mxu0
  %v1045 = vadd.f32 %v922, %v1044
  %1046 = vmatmul.bf16.gmra.mxu0 %v964
  %v1047 = vpop.f32.mrf.mxu0
  %v1048 = vadd.f32 %v922, %v1047
  %v1049 = vpop.f32.mrf.mxu0
  %v1050 = vadd.f32 %v922, %v1049
  %1051 = vmatmul.bf16.gmra.mxu0 %v967
  %v1052 = vpop.f32.mrf.mxu0
  %v1053 = vadd.f32 %v922, %v1052
  %v1054 = vpop.f32.mrf.mxu0
  %v1055 = vadd.f32 %v922, %v1054
  %1056 = vdwg.mxu0
  %1058 = vset.pattern.permute.xlu0 0
  %1059 = vperm.xlu0 %1058, %v130
  %v1060 = vpop.permute.xlu0 %1059
  %1063 = vset.pattern.permute.xlu0 0
  %1064 = vperm.xlu0 %1063, %v131
  %v1065 = vpop.permute.xlu0 %1064
  %1068 = vset.pattern.permute.xlu0 0
  %1069 = vperm.xlu0 %1068, %v132
  %v1070 = vpop.permute.xlu0 %1069
  %1073 = vset.pattern.permute.xlu0 0
  %1074 = vperm.xlu0 %1073, %v133
  %v1075 = vpop.permute.xlu0 %1074
  %1078 = vset.pattern.permute.xlu0 0
  %1079 = vperm.xlu0 %1078, %v134
  %v1080 = vpop.permute.xlu0 %1079
  %1083 = vset.pattern.permute.xlu0 0
  %1084 = vperm.xlu0 %1083, %v135
  %v1085 = vpop.permute.xlu0 %1084
  %1088 = vset.pattern.permute.xlu0 0
  %1089 = vperm.xlu0 %1088, %v136
  %v1090 = vpop.permute.xlu0 %1089
  %1093 = vset.pattern.permute.xlu0 0
  %1094 = vperm.xlu0 %1093, %v137
  %v1095 = vpop.permute.xlu0 %1094
  %1098 = vset.pattern.permute.xlu0 0
  %1099 = vperm.xlu0 %1098, %v138
  %v1100 = vpop.permute.xlu0 %1099
  %1103 = vset.pattern.permute.xlu0 0
  %1104 = vperm.xlu0 %1103, %v139
  %v1105 = vpop.permute.xlu0 %1104
  %1108 = vset.pattern.permute.xlu0 0
  %1109 = vperm.xlu0 %1108, %v140
  %v1110 = vpop.permute.xlu0 %1109
  %1113 = vset.pattern.permute.xlu0 0
  %1114 = vperm.xlu0 %1113, %v141
  %v1115 = vpop.permute.xlu0 %1114
  %1118 = vset.pattern.permute.xlu0 0
  %1119 = vperm.xlu0 %1118, %v142
  %v1120 = vpop.permute.xlu0 %1119
  %1123 = vset.pattern.permute.xlu0 0
  %1124 = vperm.xlu0 %1123, %v143
  %v1125 = vpop.permute.xlu0 %1124
  %1128 = vset.pattern.permute.xlu0 0
  %1129 = vperm.xlu0 %1128, %v144
  %v1130 = vpop.permute.xlu0 %1129
  %1133 = vset.pattern.permute.xlu0 0
  %1134 = vperm.xlu0 %1133, %v145
  %v1135 = vpop.permute.xlu0 %1134
  %1138 = vset.pattern.permute.xlu0 0
  %1139 = vperm.xlu0 %1138, %v146
  %v1140 = vpop.permute.xlu0 %1139
  %1143 = vset.pattern.permute.xlu0 0
  %1144 = vperm.xlu0 %1143, %v147
  %v1145 = vpop.permute.xlu0 %1144
  %1148 = vset.pattern.permute.xlu0 0
  %1149 = vperm.xlu0 %1148, %v148
  %v1150 = vpop.permute.xlu0 %1149
  %1153 = vset.pattern.permute.xlu0 0
  %1154 = vperm.xlu0 %1153, %v149
  %v1155 = vpop.permute.xlu0 %1154
  %1158 = vset.pattern.permute.xlu0 0
  %1159 = vperm.xlu0 %1158, %v150
  %v1160 = vpop.permute.xlu0 %1159
  %1163 = vset.pattern.permute.xlu0 0
  %1164 = vperm.xlu0 %1163, %v151
  %v1165 = vpop.permute.xlu0 %1164
  %1168 = vset.pattern.permute.xlu0 0
  %1169 = vperm.xlu0 %1168, %v152
  %v1170 = vpop.permute.xlu0 %1169
  %1173 = vset.pattern.permute.xlu0 0
  %1174 = vperm.xlu0 %1173, %v153
  %v1175 = vpop.permute.xlu0 %1174
  %1178 = vset.pattern.permute.xlu0 0
  %1179 = vperm.xlu0 %1178, %v154
  %v1180 = vpop.permute.xlu0 %1179
  %1183 = vset.pattern.permute.xlu0 0
  %1184 = vperm.xlu0 %1183, %v155
  %v1185 = vpop.permute.xlu0 %1184
  %1188 = vset.pattern.permute.xlu0 0
  %1189 = vperm.xlu0 %1188, %v156
  %v1190 = vpop.permute.xlu0 %1189
  %1193 = vset.pattern.permute.xlu0 0
  %1194 = vperm.xlu0 %1193, %v157
  %v1195 = vpop.permute.xlu0 %1194
  %1198 = vset.pattern.permute.xlu0 0
  %1199 = vperm.xlu0 %1198, %v158
  %v1200 = vpop.permute.xlu0 %1199
  %1203 = vset.pattern.permute.xlu0 0
  %1204 = vperm.xlu0 %1203, %v159
  %v1205 = vpop.permute.xlu0 %1204
  %v1207 = vmul.f32 %v983, %v1060
  %v1208 = vmul.f32 %v985, %v1065
  %v1209 = vmul.f32 %v988, %v1070
  %v1210 = vmul.f32 %v990, %v1075
  %v1211 = vmul.f32 %v993, %v1080
  %v1212 = vmul.f32 %v995, %v1085
  %v1213 = vmul.f32 %v998, %v1090
  %v1214 = vmul.f32 %v1000, %v1095
  %v1215 = vmul.f32 %v1003, %v1100
  %v1216 = vmul.f32 %v1005, %v1105
  %v1217 = vmul.f32 %v1008, %v1110
  %v1218 = vmul.f32 %v1010, %v1115
  %v1219 = vmul.f32 %v1013, %v1120
  %v1220 = vmul.f32 %v1015, %v1125
  %v1221 = vmul.f32 %v1018, %v1130
  %v1222 = vmul.f32 %v1020, %v1135
  %v1223 = vmul.f32 %v1023, %v1140
  %v1224 = vmul.f32 %v1025, %v1145
  %v1225 = vmul.f32 %v1028, %v1150
  %v1226 = vmul.f32 %v1030, %v1155
  %v1227 = vmul.f32 %v1033, %v1160
  %v1228 = vmul.f32 %v1035, %v1165
  %v1229 = vmul.f32 %v1038, %v1170
  %v1230 = vmul.f32 %v1040, %v1175
  %v1231 = vmul.f32 %v1043, %v1180
  %v1232 = vmul.f32 %v1045, %v1185
  %v1233 = vmul.f32 %v1048, %v1190
  %v1234 = vmul.f32 %v1050, %v1195
  %v1235 = vmul.f32 %v1053, %v1200
  %v1236 = vmul.f32 %v1055, %v1205
  %v1237 = vmul.f32 %v832, %v1207
  %v1238 = vmul.f32 %v834, %v1208
  %v1239 = vmul.f32 %v837, %v1209
  %v1240 = vmul.f32 %v839, %v1210
  %v1241 = vmul.f32 %v842, %v1211
  %v1242 = vmul.f32 %v844, %v1212
  %v1243 = vmul.f32 %v847, %v1213
  %v1244 = vmul.f32 %v849, %v1214
  %v1245 = vmul.f32 %v852, %v1215
  %v1246 = vmul.f32 %v854, %v1216
  %v1247 = vmul.f32 %v857, %v1217
  %v1248 = vmul.f32 %v859, %v1218
  %v1249 = vmul.f32 %v862, %v1219
  %v1250 = vmul.f32 %v864, %v1220
  %v1251 = vmul.f32 %v867, %v1221
  %v1252 = vmul.f32 %v869, %v1222
  %v1253 = vmul.f32 %v872, %v1223
  %v1254 = vmul.f32 %v874, %v1224
  %v1255 = vmul.f32 %v877, %v1225
  %v1256 = vmul.f32 %v879, %v1226
  %v1257 = vmul.f32 %v882, %v1227
  %v1258 = vmul.f32 %v884, %v1228
  %v1259 = vmul.f32 %v887, %v1229
  %v1260 = vmul.f32 %v889, %v1230
  %v1261 = vmul.f32 %v892, %v1231
  %v1262 = vmul.f32 %v894, %v1232
  %v1263 = vmul.f32 %v897, %v1233
  %v1264 = vmul.f32 %v899, %v1234
  %v1265 = vmul.f32 %v902, %v1235
  %v1266 = vmul.f32 %v904, %v1236
  %v1267 = vpack.c.bf16 %v1238, %v1237
  %v1268 = vpack.c.bf16 %v1240, %v1239
  %v1269 = vpack.c.bf16 %v1242, %v1241
  %v1270 = vpack.c.bf16 %v1244, %v1243
  %v1271 = vpack.c.bf16 %v1246, %v1245
  %v1272 = vpack.c.bf16 %v1248, %v1247
  %v1273 = vpack.c.bf16 %v1250, %v1249
  %v1274 = vpack.c.bf16 %v1252, %v1251
  %v1275 = vpack.c.bf16 %v1254, %v1253
  %v1276 = vpack.c.bf16 %v1256, %v1255
  %v1277 = vpack.c.bf16 %v1258, %v1257
  %v1278 = vpack.c.bf16 %v1260, %v1259
  %v1279 = vpack.c.bf16 %v1262, %v1261
  %v1280 = vpack.c.bf16 %v1264, %v1263
  %v1281 = vpack.c.bf16 %v1266, %v1265
  %vm1282 = vcmask 916480
  %v1284 = vsel %vm1282, %v489, 0
  %v1287 = vsel %vm1282, %v491, 0
  %v1290 = vsel %vm1282, %v493, 0
  %v1293 = vsel %vm1282, %v495, 0
  %v1296 = vsel %vm1282, %v497, 0
  %v1299 = vsel %vm1282, %v499, 0
  %v1302 = vsel %vm1282, %v501, 0
  %v1305 = vsel %vm1282, %v503, 0
  %1307 = vmatpush.bf16.msra.mxu0 %v1274
  %1308 = vmatpush.bf16.msra.mxu0 %v1273
  %1309 = vmatpush.bf16.msra.mxu0 %v1272
  %1310 = vmatpush.bf16.msra.mxu0 %v1271
  %1311 = vmatpush.bf16.msra.mxu0 %v1270
  %1312 = vmatpush.bf16.msra.mxu0 %v1269
  %1313 = vmatpush.bf16.msra.mxu0 %v1268
  %1314 = vmatpush.bf16.msra.mxu0 %v1267
  %1315 = vmatmul.bf16.gmra.mxu0 %v488
  %v1316 = vpop.f32.mrf.mxu0
  %v1317 = vadd.f32 0.0, %v1316
  %v1318 = vpop.f32.mrf.mxu0
  %v1319 = vadd.f32 0.0, %v1318
  %1320 = vmatmul.bf16.gmra.mxu0 %v490
  %v1321 = vpop.f32.mrf.mxu0
  %v1322 = vadd.f32 0.0, %v1321
  %v1323 = vpop.f32.mrf.mxu0
  %v1324 = vadd.f32 0.0, %v1323
  %1325 = vmatmul.bf16.gmra.mxu0 %v492
  %v1326 = vpop.f32.mrf.mxu0
  %v1327 = vadd.f32 0.0, %v1326
  %v1328 = vpop.f32.mrf.mxu0
  %v1329 = vadd.f32 0.0, %v1328
  %1330 = vmatmul.bf16.gmra.mxu0 %v494
  %v1331 = vpop.f32.mrf.mxu0
  %v1332 = vadd.f32 0.0, %v1331
  %v1333 = vpop.f32.mrf.mxu0
  %v1334 = vadd.f32 0.0, %v1333
  %1335 = vmatmul.bf16.gmra.mxu0 %v496
  %v1336 = vpop.f32.mrf.mxu0
  %v1337 = vadd.f32 0.0, %v1336
  %v1338 = vpop.f32.mrf.mxu0
  %v1339 = vadd.f32 0.0, %v1338
  %1340 = vmatmul.bf16.gmra.mxu0 %v498
  %v1341 = vpop.f32.mrf.mxu0
  %v1342 = vadd.f32 0.0, %v1341
  %v1343 = vpop.f32.mrf.mxu0
  %v1344 = vadd.f32 0.0, %v1343
  %1345 = vmatmul.bf16.gmra.mxu0 %v500
  %v1346 = vpop.f32.mrf.mxu0
  %v1347 = vadd.f32 0.0, %v1346
  %v1348 = vpop.f32.mrf.mxu0
  %v1349 = vadd.f32 0.0, %v1348
  %1350 = vmatmul.bf16.gmra.mxu0 %v502
  %v1351 = vpop.f32.mrf.mxu0
  %v1352 = vadd.f32 0.0, %v1351
  %v1353 = vpop.f32.mrf.mxu0
  %v1354 = vadd.f32 0.0, %v1353
  %1355 = vdwg.mxu0
  %1356 = vmatpush.bf16.msra.mxu0 0
  %1357 = vmatpush.bf16.msra.mxu0 %v1281
  %1358 = vmatpush.bf16.msra.mxu0 %v1280
  %1359 = vmatpush.bf16.msra.mxu0 %v1279
  %1360 = vmatpush.bf16.msra.mxu0 %v1278
  %1361 = vmatpush.bf16.msra.mxu0 %v1277
  %1362 = vmatpush.bf16.msra.mxu0 %v1276
  %1363 = vmatpush.bf16.msra.mxu0 %v1275
  %1364 = vmatmul.bf16.gmra.mxu0 %v1284
  %v1365 = vpop.f32.mrf.mxu0
  %v1366 = vadd.f32 %v1317, %v1365
  %v1367 = vpop.f32.mrf.mxu0
  %v1368 = vadd.f32 %v1319, %v1367
  %1369 = vmatmul.bf16.gmra.mxu0 %v1287
  %v1370 = vpop.f32.mrf.mxu0
  %v1371 = vadd.f32 %v1322, %v1370
  %v1372 = vpop.f32.mrf.mxu0
  %v1373 = vadd.f32 %v1324, %v1372
  %1374 = vmatmul.bf16.gmra.mxu0 %v1290
  %v1375 = vpop.f32.mrf.mxu0
  %v1376 = vadd.f32 %v1327, %v1375
  %v1377 = vpop.f32.mrf.mxu0
  %v1378 = vadd.f32 %v1329, %v1377
  %1379 = vmatmul.bf16.gmra.mxu0 %v1293
  %v1380 = vpop.f32.mrf.mxu0
  %v1381 = vadd.f32 %v1332, %v1380
  %v1382 = vpop.f32.mrf.mxu0
  %v1383 = vadd.f32 %v1334, %v1382
  %1384 = vmatmul.bf16.gmra.mxu0 %v1296
  %v1385 = vpop.f32.mrf.mxu0
  %v1386 = vadd.f32 %v1337, %v1385
  %v1387 = vpop.f32.mrf.mxu0
  %v1388 = vadd.f32 %v1339, %v1387
  %1389 = vmatmul.bf16.gmra.mxu0 %v1299
  %v1390 = vpop.f32.mrf.mxu0
  %v1391 = vadd.f32 %v1342, %v1390
  %v1392 = vpop.f32.mrf.mxu0
  %v1393 = vadd.f32 %v1344, %v1392
  %1394 = vmatmul.bf16.gmra.mxu0 %v1302
  %v1395 = vpop.f32.mrf.mxu0
  %v1396 = vadd.f32 %v1347, %v1395
  %v1397 = vpop.f32.mrf.mxu0
  %v1398 = vadd.f32 %v1349, %v1397
  %1399 = vmatmul.bf16.gmra.mxu0 %v1305
  %v1400 = vpop.f32.mrf.mxu0
  %v1401 = vadd.f32 %v1352, %v1400
  %v1402 = vpop.f32.mrf.mxu0
  %v1403 = vadd.f32 %v1354, %v1402
  %1404 = vdwg.mxu0
  %v1405 = vsub.f32 0.0, %v1366
  %v1406 = vsub.f32 0.0, %v1368
  %v1407 = vsub.f32 0.0, %v1371
  %v1408 = vsub.f32 0.0, %v1373
  %v1409 = vsub.f32 0.0, %v1376
  %v1410 = vsub.f32 0.0, %v1378
  %v1411 = vsub.f32 0.0, %v1381
  %v1412 = vsub.f32 0.0, %v1383
  %v1413 = vsub.f32 0.0, %v1386
  %v1414 = vsub.f32 0.0, %v1388
  %v1415 = vsub.f32 0.0, %v1391
  %v1416 = vsub.f32 0.0, %v1393
  %v1417 = vsub.f32 0.0, %v1396
  %v1418 = vsub.f32 0.0, %v1398
  %v1419 = vsub.f32 0.0, %v1401
  %v1420 = vsub.f32 0.0, %v1403
  %v1421 = vmul.f32 %v1405, 1.442695
  %v1422 = vpow.pop %v1421
  %v1423 = vmul.f32 %v1406, 1.442695
  %v1424 = vpow.pop %v1423
  %v1425 = vmul.f32 %v1407, 1.442695
  %v1426 = vpow.pop %v1425
  %v1427 = vmul.f32 %v1408, 1.442695
  %v1428 = vpow.pop %v1427
  %v1429 = vmul.f32 %v1409, 1.442695
  %v1430 = vpow.pop %v1429
  %v1431 = vmul.f32 %v1410, 1.442695
  %v1432 = vpow.pop %v1431
  %v1433 = vmul.f32 %v1411, 1.442695
  %v1434 = vpow.pop %v1433
  %v1435 = vmul.f32 %v1412, 1.442695
  %v1436 = vpow.pop %v1435
  %v1437 = vmul.f32 %v1413, 1.442695
  %v1438 = vpow.pop %v1437
  %v1439 = vmul.f32 %v1414, 1.442695
  %v1440 = vpow.pop %v1439
  %v1441 = vmul.f32 %v1415, 1.442695
  %v1442 = vpow.pop %v1441
  %v1443 = vmul.f32 %v1416, 1.442695
  %v1444 = vpow.pop %v1443
  %v1445 = vmul.f32 %v1417, 1.442695
  %v1446 = vpow.pop %v1445
  %v1447 = vmul.f32 %v1418, 1.442695
  %v1448 = vpow.pop %v1447
  %v1449 = vmul.f32 %v1419, 1.442695
  %v1450 = vpow.pop %v1449
  %v1451 = vmul.f32 %v1420, 1.442695
  %v1452 = vpow.pop %v1451
  %v1453 = vadd.f32 %v1422, 1.0
  %v1454 = vadd.f32 %v1424, 1.0
  %v1455 = vadd.f32 %v1426, 1.0
  %v1456 = vadd.f32 %v1428, 1.0
  %v1457 = vadd.f32 %v1430, 1.0
  %v1458 = vadd.f32 %v1432, 1.0
  %v1459 = vadd.f32 %v1434, 1.0
  %v1460 = vadd.f32 %v1436, 1.0
  %v1461 = vadd.f32 %v1438, 1.0
  %v1462 = vadd.f32 %v1440, 1.0
  %v1463 = vadd.f32 %v1442, 1.0
  %v1464 = vadd.f32 %v1444, 1.0
  %v1465 = vadd.f32 %v1446, 1.0
  %v1466 = vadd.f32 %v1448, 1.0
  %v1467 = vadd.f32 %v1450, 1.0
  %v1468 = vadd.f32 %v1452, 1.0
  %v1469 = vrcp.pop %v1453
  %v1470 = vrcp.pop %v1454
  %v1471 = vrcp.pop %v1455
  %v1472 = vrcp.pop %v1456
  %v1473 = vrcp.pop %v1457
  %v1474 = vrcp.pop %v1458
  %v1475 = vrcp.pop %v1459
  %v1476 = vrcp.pop %v1460
  %v1477 = vrcp.pop %v1461
  %v1478 = vrcp.pop %v1462
  %v1479 = vrcp.pop %v1463
  %v1480 = vrcp.pop %v1464
  %v1481 = vrcp.pop %v1465
  %v1482 = vrcp.pop %v1466
  %v1483 = vrcp.pop %v1467
  %v1484 = vrcp.pop %v1468
  %v1485 = vmul.f32 %v1366, %v1469
  %v1486 = vmul.f32 %v1368, %v1470
  %v1487 = vmul.f32 %v1371, %v1471
  %v1488 = vmul.f32 %v1373, %v1472
  %v1489 = vmul.f32 %v1376, %v1473
  %v1490 = vmul.f32 %v1378, %v1474
  %v1491 = vmul.f32 %v1381, %v1475
  %v1492 = vmul.f32 %v1383, %v1476
  %v1493 = vmul.f32 %v1386, %v1477
  %v1494 = vmul.f32 %v1388, %v1478
  %v1495 = vmul.f32 %v1391, %v1479
  %v1496 = vmul.f32 %v1393, %v1480
  %v1497 = vmul.f32 %v1396, %v1481
  %v1498 = vmul.f32 %v1398, %v1482
  %v1499 = vmul.f32 %v1401, %v1483
  %v1500 = vmul.f32 %v1403, %v1484
  %s1501 = scalar_lea.vmem %s5, 40
  %v1502 = vld [vmem:[%s1501] sm:$0xf]
  %v1503 = vld [vmem:[%s1501 + $0x4] sm:$0xf]
  %v1504 = vld [vmem:[%s1501 + $0x8] sm:$0xf]
  %v1505 = vld [vmem:[%s1501 + $0xc] sm:$0xf]
  %v1506 = vld [vmem:[%s1501 + $0x10] sm:$0x3]
  %v1507 = vpack.c.bf16 %v1486, %v1485
  %v1508 = vpack.c.bf16 %v1488, %v1487
  %v1509 = vpack.c.bf16 %v1490, %v1489
  %v1510 = vpack.c.bf16 %v1492, %v1491
  %v1511 = vpack.c.bf16 %v1494, %v1493
  %v1512 = vpack.c.bf16 %v1496, %v1495
  %v1513 = vpack.c.bf16 %v1498, %v1497
  %v1514 = vpack.c.bf16 %v1500, %v1499
  %v1515 = vperm.slane %v504, 3
  %v1521 = vunpack.c.l.b16 %v1502
  %v1522 = vunpack.c.l.b16 %v1503
  %v1523 = vunpack.c.l.b16 %v1504
  %v1524 = vunpack.c.l.b16 %v1505
  %v1525 = vunpack.c.l.b16 %v1506
  %v1526 = vpack.c.b16 %v1522, %v1521
  %v1527 = vpack.c.b16 %v1524, %v1523
  %v1528 = vpack.c.b16 %v1525, %v1525
  %v1532 = vsel %vm534, %v1507, 0
  %v1535 = vsel %vm534, %v1508, 0
  %v1538 = vsel %vm534, %v1509, 0
  %v1541 = vsel %vm534, %v1510, 0
  %v1544 = vsel %vm534, %v1511, 0
  %v1547 = vsel %vm534, %v1512, 0
  %v1550 = vsel %vm534, %v1513, 0
  %v1553 = vsel %vm534, %v1514, 0
  %v1556 = vsel %vm559, %v1528, 0
  %1558 = vmatpush.bf16.msra.mxu0 0
  %1559 = vmatpush.bf16.msra.mxu0 0
  %1560 = vmatpush.bf16.msra.mxu0 0
  %1561 = vmatpush.bf16.msra.mxu0 0
  %1562 = vmatpush.bf16.msra.mxu0 0
  %1563 = vmatpush.bf16.msra.mxu0 %v1556
  %1564 = vmatpush.bf16.msra.mxu0 %v1527
  %1565 = vmatpush.bf16.msra.mxu0 %v1526
  %1566 = vmatmul.bf16.gmra.mxu0 %v1532
  %v1567 = vpop.f32.mrf.mxu0
  %v1568 = vadd.f32 %v1515, %v1567
  %v1569 = vpop.f32.mrf.mxu0
  %v1570 = vadd.f32 %v1515, %v1569
  %1571 = vmatmul.bf16.gmra.mxu0 %v1535
  %v1572 = vpop.f32.mrf.mxu0
  %v1573 = vadd.f32 %v1515, %v1572
  %v1574 = vpop.f32.mrf.mxu0
  %v1575 = vadd.f32 %v1515, %v1574
  %1576 = vmatmul.bf16.gmra.mxu0 %v1538
  %v1577 = vpop.f32.mrf.mxu0
  %v1578 = vadd.f32 %v1515, %v1577
  %v1579 = vpop.f32.mrf.mxu0
  %v1580 = vadd.f32 %v1515, %v1579
  %1581 = vmatmul.bf16.gmra.mxu0 %v1541
  %v1582 = vpop.f32.mrf.mxu0
  %v1583 = vadd.f32 %v1515, %v1582
  %v1584 = vpop.f32.mrf.mxu0
  %v1585 = vadd.f32 %v1515, %v1584
  %1586 = vmatmul.bf16.gmra.mxu0 %v1544
  %v1587 = vpop.f32.mrf.mxu0
  %v1588 = vadd.f32 %v1515, %v1587
  %v1589 = vpop.f32.mrf.mxu0
  %v1590 = vadd.f32 %v1515, %v1589
  %1591 = vmatmul.bf16.gmra.mxu0 %v1547
  %v1592 = vpop.f32.mrf.mxu0
  %v1593 = vadd.f32 %v1515, %v1592
  %v1594 = vpop.f32.mrf.mxu0
  %v1595 = vadd.f32 %v1515, %v1594
  %1596 = vmatmul.bf16.gmra.mxu0 %v1550
  %v1597 = vpop.f32.mrf.mxu0
  %v1598 = vadd.f32 %v1515, %v1597
  %v1599 = vpop.f32.mrf.mxu0
  %v1600 = vadd.f32 %v1515, %v1599
  %1601 = vmatmul.bf16.gmra.mxu0 %v1553
  %v1602 = vpop.f32.mrf.mxu0
  %v1603 = vadd.f32 %v1515, %v1602
  %v1604 = vpop.f32.mrf.mxu0
  %v1605 = vadd.f32 %v1515, %v1604
  %1606 = vdwg.mxu0
  %v1607 = vsub.f32 0.0, %v1568
  %v1608 = vsub.f32 0.0, %v1570
  %v1609 = vsub.f32 0.0, %v1573
  %v1610 = vsub.f32 0.0, %v1575
  %v1611 = vsub.f32 0.0, %v1578
  %v1612 = vsub.f32 0.0, %v1580
  %v1613 = vsub.f32 0.0, %v1583
  %v1614 = vsub.f32 0.0, %v1585
  %v1615 = vsub.f32 0.0, %v1588
  %v1616 = vsub.f32 0.0, %v1590
  %v1617 = vsub.f32 0.0, %v1593
  %v1618 = vsub.f32 0.0, %v1595
  %v1619 = vsub.f32 0.0, %v1598
  %v1620 = vsub.f32 0.0, %v1600
  %v1621 = vsub.f32 0.0, %v1603
  %v1622 = vsub.f32 0.0, %v1605
  %v1623 = vmul.f32 %v1607, 1.442695
  %v1624 = vpow.pop %v1623
  %v1625 = vmul.f32 %v1608, 1.442695
  %v1626 = vpow.pop %v1625
  %v1627 = vmul.f32 %v1609, 1.442695
  %v1628 = vpow.pop %v1627
  %v1629 = vmul.f32 %v1610, 1.442695
  %v1630 = vpow.pop %v1629
  %v1631 = vmul.f32 %v1611, 1.442695
  %v1632 = vpow.pop %v1631
  %v1633 = vmul.f32 %v1612, 1.442695
  %v1634 = vpow.pop %v1633
  %v1635 = vmul.f32 %v1613, 1.442695
  %v1636 = vpow.pop %v1635
  %v1637 = vmul.f32 %v1614, 1.442695
  %v1638 = vpow.pop %v1637
  %v1639 = vmul.f32 %v1615, 1.442695
  %v1640 = vpow.pop %v1639
  %v1641 = vmul.f32 %v1616, 1.442695
  %v1642 = vpow.pop %v1641
  %v1643 = vmul.f32 %v1617, 1.442695
  %v1644 = vpow.pop %v1643
  %v1645 = vmul.f32 %v1618, 1.442695
  %v1646 = vpow.pop %v1645
  %v1647 = vmul.f32 %v1619, 1.442695
  %v1648 = vpow.pop %v1647
  %v1649 = vmul.f32 %v1620, 1.442695
  %v1650 = vpow.pop %v1649
  %v1651 = vmul.f32 %v1621, 1.442695
  %v1652 = vpow.pop %v1651
  %v1653 = vmul.f32 %v1622, 1.442695
  %v1654 = vpow.pop %v1653
  %v1655 = vadd.f32 %v1624, 1.0
  %v1656 = vadd.f32 %v1626, 1.0
  %v1657 = vadd.f32 %v1628, 1.0
  %v1658 = vadd.f32 %v1630, 1.0
  %v1659 = vadd.f32 %v1632, 1.0
  %v1660 = vadd.f32 %v1634, 1.0
  %v1661 = vadd.f32 %v1636, 1.0
  %v1662 = vadd.f32 %v1638, 1.0
  %v1663 = vadd.f32 %v1640, 1.0
  %v1664 = vadd.f32 %v1642, 1.0
  %v1665 = vadd.f32 %v1644, 1.0
  %v1666 = vadd.f32 %v1646, 1.0
  %v1667 = vadd.f32 %v1648, 1.0
  %v1668 = vadd.f32 %v1650, 1.0
  %v1669 = vadd.f32 %v1652, 1.0
  %v1670 = vadd.f32 %v1654, 1.0
  %v1671 = vrcp.pop %v1655
  %v1672 = vrcp.pop %v1656
  %v1673 = vrcp.pop %v1657
  %v1674 = vrcp.pop %v1658
  %v1675 = vrcp.pop %v1659
  %v1676 = vrcp.pop %v1660
  %v1677 = vrcp.pop %v1661
  %v1678 = vrcp.pop %v1662
  %v1679 = vrcp.pop %v1663
  %v1680 = vrcp.pop %v1664
  %v1681 = vrcp.pop %v1665
  %v1682 = vrcp.pop %v1666
  %v1683 = vrcp.pop %v1667
  %v1684 = vrcp.pop %v1668
  %v1685 = vrcp.pop %v1669
  %v1686 = vrcp.pop %v1670
  %v1687 = vmul.f32 %v1568, %v1671
  %v1688 = vmul.f32 %v1570, %v1672
  %v1689 = vmul.f32 %v1573, %v1673
  %v1690 = vmul.f32 %v1575, %v1674
  %v1691 = vmul.f32 %v1578, %v1675
  %v1692 = vmul.f32 %v1580, %v1676
  %v1693 = vmul.f32 %v1583, %v1677
  %v1694 = vmul.f32 %v1585, %v1678
  %v1695 = vmul.f32 %v1588, %v1679
  %v1696 = vmul.f32 %v1590, %v1680
  %v1697 = vmul.f32 %v1593, %v1681
  %v1698 = vmul.f32 %v1595, %v1682
  %v1699 = vmul.f32 %v1598, %v1683
  %v1700 = vmul.f32 %v1600, %v1684
  %v1701 = vmul.f32 %v1603, %v1685
  %v1702 = vmul.f32 %v1605, %v1686
  %s1703 = scalar_lea.vmem %s5, 60
  %v1704 = vld [vmem:[%s1703] sm:$0xf]
  %v1705 = vld [vmem:[%s1703 + $0x4] sm:$0xf]
  %v1706 = vld [vmem:[%s1703 + $0x8] sm:$0xf]
  %v1707 = vld [vmem:[%s1703 + $0xc] sm:$0xf]
  %v1708 = vld [vmem:[%s1703 + $0x10] sm:$0x3]
  %v1709 = vpack.c.bf16 %v1688, %v1687
  %v1710 = vpack.c.bf16 %v1690, %v1689
  %v1711 = vpack.c.bf16 %v1692, %v1691
  %v1712 = vpack.c.bf16 %v1694, %v1693
  %v1713 = vpack.c.bf16 %v1696, %v1695
  %v1714 = vpack.c.bf16 %v1698, %v1697
  %v1715 = vpack.c.bf16 %v1700, %v1699
  %v1716 = vpack.c.bf16 %v1702, %v1701
  %v1717 = vperm.slane %v504, 4
  %v1723 = vunpack.c.l.b16 %v1704
  %v1724 = vunpack.c.l.b16 %v1705
  %v1725 = vunpack.c.l.b16 %v1706
  %v1726 = vunpack.c.l.b16 %v1707
  %v1727 = vunpack.c.l.b16 %v1708
  %v1728 = vpack.c.b16 %v1724, %v1723
  %v1729 = vpack.c.b16 %v1726, %v1725
  %v1730 = vpack.c.b16 %v1727, %v1727
  %v1734 = vsel %vm534, %v1709, 0
  %v1737 = vsel %vm534, %v1710, 0
  %v1740 = vsel %vm534, %v1711, 0
  %v1743 = vsel %vm534, %v1712, 0
  %v1746 = vsel %vm534, %v1713, 0
  %v1749 = vsel %vm534, %v1714, 0
  %v1752 = vsel %vm534, %v1715, 0
  %v1755 = vsel %vm534, %v1716, 0
  %v1758 = vsel %vm559, %v1730, 0
  %1760 = vmatpush.bf16.msra.mxu0 0
  %1761 = vmatpush.bf16.msra.mxu0 0
  %1762 = vmatpush.bf16.msra.mxu0 0
  %1763 = vmatpush.bf16.msra.mxu0 0
  %1764 = vmatpush.bf16.msra.mxu0 0
  %1765 = vmatpush.bf16.msra.mxu0 %v1758
  %1766 = vmatpush.bf16.msra.mxu0 %v1729
  %1767 = vmatpush.bf16.msra.mxu0 %v1728
  %1768 = vmatmul.bf16.gmra.mxu0 %v1734
  %v1769 = vpop.f32.mrf.mxu0
  %v1770 = vadd.f32 %v1717, %v1769
  %v1771 = vpop.f32.mrf.mxu0
  %v1772 = vadd.f32 %v1717, %v1771
  %1773 = vmatmul.bf16.gmra.mxu0 %v1737
  %v1774 = vpop.f32.mrf.mxu0
  %v1775 = vadd.f32 %v1717, %v1774
  %v1776 = vpop.f32.mrf.mxu0
  %v1777 = vadd.f32 %v1717, %v1776
  %1778 = vmatmul.bf16.gmra.mxu0 %v1740
  %v1779 = vpop.f32.mrf.mxu0
  %v1780 = vadd.f32 %v1717, %v1779
  %v1781 = vpop.f32.mrf.mxu0
  %v1782 = vadd.f32 %v1717, %v1781
  %1783 = vmatmul.bf16.gmra.mxu0 %v1743
  %v1784 = vpop.f32.mrf.mxu0
  %v1785 = vadd.f32 %v1717, %v1784
  %v1786 = vpop.f32.mrf.mxu0
  %v1787 = vadd.f32 %v1717, %v1786
  %1788 = vmatmul.bf16.gmra.mxu0 %v1746
  %v1789 = vpop.f32.mrf.mxu0
  %v1790 = vadd.f32 %v1717, %v1789
  %v1791 = vpop.f32.mrf.mxu0
  %v1792 = vadd.f32 %v1717, %v1791
  %1793 = vmatmul.bf16.gmra.mxu0 %v1749
  %v1794 = vpop.f32.mrf.mxu0
  %v1795 = vadd.f32 %v1717, %v1794
  %v1796 = vpop.f32.mrf.mxu0
  %v1797 = vadd.f32 %v1717, %v1796
  %1798 = vmatmul.bf16.gmra.mxu0 %v1752
  %v1799 = vpop.f32.mrf.mxu0
  %v1800 = vadd.f32 %v1717, %v1799
  %v1801 = vpop.f32.mrf.mxu0
  %v1802 = vadd.f32 %v1717, %v1801
  %1803 = vmatmul.bf16.gmra.mxu0 %v1755
  %v1804 = vpop.f32.mrf.mxu0
  %v1805 = vadd.f32 %v1717, %v1804
  %v1806 = vpop.f32.mrf.mxu0
  %v1807 = vadd.f32 %v1717, %v1806
  %1808 = vdwg.mxu0
  %v1809 = vadd.f32 %v160, %v1770
  %v1810 = vadd.f32 %v161, %v1772
  %v1811 = vadd.f32 %v162, %v1775
  %v1812 = vadd.f32 %v163, %v1777
  %v1813 = vadd.f32 %v164, %v1780
  %v1814 = vadd.f32 %v165, %v1782
  %v1815 = vadd.f32 %v166, %v1785
  %v1816 = vadd.f32 %v167, %v1787
  %v1817 = vadd.f32 %v168, %v1790
  %v1818 = vadd.f32 %v169, %v1792
  %v1819 = vadd.f32 %v170, %v1795
  %v1820 = vadd.f32 %v171, %v1797
  %v1821 = vadd.f32 %v172, %v1800
  %v1822 = vadd.f32 %v173, %v1802
  %v1823 = vadd.f32 %v174, %v1805
  %v1824 = vadd.f32 %v175, %v1807
  %s1825 = scalar_lea.vmem %s7, 8
  %v1826 = vld [vmem:[%s1825] sm:$0x7f]
  %s1827 = scalar_lea.vmem %s5, 120
  %v1828 = vld [vmem:[%s1827] sm:$0xf]
  %v1829 = vld [vmem:[%s1827 + $0x4] sm:$0xf]
  %v1830 = vld [vmem:[%s1827 + $0x8] sm:$0xf]
  %v1831 = vld [vmem:[%s1827 + $0xc] sm:$0xf]
  %v1832 = vld [vmem:[%s1827 + $0x10] sm:$0x3]
  %v1833 = vpack.c.bf16 %v1810, %v1809
  %v1834 = vpack.c.bf16 %v1812, %v1811
  %v1835 = vpack.c.bf16 %v1814, %v1813
  %v1836 = vpack.c.bf16 %v1816, %v1815
  %v1837 = vpack.c.bf16 %v1818, %v1817
  %v1838 = vpack.c.bf16 %v1820, %v1819
  %v1839 = vpack.c.bf16 %v1822, %v1821
  %v1840 = vpack.c.bf16 %v1824, %v1823
  %v1841 = vperm.slane %v1826, 0
  %v1847 = vunpack.c.l.b16 %v1828
  %v1848 = vunpack.c.l.b16 %v1829
  %v1849 = vunpack.c.l.b16 %v1830
  %v1850 = vunpack.c.l.b16 %v1831
  %v1851 = vunpack.c.l.b16 %v1832
  %v1852 = vpack.c.b16 %v1848, %v1847
  %v1853 = vpack.c.b16 %v1850, %v1849
  %v1854 = vpack.c.b16 %v1851, %v1851
  %v1858 = vsel %vm534, %v1833, 0
  %v1861 = vsel %vm534, %v1834, 0
  %v1864 = vsel %vm534, %v1835, 0
  %v1867 = vsel %vm534, %v1836, 0
  %v1870 = vsel %vm534, %v1837, 0
  %v1873 = vsel %vm534, %v1838, 0
  %v1876 = vsel %vm534, %v1839, 0
  %v1879 = vsel %vm534, %v1840, 0
  %v1882 = vsel %vm559, %v1854, 0
  %1884 = vmatpush.bf16.msra.mxu0 0
  %1885 = vmatpush.bf16.msra.mxu0 0
  %1886 = vmatpush.bf16.msra.mxu0 0
  %1887 = vmatpush.bf16.msra.mxu0 0
  %1888 = vmatpush.bf16.msra.mxu0 0
  %1889 = vmatpush.bf16.msra.mxu0 %v1882
  %1890 = vmatpush.bf16.msra.mxu0 %v1853
  %1891 = vmatpush.bf16.msra.mxu0 %v1852
  %1892 = vmatmul.bf16.gmra.mxu0 %v1858
  %v1893 = vpop.f32.mrf.mxu0
  %v1894 = vadd.f32 %v1841, %v1893
  %v1895 = vpop.f32.mrf.mxu0
  %v1896 = vadd.f32 %v1841, %v1895
  %1897 = vmatmul.bf16.gmra.mxu0 %v1861
  %v1898 = vpop.f32.mrf.mxu0
  %v1899 = vadd.f32 %v1841, %v1898
  %v1900 = vpop.f32.mrf.mxu0
  %v1901 = vadd.f32 %v1841, %v1900
  %1902 = vmatmul.bf16.gmra.mxu0 %v1864
  %v1903 = vpop.f32.mrf.mxu0
  %v1904 = vadd.f32 %v1841, %v1903
  %v1905 = vpop.f32.mrf.mxu0
  %v1906 = vadd.f32 %v1841, %v1905
  %1907 = vmatmul.bf16.gmra.mxu0 %v1867
  %v1908 = vpop.f32.mrf.mxu0
  %v1909 = vadd.f32 %v1841, %v1908
  %v1910 = vpop.f32.mrf.mxu0
  %v1911 = vadd.f32 %v1841, %v1910
  %1912 = vmatmul.bf16.gmra.mxu0 %v1870
  %v1913 = vpop.f32.mrf.mxu0
  %v1914 = vadd.f32 %v1841, %v1913
  %v1915 = vpop.f32.mrf.mxu0
  %v1916 = vadd.f32 %v1841, %v1915
  %1917 = vmatmul.bf16.gmra.mxu0 %v1873
  %v1918 = vpop.f32.mrf.mxu0
  %v1919 = vadd.f32 %v1841, %v1918
  %v1920 = vpop.f32.mrf.mxu0
  %v1921 = vadd.f32 %v1841, %v1920
  %1922 = vmatmul.bf16.gmra.mxu0 %v1876
  %v1923 = vpop.f32.mrf.mxu0
  %v1924 = vadd.f32 %v1841, %v1923
  %v1925 = vpop.f32.mrf.mxu0
  %v1926 = vadd.f32 %v1841, %v1925
  %1927 = vmatmul.bf16.gmra.mxu0 %v1879
  %v1928 = vpop.f32.mrf.mxu0
  %v1929 = vadd.f32 %v1841, %v1928
  %v1930 = vpop.f32.mrf.mxu0
  %v1931 = vadd.f32 %v1841, %v1930
  %1932 = vdwg.mxu0
  %v1933 = vsub.f32 0.0, %v1894
  %v1934 = vsub.f32 0.0, %v1896
  %v1935 = vsub.f32 0.0, %v1899
  %v1936 = vsub.f32 0.0, %v1901
  %v1937 = vsub.f32 0.0, %v1904
  %v1938 = vsub.f32 0.0, %v1906
  %v1939 = vsub.f32 0.0, %v1909
  %v1940 = vsub.f32 0.0, %v1911
  %v1941 = vsub.f32 0.0, %v1914
  %v1942 = vsub.f32 0.0, %v1916
  %v1943 = vsub.f32 0.0, %v1919
  %v1944 = vsub.f32 0.0, %v1921
  %v1945 = vsub.f32 0.0, %v1924
  %v1946 = vsub.f32 0.0, %v1926
  %v1947 = vsub.f32 0.0, %v1929
  %v1948 = vsub.f32 0.0, %v1931
  %v1949 = vmul.f32 %v1933, 1.442695
  %v1950 = vpow.pop %v1949
  %v1951 = vmul.f32 %v1934, 1.442695
  %v1952 = vpow.pop %v1951
  %v1953 = vmul.f32 %v1935, 1.442695
  %v1954 = vpow.pop %v1953
  %v1955 = vmul.f32 %v1936, 1.442695
  %v1956 = vpow.pop %v1955
  %v1957 = vmul.f32 %v1937, 1.442695
  %v1958 = vpow.pop %v1957
  %v1959 = vmul.f32 %v1938, 1.442695
  %v1960 = vpow.pop %v1959
  %v1961 = vmul.f32 %v1939, 1.442695
  %v1962 = vpow.pop %v1961
  %v1963 = vmul.f32 %v1940, 1.442695
  %v1964 = vpow.pop %v1963
  %v1965 = vmul.f32 %v1941, 1.442695
  %v1966 = vpow.pop %v1965
  %v1967 = vmul.f32 %v1942, 1.442695
  %v1968 = vpow.pop %v1967
  %v1969 = vmul.f32 %v1943, 1.442695
  %v1970 = vpow.pop %v1969
  %v1971 = vmul.f32 %v1944, 1.442695
  %v1972 = vpow.pop %v1971
  %v1973 = vmul.f32 %v1945, 1.442695
  %v1974 = vpow.pop %v1973
  %v1975 = vmul.f32 %v1946, 1.442695
  %v1976 = vpow.pop %v1975
  %v1977 = vmul.f32 %v1947, 1.442695
  %v1978 = vpow.pop %v1977
  %v1979 = vmul.f32 %v1948, 1.442695
  %v1980 = vpow.pop %v1979
  %v1981 = vadd.f32 %v1950, 1.0
  %v1982 = vadd.f32 %v1952, 1.0
  %v1983 = vadd.f32 %v1954, 1.0
  %v1984 = vadd.f32 %v1956, 1.0
  %v1985 = vadd.f32 %v1958, 1.0
  %v1986 = vadd.f32 %v1960, 1.0
  %v1987 = vadd.f32 %v1962, 1.0
  %v1988 = vadd.f32 %v1964, 1.0
  %v1989 = vadd.f32 %v1966, 1.0
  %v1990 = vadd.f32 %v1968, 1.0
  %v1991 = vadd.f32 %v1970, 1.0
  %v1992 = vadd.f32 %v1972, 1.0
  %v1993 = vadd.f32 %v1974, 1.0
  %v1994 = vadd.f32 %v1976, 1.0
  %v1995 = vadd.f32 %v1978, 1.0
  %v1996 = vadd.f32 %v1980, 1.0
  %v1997 = vrcp.pop %v1981
  %v1998 = vrcp.pop %v1982
  %v1999 = vrcp.pop %v1983
  %v2000 = vrcp.pop %v1984
  %v2001 = vrcp.pop %v1985
  %v2002 = vrcp.pop %v1986
  %v2003 = vrcp.pop %v1987
  %v2004 = vrcp.pop %v1988
  %v2005 = vrcp.pop %v1989
  %v2006 = vrcp.pop %v1990
  %v2007 = vrcp.pop %v1991
  %v2008 = vrcp.pop %v1992
  %v2009 = vrcp.pop %v1993
  %v2010 = vrcp.pop %v1994
  %v2011 = vrcp.pop %v1995
  %v2012 = vrcp.pop %v1996
  %v2013 = vmul.f32 %v1894, %v1997
  %v2014 = vmul.f32 %v1896, %v1998
  %v2015 = vmul.f32 %v1899, %v1999
  %v2016 = vmul.f32 %v1901, %v2000
  %v2017 = vmul.f32 %v1904, %v2001
  %v2018 = vmul.f32 %v1906, %v2002
  %v2019 = vmul.f32 %v1909, %v2003
  %v2020 = vmul.f32 %v1911, %v2004
  %v2021 = vmul.f32 %v1914, %v2005
  %v2022 = vmul.f32 %v1916, %v2006
  %v2023 = vmul.f32 %v1919, %v2007
  %v2024 = vmul.f32 %v1921, %v2008
  %v2025 = vmul.f32 %v1924, %v2009
  %v2026 = vmul.f32 %v1926, %v2010
  %v2027 = vmul.f32 %v1929, %v2011
  %v2028 = vmul.f32 %v1931, %v2012
  %s2029 = scalar_lea.vmem %s5, 140
  %v2030 = vld [vmem:[%s2029] sm:$0xf]
  %v2031 = vld [vmem:[%s2029 + $0x4] sm:$0xf]
  %v2032 = vld [vmem:[%s2029 + $0x8] sm:$0xf]
  %v2033 = vld [vmem:[%s2029 + $0xc] sm:$0xf]
  %v2034 = vld [vmem:[%s2029 + $0x10] sm:$0x3]
  %v2035 = vpack.c.bf16 %v2014, %v2013
  %v2036 = vpack.c.bf16 %v2016, %v2015
  %v2037 = vpack.c.bf16 %v2018, %v2017
  %v2038 = vpack.c.bf16 %v2020, %v2019
  %v2039 = vpack.c.bf16 %v2022, %v2021
  %v2040 = vpack.c.bf16 %v2024, %v2023
  %v2041 = vpack.c.bf16 %v2026, %v2025
  %v2042 = vpack.c.bf16 %v2028, %v2027
  %v2043 = vperm.slane %v1826, 1
  %v2049 = vunpack.c.l.b16 %v2030
  %v2050 = vunpack.c.l.b16 %v2031
  %v2051 = vunpack.c.l.b16 %v2032
  %v2052 = vunpack.c.l.b16 %v2033
  %v2053 = vunpack.c.l.b16 %v2034
  %v2054 = vpack.c.b16 %v2050, %v2049
  %v2055 = vpack.c.b16 %v2052, %v2051
  %v2056 = vpack.c.b16 %v2053, %v2053
  %v2060 = vsel %vm534, %v2035, 0
  %v2063 = vsel %vm534, %v2036, 0
  %v2066 = vsel %vm534, %v2037, 0
  %v2069 = vsel %vm534, %v2038, 0
  %v2072 = vsel %vm534, %v2039, 0
  %v2075 = vsel %vm534, %v2040, 0
  %v2078 = vsel %vm534, %v2041, 0
  %v2081 = vsel %vm534, %v2042, 0
  %v2084 = vsel %vm559, %v2056, 0
  %2086 = vmatpush.bf16.msra.mxu0 0
  %2087 = vmatpush.bf16.msra.mxu0 0
  %2088 = vmatpush.bf16.msra.mxu0 0
  %2089 = vmatpush.bf16.msra.mxu0 0
  %2090 = vmatpush.bf16.msra.mxu0 0
  %2091 = vmatpush.bf16.msra.mxu0 %v2084
  %2092 = vmatpush.bf16.msra.mxu0 %v2055
  %2093 = vmatpush.bf16.msra.mxu0 %v2054
  %2094 = vmatmul.bf16.gmra.mxu0 %v2060
  %v2095 = vpop.f32.mrf.mxu0
  %v2096 = vadd.f32 %v2043, %v2095
  %v2097 = vpop.f32.mrf.mxu0
  %v2098 = vadd.f32 %v2043, %v2097
  %2099 = vmatmul.bf16.gmra.mxu0 %v2063
  %v2100 = vpop.f32.mrf.mxu0
  %v2101 = vadd.f32 %v2043, %v2100
  %v2102 = vpop.f32.mrf.mxu0
  %v2103 = vadd.f32 %v2043, %v2102
  %2104 = vmatmul.bf16.gmra.mxu0 %v2066
  %v2105 = vpop.f32.mrf.mxu0
  %v2106 = vadd.f32 %v2043, %v2105
  %v2107 = vpop.f32.mrf.mxu0
  %v2108 = vadd.f32 %v2043, %v2107
  %2109 = vmatmul.bf16.gmra.mxu0 %v2069
  %v2110 = vpop.f32.mrf.mxu0
  %v2111 = vadd.f32 %v2043, %v2110
  %v2112 = vpop.f32.mrf.mxu0
  %v2113 = vadd.f32 %v2043, %v2112
  %2114 = vmatmul.bf16.gmra.mxu0 %v2072
  %v2115 = vpop.f32.mrf.mxu0
  %v2116 = vadd.f32 %v2043, %v2115
  %v2117 = vpop.f32.mrf.mxu0
  %v2118 = vadd.f32 %v2043, %v2117
  %2119 = vmatmul.bf16.gmra.mxu0 %v2075
  %v2120 = vpop.f32.mrf.mxu0
  %v2121 = vadd.f32 %v2043, %v2120
  %v2122 = vpop.f32.mrf.mxu0
  %v2123 = vadd.f32 %v2043, %v2122
  %2124 = vmatmul.bf16.gmra.mxu0 %v2078
  %v2125 = vpop.f32.mrf.mxu0
  %v2126 = vadd.f32 %v2043, %v2125
  %v2127 = vpop.f32.mrf.mxu0
  %v2128 = vadd.f32 %v2043, %v2127
  %2129 = vmatmul.bf16.gmra.mxu0 %v2081
  %v2130 = vpop.f32.mrf.mxu0
  %v2131 = vadd.f32 %v2043, %v2130
  %v2132 = vpop.f32.mrf.mxu0
  %v2133 = vadd.f32 %v2043, %v2132
  %2134 = vdwg.mxu0
  %v2135 = vpack.c.bf16 %v2098, %v2096
  %v2136 = vpack.c.bf16 %v2103, %v2101
  %v2137 = vpack.c.bf16 %v2108, %v2106
  %v2138 = vpack.c.bf16 %v2113, %v2111
  %v2139 = vpack.c.bf16 %v2118, %v2116
  %v2140 = vpack.c.bf16 %v2123, %v2121
  %v2141 = vpack.c.bf16 %v2128, %v2126
  %v2142 = vpack.c.bf16 %v2133, %v2131
  %2143 = vmatpush.bf16.msra.mxu0 %v2142
  %2144 = vmatpush.bf16.msra.mxu0 %v2141
  %2145 = vmatpush.bf16.msra.mxu0 %v2140
  %2146 = vmatpush.bf16.msra.mxu0 %v2139
  %2147 = vmatpush.bf16.msra.mxu0 %v2138
  %2148 = vmatpush.bf16.msra.mxu0 %v2137
  %2149 = vmatpush.bf16.msra.mxu0 %v2136
  %2150 = vmatpush.bf16.msra.mxu0 %v2135
  %2151 = vmatmul.bf16.gmra.mxu0 %v358
  %v2152 = vpop.f32.mrf.mxu0
  %v2153 = vadd.f32 0.0, %v2152
  %v2154 = vpop.f32.mrf.mxu0
  %v2155 = vadd.f32 0.0, %v2154
  %2156 = vmatmul.bf16.gmra.mxu0 %v359
  %v2157 = vpop.f32.mrf.mxu0
  %v2158 = vadd.f32 0.0, %v2157
  %v2159 = vpop.f32.mrf.mxu0
  %v2160 = vadd.f32 0.0, %v2159
  %2161 = vmatmul.bf16.gmra.mxu0 %v360
  %v2162 = vpop.f32.mrf.mxu0
  %v2163 = vadd.f32 0.0, %v2162
  %v2164 = vpop.f32.mrf.mxu0
  %v2165 = vadd.f32 0.0, %v2164
  %2166 = vmatmul.bf16.gmra.mxu0 %v361
  %v2167 = vpop.f32.mrf.mxu0
  %v2168 = vadd.f32 0.0, %v2167
  %v2169 = vpop.f32.mrf.mxu0
  %v2170 = vadd.f32 0.0, %v2169
  %2171 = vmatmul.bf16.gmra.mxu0 %v362
  %v2172 = vpop.f32.mrf.mxu0
  %v2173 = vadd.f32 0.0, %v2172
  %v2174 = vpop.f32.mrf.mxu0
  %v2175 = vadd.f32 0.0, %v2174
  %2176 = vmatmul.bf16.gmra.mxu0 %v363
  %v2177 = vpop.f32.mrf.mxu0
  %v2178 = vadd.f32 0.0, %v2177
  %v2179 = vpop.f32.mrf.mxu0
  %v2180 = vadd.f32 0.0, %v2179
  %2181 = vmatmul.bf16.gmra.mxu0 %v364
  %v2182 = vpop.f32.mrf.mxu0
  %v2183 = vadd.f32 0.0, %v2182
  %v2184 = vpop.f32.mrf.mxu0
  %v2185 = vadd.f32 0.0, %v2184
  %2186 = vmatmul.bf16.gmra.mxu0 %v365
  %v2187 = vpop.f32.mrf.mxu0
  %v2188 = vadd.f32 0.0, %v2187
  %v2189 = vpop.f32.mrf.mxu0
  %v2190 = vadd.f32 0.0, %v2189
  %2191 = vmatmul.bf16.gmra.mxu0 %v366
  %v2192 = vpop.f32.mrf.mxu0
  %v2193 = vadd.f32 0.0, %v2192
  %v2194 = vpop.f32.mrf.mxu0
  %v2195 = vadd.f32 0.0, %v2194
  %2196 = vmatmul.bf16.gmra.mxu0 %v367
  %v2197 = vpop.f32.mrf.mxu0
  %v2198 = vadd.f32 0.0, %v2197
  %v2199 = vpop.f32.mrf.mxu0
  %v2200 = vadd.f32 0.0, %v2199
  %2201 = vmatmul.bf16.gmra.mxu0 %v368
  %v2202 = vpop.f32.mrf.mxu0
  %v2203 = vadd.f32 0.0, %v2202
  %v2204 = vpop.f32.mrf.mxu0
  %v2205 = vadd.f32 0.0, %v2204
  %2206 = vmatmul.bf16.gmra.mxu0 %v369
  %v2207 = vpop.f32.mrf.mxu0
  %v2208 = vadd.f32 0.0, %v2207
  %v2209 = vpop.f32.mrf.mxu0
  %v2210 = vadd.f32 0.0, %v2209
  %2211 = vmatmul.bf16.gmra.mxu0 %v370
  %v2212 = vpop.f32.mrf.mxu0
  %v2213 = vadd.f32 0.0, %v2212
  %v2214 = vpop.f32.mrf.mxu0
  %v2215 = vadd.f32 0.0, %v2214
  %2216 = vmatmul.bf16.gmra.mxu0 %v371
  %v2217 = vpop.f32.mrf.mxu0
  %v2218 = vadd.f32 0.0, %v2217
  %v2219 = vpop.f32.mrf.mxu0
  %v2220 = vadd.f32 0.0, %v2219
  %2221 = vmatmul.bf16.gmra.mxu0 %v372
  %v2222 = vpop.f32.mrf.mxu0
  %v2223 = vadd.f32 0.0, %v2222
  %v2224 = vpop.f32.mrf.mxu0
  %v2225 = vadd.f32 0.0, %v2224
  %2226 = vdwg.mxu0
  %s2227 = scalar_lea.vmem %s6, 4
  %v2228 = vld [vmem:[%s2227] sm:$0xf]
  %v2229 = vperm.slane %v1826, 2
  %v2231 = vsel %vm969, %v2228, 0
  %2233 = vmatpush.bf16.msra.mxu0 0
  %2234 = vmatpush.bf16.msra.mxu0 0
  %2235 = vmatpush.bf16.msra.mxu0 0
  %2236 = vmatpush.bf16.msra.mxu0 0
  %2237 = vmatpush.bf16.msra.mxu0 0
  %2238 = vmatpush.bf16.msra.mxu0 0
  %2239 = vmatpush.bf16.msra.mxu0 0
  %2240 = vmatpush.bf16.msra.mxu0 %v2231
  %2241 = vmatmul.bf16.gmra.mxu0 %v925
  %v2242 = vpop.f32.mrf.mxu0
  %v2243 = vadd.f32 %v2229, %v2242
  %v2244 = vpop.f32.mrf.mxu0
  %v2245 = vadd.f32 %v2229, %v2244
  %2246 = vmatmul.bf16.gmra.mxu0 %v928
  %v2247 = vpop.f32.mrf.mxu0
  %v2248 = vadd.f32 %v2229, %v2247
  %v2249 = vpop.f32.mrf.mxu0
  %v2250 = vadd.f32 %v2229, %v2249
  %2251 = vmatmul.bf16.gmra.mxu0 %v931
  %v2252 = vpop.f32.mrf.mxu0
  %v2253 = vadd.f32 %v2229, %v2252
  %v2254 = vpop.f32.mrf.mxu0
  %v2255 = vadd.f32 %v2229, %v2254
  %2256 = vmatmul.bf16.gmra.mxu0 %v934
  %v2257 = vpop.f32.mrf.mxu0
  %v2258 = vadd.f32 %v2229, %v2257
  %v2259 = vpop.f32.mrf.mxu0
  %v2260 = vadd.f32 %v2229, %v2259
  %2261 = vmatmul.bf16.gmra.mxu0 %v937
  %v2262 = vpop.f32.mrf.mxu0
  %v2263 = vadd.f32 %v2229, %v2262
  %v2264 = vpop.f32.mrf.mxu0
  %v2265 = vadd.f32 %v2229, %v2264
  %2266 = vmatmul.bf16.gmra.mxu0 %v940
  %v2267 = vpop.f32.mrf.mxu0
  %v2268 = vadd.f32 %v2229, %v2267
  %v2269 = vpop.f32.mrf.mxu0
  %v2270 = vadd.f32 %v2229, %v2269
  %2271 = vmatmul.bf16.gmra.mxu0 %v943
  %v2272 = vpop.f32.mrf.mxu0
  %v2273 = vadd.f32 %v2229, %v2272
  %v2274 = vpop.f32.mrf.mxu0
  %v2275 = vadd.f32 %v2229, %v2274
  %2276 = vmatmul.bf16.gmra.mxu0 %v946
  %v2277 = vpop.f32.mrf.mxu0
  %v2278 = vadd.f32 %v2229, %v2277
  %v2279 = vpop.f32.mrf.mxu0
  %v2280 = vadd.f32 %v2229, %v2279
  %2281 = vmatmul.bf16.gmra.mxu0 %v949
  %v2282 = vpop.f32.mrf.mxu0
  %v2283 = vadd.f32 %v2229, %v2282
  %v2284 = vpop.f32.mrf.mxu0
  %v2285 = vadd.f32 %v2229, %v2284
  %2286 = vmatmul.bf16.gmra.mxu0 %v952
  %v2287 = vpop.f32.mrf.mxu0
  %v2288 = vadd.f32 %v2229, %v2287
  %v2289 = vpop.f32.mrf.mxu0
  %v2290 = vadd.f32 %v2229, %v2289
  %2291 = vmatmul.bf16.gmra.mxu0 %v955
  %v2292 = vpop.f32.mrf.mxu0
  %v2293 = vadd.f32 %v2229, %v2292
  %v2294 = vpop.f32.mrf.mxu0
  %v2295 = vadd.f32 %v2229, %v2294
  %2296 = vmatmul.bf16.gmra.mxu0 %v958
  %v2297 = vpop.f32.mrf.mxu0
  %v2298 = vadd.f32 %v2229, %v2297
  %v2299 = vpop.f32.mrf.mxu0
  %v2300 = vadd.f32 %v2229, %v2299
  %2301 = vmatmul.bf16.gmra.mxu0 %v961
  %v2302 = vpop.f32.mrf.mxu0
  %v2303 = vadd.f32 %v2229, %v2302
  %v2304 = vpop.f32.mrf.mxu0
  %v2305 = vadd.f32 %v2229, %v2304
  %2306 = vmatmul.bf16.gmra.mxu0 %v964
  %v2307 = vpop.f32.mrf.mxu0
  %v2308 = vadd.f32 %v2229, %v2307
  %v2309 = vpop.f32.mrf.mxu0
  %v2310 = vadd.f32 %v2229, %v2309
  %2311 = vmatmul.bf16.gmra.mxu0 %v967
  %v2312 = vpop.f32.mrf.mxu0
  %v2313 = vadd.f32 %v2229, %v2312
  %v2314 = vpop.f32.mrf.mxu0
  %v2315 = vadd.f32 %v2229, %v2314
  %2316 = vdwg.mxu0
  %v2317 = vmul.f32 %v2243, %v1060
  %v2318 = vmul.f32 %v2245, %v1065
  %v2319 = vmul.f32 %v2248, %v1070
  %v2320 = vmul.f32 %v2250, %v1075
  %v2321 = vmul.f32 %v2253, %v1080
  %v2322 = vmul.f32 %v2255, %v1085
  %v2323 = vmul.f32 %v2258, %v1090
  %v2324 = vmul.f32 %v2260, %v1095
  %v2325 = vmul.f32 %v2263, %v1100
  %v2326 = vmul.f32 %v2265, %v1105
  %v2327 = vmul.f32 %v2268, %v1110
  %v2328 = vmul.f32 %v2270, %v1115
  %v2329 = vmul.f32 %v2273, %v1120
  %v2330 = vmul.f32 %v2275, %v1125
  %v2331 = vmul.f32 %v2278, %v1130
  %v2332 = vmul.f32 %v2280, %v1135
  %v2333 = vmul.f32 %v2283, %v1140
  %v2334 = vmul.f32 %v2285, %v1145
  %v2335 = vmul.f32 %v2288, %v1150
  %v2336 = vmul.f32 %v2290, %v1155
  %v2337 = vmul.f32 %v2293, %v1160
  %v2338 = vmul.f32 %v2295, %v1165
  %v2339 = vmul.f32 %v2298, %v1170
  %v2340 = vmul.f32 %v2300, %v1175
  %v2341 = vmul.f32 %v2303, %v1180
  %v2342 = vmul.f32 %v2305, %v1185
  %v2343 = vmul.f32 %v2308, %v1190
  %v2344 = vmul.f32 %v2310, %v1195
  %v2345 = vmul.f32 %v2313, %v1200
  %v2346 = vmul.f32 %v2315, %v1205
  %v2347 = vmul.f32 %v2153, %v2317
  %v2348 = vmul.f32 %v2155, %v2318
  %v2349 = vmul.f32 %v2158, %v2319
  %v2350 = vmul.f32 %v2160, %v2320
  %v2351 = vmul.f32 %v2163, %v2321
  %v2352 = vmul.f32 %v2165, %v2322
  %v2353 = vmul.f32 %v2168, %v2323
  %v2354 = vmul.f32 %v2170, %v2324
  %v2355 = vmul.f32 %v2173, %v2325
  %v2356 = vmul.f32 %v2175, %v2326
  %v2357 = vmul.f32 %v2178, %v2327
  %v2358 = vmul.f32 %v2180, %v2328
  %v2359 = vmul.f32 %v2183, %v2329
  %v2360 = vmul.f32 %v2185, %v2330
  %v2361 = vmul.f32 %v2188, %v2331
  %v2362 = vmul.f32 %v2190, %v2332
  %v2363 = vmul.f32 %v2193, %v2333
  %v2364 = vmul.f32 %v2195, %v2334
  %v2365 = vmul.f32 %v2198, %v2335
  %v2366 = vmul.f32 %v2200, %v2336
  %v2367 = vmul.f32 %v2203, %v2337
  %v2368 = vmul.f32 %v2205, %v2338
  %v2369 = vmul.f32 %v2208, %v2339
  %v2370 = vmul.f32 %v2210, %v2340
  %v2371 = vmul.f32 %v2213, %v2341
  %v2372 = vmul.f32 %v2215, %v2342
  %v2373 = vmul.f32 %v2218, %v2343
  %v2374 = vmul.f32 %v2220, %v2344
  %v2375 = vmul.f32 %v2223, %v2345
  %v2376 = vmul.f32 %v2225, %v2346
  %v2377 = vpack.c.bf16 %v2348, %v2347
  %v2378 = vpack.c.bf16 %v2350, %v2349
  %v2379 = vpack.c.bf16 %v2352, %v2351
  %v2380 = vpack.c.bf16 %v2354, %v2353
  %v2381 = vpack.c.bf16 %v2356, %v2355
  %v2382 = vpack.c.bf16 %v2358, %v2357
  %v2383 = vpack.c.bf16 %v2360, %v2359
  %v2384 = vpack.c.bf16 %v2362, %v2361
  %v2385 = vpack.c.bf16 %v2364, %v2363
  %v2386 = vpack.c.bf16 %v2366, %v2365
  %v2387 = vpack.c.bf16 %v2368, %v2367
  %v2388 = vpack.c.bf16 %v2370, %v2369
  %v2389 = vpack.c.bf16 %v2372, %v2371
  %v2390 = vpack.c.bf16 %v2374, %v2373
  %v2391 = vpack.c.bf16 %v2376, %v2375
  %2392 = vmatpush.bf16.msra.mxu0 %v2384
  %2393 = vmatpush.bf16.msra.mxu0 %v2383
  %2394 = vmatpush.bf16.msra.mxu0 %v2382
  %2395 = vmatpush.bf16.msra.mxu0 %v2381
  %2396 = vmatpush.bf16.msra.mxu0 %v2380
  %2397 = vmatpush.bf16.msra.mxu0 %v2379
  %2398 = vmatpush.bf16.msra.mxu0 %v2378
  %2399 = vmatpush.bf16.msra.mxu0 %v2377
  %2400 = vmatmul.bf16.gmra.mxu0 %v488
  %v2401 = vpop.f32.mrf.mxu0
  %v2402 = vadd.f32 0.0, %v2401
  %v2403 = vpop.f32.mrf.mxu0
  %v2404 = vadd.f32 0.0, %v2403
  %2405 = vmatmul.bf16.gmra.mxu0 %v490
  %v2406 = vpop.f32.mrf.mxu0
  %v2407 = vadd.f32 0.0, %v2406
  %v2408 = vpop.f32.mrf.mxu0
  %v2409 = vadd.f32 0.0, %v2408
  %2410 = vmatmul.bf16.gmra.mxu0 %v492
  %v2411 = vpop.f32.mrf.mxu0
  %v2412 = vadd.f32 0.0, %v2411
  %v2413 = vpop.f32.mrf.mxu0
  %v2414 = vadd.f32 0.0, %v2413
  %2415 = vmatmul.bf16.gmra.mxu0 %v494
  %v2416 = vpop.f32.mrf.mxu0
  %v2417 = vadd.f32 0.0, %v2416
  %v2418 = vpop.f32.mrf.mxu0
  %v2419 = vadd.f32 0.0, %v2418
  %2420 = vmatmul.bf16.gmra.mxu0 %v496
  %v2421 = vpop.f32.mrf.mxu0
  %v2422 = vadd.f32 0.0, %v2421
  %v2423 = vpop.f32.mrf.mxu0
  %v2424 = vadd.f32 0.0, %v2423
  %2425 = vmatmul.bf16.gmra.mxu0 %v498
  %v2426 = vpop.f32.mrf.mxu0
  %v2427 = vadd.f32 0.0, %v2426
  %v2428 = vpop.f32.mrf.mxu0
  %v2429 = vadd.f32 0.0, %v2428
  %2430 = vmatmul.bf16.gmra.mxu0 %v500
  %v2431 = vpop.f32.mrf.mxu0
  %v2432 = vadd.f32 0.0, %v2431
  %v2433 = vpop.f32.mrf.mxu0
  %v2434 = vadd.f32 0.0, %v2433
  %2435 = vmatmul.bf16.gmra.mxu0 %v502
  %v2436 = vpop.f32.mrf.mxu0
  %v2437 = vadd.f32 0.0, %v2436
  %v2438 = vpop.f32.mrf.mxu0
  %v2439 = vadd.f32 0.0, %v2438
  %2440 = vdwg.mxu0
  %2441 = vmatpush.bf16.msra.mxu0 0
  %2442 = vmatpush.bf16.msra.mxu0 %v2391
  %2443 = vmatpush.bf16.msra.mxu0 %v2390
  %2444 = vmatpush.bf16.msra.mxu0 %v2389
  %2445 = vmatpush.bf16.msra.mxu0 %v2388
  %2446 = vmatpush.bf16.msra.mxu0 %v2387
  %2447 = vmatpush.bf16.msra.mxu0 %v2386
  %2448 = vmatpush.bf16.msra.mxu0 %v2385
  %2449 = vmatmul.bf16.gmra.mxu0 %v1284
  %v2450 = vpop.f32.mrf.mxu0
  %v2451 = vadd.f32 %v2402, %v2450
  %v2452 = vpop.f32.mrf.mxu0
  %v2453 = vadd.f32 %v2404, %v2452
  %2454 = vmatmul.bf16.gmra.mxu0 %v1287
  %v2455 = vpop.f32.mrf.mxu0
  %v2456 = vadd.f32 %v2407, %v2455
  %v2457 = vpop.f32.mrf.mxu0
  %v2458 = vadd.f32 %v2409, %v2457
  %2459 = vmatmul.bf16.gmra.mxu0 %v1290
  %v2460 = vpop.f32.mrf.mxu0
  %v2461 = vadd.f32 %v2412, %v2460
  %v2462 = vpop.f32.mrf.mxu0
  %v2463 = vadd.f32 %v2414, %v2462
  %2464 = vmatmul.bf16.gmra.mxu0 %v1293
  %v2465 = vpop.f32.mrf.mxu0
  %v2466 = vadd.f32 %v2417, %v2465
  %v2467 = vpop.f32.mrf.mxu0
  %v2468 = vadd.f32 %v2419, %v2467
  %2469 = vmatmul.bf16.gmra.mxu0 %v1296
  %v2470 = vpop.f32.mrf.mxu0
  %v2471 = vadd.f32 %v2422, %v2470
  %v2472 = vpop.f32.mrf.mxu0
  %v2473 = vadd.f32 %v2424, %v2472
  %2474 = vmatmul.bf16.gmra.mxu0 %v1299
  %v2475 = vpop.f32.mrf.mxu0
  %v2476 = vadd.f32 %v2427, %v2475
  %v2477 = vpop.f32.mrf.mxu0
  %v2478 = vadd.f32 %v2429, %v2477
  %2479 = vmatmul.bf16.gmra.mxu0 %v1302
  %v2480 = vpop.f32.mrf.mxu0
  %v2481 = vadd.f32 %v2432, %v2480
  %v2482 = vpop.f32.mrf.mxu0
  %v2483 = vadd.f32 %v2434, %v2482
  %2484 = vmatmul.bf16.gmra.mxu0 %v1305
  %v2485 = vpop.f32.mrf.mxu0
  %v2486 = vadd.f32 %v2437, %v2485
  %v2487 = vpop.f32.mrf.mxu0
  %v2488 = vadd.f32 %v2439, %v2487
  %2489 = vdwg.mxu0
  %v2490 = vsub.f32 0.0, %v2451
  %v2491 = vsub.f32 0.0, %v2453
  %v2492 = vsub.f32 0.0, %v2456
  %v2493 = vsub.f32 0.0, %v2458
  %v2494 = vsub.f32 0.0, %v2461
  %v2495 = vsub.f32 0.0, %v2463
  %v2496 = vsub.f32 0.0, %v2466
  %v2497 = vsub.f32 0.0, %v2468
  %v2498 = vsub.f32 0.0, %v2471
  %v2499 = vsub.f32 0.0, %v2473
  %v2500 = vsub.f32 0.0, %v2476
  %v2501 = vsub.f32 0.0, %v2478
  %v2502 = vsub.f32 0.0, %v2481
  %v2503 = vsub.f32 0.0, %v2483
  %v2504 = vsub.f32 0.0, %v2486
  %v2505 = vsub.f32 0.0, %v2488
  %v2506 = vmul.f32 %v2490, 1.442695
  %v2507 = vpow.pop %v2506
  %v2508 = vmul.f32 %v2491, 1.442695
  %v2509 = vpow.pop %v2508
  %v2510 = vmul.f32 %v2492, 1.442695
  %v2511 = vpow.pop %v2510
  %v2512 = vmul.f32 %v2493, 1.442695
  %v2513 = vpow.pop %v2512
  %v2514 = vmul.f32 %v2494, 1.442695
  %v2515 = vpow.pop %v2514
  %v2516 = vmul.f32 %v2495, 1.442695
  %v2517 = vpow.pop %v2516
  %v2518 = vmul.f32 %v2496, 1.442695
  %v2519 = vpow.pop %v2518
  %v2520 = vmul.f32 %v2497, 1.442695
  %v2521 = vpow.pop %v2520
  %v2522 = vmul.f32 %v2498, 1.442695
  %v2523 = vpow.pop %v2522
  %v2524 = vmul.f32 %v2499, 1.442695
  %v2525 = vpow.pop %v2524
  %v2526 = vmul.f32 %v2500, 1.442695
  %v2527 = vpow.pop %v2526
  %v2528 = vmul.f32 %v2501, 1.442695
  %v2529 = vpow.pop %v2528
  %v2530 = vmul.f32 %v2502, 1.442695
  %v2531 = vpow.pop %v2530
  %v2532 = vmul.f32 %v2503, 1.442695
  %v2533 = vpow.pop %v2532
  %v2534 = vmul.f32 %v2504, 1.442695
  %v2535 = vpow.pop %v2534
  %v2536 = vmul.f32 %v2505, 1.442695
  %v2537 = vpow.pop %v2536
  %v2538 = vadd.f32 %v2507, 1.0
  %v2539 = vadd.f32 %v2509, 1.0
  %v2540 = vadd.f32 %v2511, 1.0
  %v2541 = vadd.f32 %v2513, 1.0
  %v2542 = vadd.f32 %v2515, 1.0
  %v2543 = vadd.f32 %v2517, 1.0
  %v2544 = vadd.f32 %v2519, 1.0
  %v2545 = vadd.f32 %v2521, 1.0
  %v2546 = vadd.f32 %v2523, 1.0
  %v2547 = vadd.f32 %v2525, 1.0
  %v2548 = vadd.f32 %v2527, 1.0
  %v2549 = vadd.f32 %v2529, 1.0
  %v2550 = vadd.f32 %v2531, 1.0
  %v2551 = vadd.f32 %v2533, 1.0
  %v2552 = vadd.f32 %v2535, 1.0
  %v2553 = vadd.f32 %v2537, 1.0
  %v2554 = vrcp.pop %v2538
  %v2555 = vrcp.pop %v2539
  %v2556 = vrcp.pop %v2540
  %v2557 = vrcp.pop %v2541
  %v2558 = vrcp.pop %v2542
  %v2559 = vrcp.pop %v2543
  %v2560 = vrcp.pop %v2544
  %v2561 = vrcp.pop %v2545
  %v2562 = vrcp.pop %v2546
  %v2563 = vrcp.pop %v2547
  %v2564 = vrcp.pop %v2548
  %v2565 = vrcp.pop %v2549
  %v2566 = vrcp.pop %v2550
  %v2567 = vrcp.pop %v2551
  %v2568 = vrcp.pop %v2552
  %v2569 = vrcp.pop %v2553
  %v2570 = vmul.f32 %v2451, %v2554
  %v2571 = vmul.f32 %v2453, %v2555
  %v2572 = vmul.f32 %v2456, %v2556
  %v2573 = vmul.f32 %v2458, %v2557
  %v2574 = vmul.f32 %v2461, %v2558
  %v2575 = vmul.f32 %v2463, %v2559
  %v2576 = vmul.f32 %v2466, %v2560
  %v2577 = vmul.f32 %v2468, %v2561
  %v2578 = vmul.f32 %v2471, %v2562
  %v2579 = vmul.f32 %v2473, %v2563
  %v2580 = vmul.f32 %v2476, %v2564
  %v2581 = vmul.f32 %v2478, %v2565
  %v2582 = vmul.f32 %v2481, %v2566
  %v2583 = vmul.f32 %v2483, %v2567
  %v2584 = vmul.f32 %v2486, %v2568
  %v2585 = vmul.f32 %v2488, %v2569
  %s2586 = scalar_lea.vmem %s5, 160
  %v2587 = vld [vmem:[%s2586] sm:$0xf]
  %v2588 = vld [vmem:[%s2586 + $0x4] sm:$0xf]
  %v2589 = vld [vmem:[%s2586 + $0x8] sm:$0xf]
  %v2590 = vld [vmem:[%s2586 + $0xc] sm:$0xf]
  %v2591 = vld [vmem:[%s2586 + $0x10] sm:$0x3]
  %v2592 = vpack.c.bf16 %v2571, %v2570
  %v2593 = vpack.c.bf16 %v2573, %v2572
  %v2594 = vpack.c.bf16 %v2575, %v2574
  %v2595 = vpack.c.bf16 %v2577, %v2576
  %v2596 = vpack.c.bf16 %v2579, %v2578
  %v2597 = vpack.c.bf16 %v2581, %v2580
  %v2598 = vpack.c.bf16 %v2583, %v2582
  %v2599 = vpack.c.bf16 %v2585, %v2584
  %v2600 = vperm.slane %v1826, 3
  %v2606 = vunpack.c.l.b16 %v2587
  %v2607 = vunpack.c.l.b16 %v2588
  %v2608 = vunpack.c.l.b16 %v2589
  %v2609 = vunpack.c.l.b16 %v2590
  %v2610 = vunpack.c.l.b16 %v2591
  %v2611 = vpack.c.b16 %v2607, %v2606
  %v2612 = vpack.c.b16 %v2609, %v2608
  %v2613 = vpack.c.b16 %v2610, %v2610
  %v2617 = vsel %vm534, %v2592, 0
  %v2620 = vsel %vm534, %v2593, 0
  %v2623 = vsel %vm534, %v2594, 0
  %v2626 = vsel %vm534, %v2595, 0
  %v2629 = vsel %vm534, %v2596, 0
  %v2632 = vsel %vm534, %v2597, 0
  %v2635 = vsel %vm534, %v2598, 0
  %v2638 = vsel %vm534, %v2599, 0
  %v2641 = vsel %vm559, %v2613, 0
  %2643 = vmatpush.bf16.msra.mxu0 0
  %2644 = vmatpush.bf16.msra.mxu0 0
  %2645 = vmatpush.bf16.msra.mxu0 0
  %2646 = vmatpush.bf16.msra.mxu0 0
  %2647 = vmatpush.bf16.msra.mxu0 0
  %2648 = vmatpush.bf16.msra.mxu0 %v2641
  %2649 = vmatpush.bf16.msra.mxu0 %v2612
  %2650 = vmatpush.bf16.msra.mxu0 %v2611
  %2651 = vmatmul.bf16.gmra.mxu0 %v2617
  %v2652 = vpop.f32.mrf.mxu0
  %v2653 = vadd.f32 %v2600, %v2652
  %v2654 = vpop.f32.mrf.mxu0
  %v2655 = vadd.f32 %v2600, %v2654
  %2656 = vmatmul.bf16.gmra.mxu0 %v2620
  %v2657 = vpop.f32.mrf.mxu0
  %v2658 = vadd.f32 %v2600, %v2657
  %v2659 = vpop.f32.mrf.mxu0
  %v2660 = vadd.f32 %v2600, %v2659
  %2661 = vmatmul.bf16.gmra.mxu0 %v2623
  %v2662 = vpop.f32.mrf.mxu0
  %v2663 = vadd.f32 %v2600, %v2662
  %v2664 = vpop.f32.mrf.mxu0
  %v2665 = vadd.f32 %v2600, %v2664
  %2666 = vmatmul.bf16.gmra.mxu0 %v2626
  %v2667 = vpop.f32.mrf.mxu0
  %v2668 = vadd.f32 %v2600, %v2667
  %v2669 = vpop.f32.mrf.mxu0
  %v2670 = vadd.f32 %v2600, %v2669
  %2671 = vmatmul.bf16.gmra.mxu0 %v2629
  %v2672 = vpop.f32.mrf.mxu0
  %v2673 = vadd.f32 %v2600, %v2672
  %v2674 = vpop.f32.mrf.mxu0
  %v2675 = vadd.f32 %v2600, %v2674
  %2676 = vmatmul.bf16.gmra.mxu0 %v2632
  %v2677 = vpop.f32.mrf.mxu0
  %v2678 = vadd.f32 %v2600, %v2677
  %v2679 = vpop.f32.mrf.mxu0
  %v2680 = vadd.f32 %v2600, %v2679
  %2681 = vmatmul.bf16.gmra.mxu0 %v2635
  %v2682 = vpop.f32.mrf.mxu0
  %v2683 = vadd.f32 %v2600, %v2682
  %v2684 = vpop.f32.mrf.mxu0
  %v2685 = vadd.f32 %v2600, %v2684
  %2686 = vmatmul.bf16.gmra.mxu0 %v2638
  %v2687 = vpop.f32.mrf.mxu0
  %v2688 = vadd.f32 %v2600, %v2687
  %v2689 = vpop.f32.mrf.mxu0
  %v2690 = vadd.f32 %v2600, %v2689
  %2691 = vdwg.mxu0
  %v2692 = vsub.f32 0.0, %v2653
  %v2693 = vsub.f32 0.0, %v2655
  %v2694 = vsub.f32 0.0, %v2658
  %v2695 = vsub.f32 0.0, %v2660
  %v2696 = vsub.f32 0.0, %v2663
  %v2697 = vsub.f32 0.0, %v2665
  %v2698 = vsub.f32 0.0, %v2668
  %v2699 = vsub.f32 0.0, %v2670
  %v2700 = vsub.f32 0.0, %v2673
  %v2701 = vsub.f32 0.0, %v2675
  %v2702 = vsub.f32 0.0, %v2678
  %v2703 = vsub.f32 0.0, %v2680
  %v2704 = vsub.f32 0.0, %v2683
  %v2705 = vsub.f32 0.0, %v2685
  %v2706 = vsub.f32 0.0, %v2688
  %v2707 = vsub.f32 0.0, %v2690
  %v2708 = vmul.f32 %v2692, 1.442695
  %v2709 = vpow.pop %v2708
  %v2710 = vmul.f32 %v2693, 1.442695
  %v2711 = vpow.pop %v2710
  %v2712 = vmul.f32 %v2694, 1.442695
  %v2713 = vpow.pop %v2712
  %v2714 = vmul.f32 %v2695, 1.442695
  %v2715 = vpow.pop %v2714
  %v2716 = vmul.f32 %v2696, 1.442695
  %v2717 = vpow.pop %v2716
  %v2718 = vmul.f32 %v2697, 1.442695
  %v2719 = vpow.pop %v2718
  %v2720 = vmul.f32 %v2698, 1.442695
  %v2721 = vpow.pop %v2720
  %v2722 = vmul.f32 %v2699, 1.442695
  %v2723 = vpow.pop %v2722
  %v2724 = vmul.f32 %v2700, 1.442695
  %v2725 = vpow.pop %v2724
  %v2726 = vmul.f32 %v2701, 1.442695
  %v2727 = vpow.pop %v2726
  %v2728 = vmul.f32 %v2702, 1.442695
  %v2729 = vpow.pop %v2728
  %v2730 = vmul.f32 %v2703, 1.442695
  %v2731 = vpow.pop %v2730
  %v2732 = vmul.f32 %v2704, 1.442695
  %v2733 = vpow.pop %v2732
  %v2734 = vmul.f32 %v2705, 1.442695
  %v2735 = vpow.pop %v2734
  %v2736 = vmul.f32 %v2706, 1.442695
  %v2737 = vpow.pop %v2736
  %v2738 = vmul.f32 %v2707, 1.442695
  %v2739 = vpow.pop %v2738
  %v2740 = vadd.f32 %v2709, 1.0
  %v2741 = vadd.f32 %v2711, 1.0
  %v2742 = vadd.f32 %v2713, 1.0
  %v2743 = vadd.f32 %v2715, 1.0
  %v2744 = vadd.f32 %v2717, 1.0
  %v2745 = vadd.f32 %v2719, 1.0
  %v2746 = vadd.f32 %v2721, 1.0
  %v2747 = vadd.f32 %v2723, 1.0
  %v2748 = vadd.f32 %v2725, 1.0
  %v2749 = vadd.f32 %v2727, 1.0
  %v2750 = vadd.f32 %v2729, 1.0
  %v2751 = vadd.f32 %v2731, 1.0
  %v2752 = vadd.f32 %v2733, 1.0
  %v2753 = vadd.f32 %v2735, 1.0
  %v2754 = vadd.f32 %v2737, 1.0
  %v2755 = vadd.f32 %v2739, 1.0
  %v2756 = vrcp.pop %v2740
  %v2757 = vrcp.pop %v2741
  %v2758 = vrcp.pop %v2742
  %v2759 = vrcp.pop %v2743
  %v2760 = vrcp.pop %v2744
  %v2761 = vrcp.pop %v2745
  %v2762 = vrcp.pop %v2746
  %v2763 = vrcp.pop %v2747
  %v2764 = vrcp.pop %v2748
  %v2765 = vrcp.pop %v2749
  %v2766 = vrcp.pop %v2750
  %v2767 = vrcp.pop %v2751
  %v2768 = vrcp.pop %v2752
  %v2769 = vrcp.pop %v2753
  %v2770 = vrcp.pop %v2754
  %v2771 = vrcp.pop %v2755
  %v2772 = vmul.f32 %v2653, %v2756
  %v2773 = vmul.f32 %v2655, %v2757
  %v2774 = vmul.f32 %v2658, %v2758
  %v2775 = vmul.f32 %v2660, %v2759
  %v2776 = vmul.f32 %v2663, %v2760
  %v2777 = vmul.f32 %v2665, %v2761
  %v2778 = vmul.f32 %v2668, %v2762
  %v2779 = vmul.f32 %v2670, %v2763
  %v2780 = vmul.f32 %v2673, %v2764
  %v2781 = vmul.f32 %v2675, %v2765
  %v2782 = vmul.f32 %v2678, %v2766
  %v2783 = vmul.f32 %v2680, %v2767
  %v2784 = vmul.f32 %v2683, %v2768
  %v2785 = vmul.f32 %v2685, %v2769
  %v2786 = vmul.f32 %v2688, %v2770
  %v2787 = vmul.f32 %v2690, %v2771
  %s2788 = scalar_lea.vmem %s5, 180
  %v2789 = vld [vmem:[%s2788] sm:$0xf]
  %v2790 = vld [vmem:[%s2788 + $0x4] sm:$0xf]
  %v2791 = vld [vmem:[%s2788 + $0x8] sm:$0xf]
  %v2792 = vld [vmem:[%s2788 + $0xc] sm:$0xf]
  %v2793 = vld [vmem:[%s2788 + $0x10] sm:$0x3]
  %v2794 = vpack.c.bf16 %v2773, %v2772
  %v2795 = vpack.c.bf16 %v2775, %v2774
  %v2796 = vpack.c.bf16 %v2777, %v2776
  %v2797 = vpack.c.bf16 %v2779, %v2778
  %v2798 = vpack.c.bf16 %v2781, %v2780
  %v2799 = vpack.c.bf16 %v2783, %v2782
  %v2800 = vpack.c.bf16 %v2785, %v2784
  %v2801 = vpack.c.bf16 %v2787, %v2786
  %v2802 = vperm.slane %v1826, 4
  %v2808 = vunpack.c.l.b16 %v2789
  %v2809 = vunpack.c.l.b16 %v2790
  %v2810 = vunpack.c.l.b16 %v2791
  %v2811 = vunpack.c.l.b16 %v2792
  %v2812 = vunpack.c.l.b16 %v2793
  %v2813 = vpack.c.b16 %v2809, %v2808
  %v2814 = vpack.c.b16 %v2811, %v2810
  %v2815 = vpack.c.b16 %v2812, %v2812
  %v2819 = vsel %vm534, %v2794, 0
  %v2822 = vsel %vm534, %v2795, 0
  %v2825 = vsel %vm534, %v2796, 0
  %v2828 = vsel %vm534, %v2797, 0
  %v2831 = vsel %vm534, %v2798, 0
  %v2834 = vsel %vm534, %v2799, 0
  %v2837 = vsel %vm534, %v2800, 0
  %v2840 = vsel %vm534, %v2801, 0
  %v2843 = vsel %vm559, %v2815, 0
  %2845 = vmatpush.bf16.msra.mxu0 0
  %2846 = vmatpush.bf16.msra.mxu0 0
  %2847 = vmatpush.bf16.msra.mxu0 0
  %2848 = vmatpush.bf16.msra.mxu0 0
  %2849 = vmatpush.bf16.msra.mxu0 0
  %2850 = vmatpush.bf16.msra.mxu0 %v2843
  %2851 = vmatpush.bf16.msra.mxu0 %v2814
  %2852 = vmatpush.bf16.msra.mxu0 %v2813
  %2853 = vmatmul.bf16.gmra.mxu0 %v2819
  %v2854 = vpop.f32.mrf.mxu0
  %v2855 = vadd.f32 %v2802, %v2854
  %v2856 = vpop.f32.mrf.mxu0
  %v2857 = vadd.f32 %v2802, %v2856
  %2858 = vmatmul.bf16.gmra.mxu0 %v2822
  %v2859 = vpop.f32.mrf.mxu0
  %v2860 = vadd.f32 %v2802, %v2859
  %v2861 = vpop.f32.mrf.mxu0
  %v2862 = vadd.f32 %v2802, %v2861
  %2863 = vmatmul.bf16.gmra.mxu0 %v2825
  %v2864 = vpop.f32.mrf.mxu0
  %v2865 = vadd.f32 %v2802, %v2864
  %v2866 = vpop.f32.mrf.mxu0
  %v2867 = vadd.f32 %v2802, %v2866
  %2868 = vmatmul.bf16.gmra.mxu0 %v2828
  %v2869 = vpop.f32.mrf.mxu0
  %v2870 = vadd.f32 %v2802, %v2869
  %v2871 = vpop.f32.mrf.mxu0
  %v2872 = vadd.f32 %v2802, %v2871
  %2873 = vmatmul.bf16.gmra.mxu0 %v2831
  %v2874 = vpop.f32.mrf.mxu0
  %v2875 = vadd.f32 %v2802, %v2874
  %v2876 = vpop.f32.mrf.mxu0
  %v2877 = vadd.f32 %v2802, %v2876
  %2878 = vmatmul.bf16.gmra.mxu0 %v2834
  %v2879 = vpop.f32.mrf.mxu0
  %v2880 = vadd.f32 %v2802, %v2879
  %v2881 = vpop.f32.mrf.mxu0
  %v2882 = vadd.f32 %v2802, %v2881
  %2883 = vmatmul.bf16.gmra.mxu0 %v2837
  %v2884 = vpop.f32.mrf.mxu0
  %v2885 = vadd.f32 %v2802, %v2884
  %v2886 = vpop.f32.mrf.mxu0
  %v2887 = vadd.f32 %v2802, %v2886
  %2888 = vmatmul.bf16.gmra.mxu0 %v2840
  %v2889 = vpop.f32.mrf.mxu0
  %v2890 = vadd.f32 %v2802, %v2889
  %v2891 = vpop.f32.mrf.mxu0
  %v2892 = vadd.f32 %v2802, %v2891
  %2893 = vdwg.mxu0
  %v2894 = vadd.f32 %v1809, %v2855
  %v2895 = vadd.f32 %v1810, %v2857
  %v2896 = vadd.f32 %v1811, %v2860
  %v2897 = vadd.f32 %v1812, %v2862
  %v2898 = vadd.f32 %v1813, %v2865
  %v2899 = vadd.f32 %v1814, %v2867
  %v2900 = vadd.f32 %v1815, %v2870
  %v2901 = vadd.f32 %v1816, %v2872
  %v2902 = vadd.f32 %v1817, %v2875
  %v2903 = vadd.f32 %v1818, %v2877
  %v2904 = vadd.f32 %v1819, %v2880
  %v2905 = vadd.f32 %v1820, %v2882
  %v2906 = vadd.f32 %v1821, %v2885
  %v2907 = vadd.f32 %v1822, %v2887
  %v2908 = vadd.f32 %v1823, %v2890
  %v2909 = vadd.f32 %v1824, %v2892
  %v2910 = vsub.f32 0.0, %v2894
  %v2911 = vsub.f32 0.0, %v2895
  %v2912 = vsub.f32 0.0, %v2896
  %v2913 = vsub.f32 0.0, %v2897
  %v2914 = vsub.f32 0.0, %v2898
  %v2915 = vsub.f32 0.0, %v2899
  %v2916 = vsub.f32 0.0, %v2900
  %v2917 = vsub.f32 0.0, %v2901
  %v2918 = vsub.f32 0.0, %v2902
  %v2919 = vsub.f32 0.0, %v2903
  %v2920 = vsub.f32 0.0, %v2904
  %v2921 = vsub.f32 0.0, %v2905
  %v2922 = vsub.f32 0.0, %v2906
  %v2923 = vsub.f32 0.0, %v2907
  %v2924 = vsub.f32 0.0, %v2908
  %v2925 = vsub.f32 0.0, %v2909
  %v2926 = vmul.f32 %v2910, 1.442695
  %v2927 = vpow.pop %v2926
  %v2928 = vmul.f32 %v2911, 1.442695
  %v2929 = vpow.pop %v2928
  %v2930 = vmul.f32 %v2912, 1.442695
  %v2931 = vpow.pop %v2930
  %v2932 = vmul.f32 %v2913, 1.442695
  %v2933 = vpow.pop %v2932
  %v2934 = vmul.f32 %v2914, 1.442695
  %v2935 = vpow.pop %v2934
  %v2936 = vmul.f32 %v2915, 1.442695
  %v2937 = vpow.pop %v2936
  %v2938 = vmul.f32 %v2916, 1.442695
  %v2939 = vpow.pop %v2938
  %v2940 = vmul.f32 %v2917, 1.442695
  %v2941 = vpow.pop %v2940
  %v2942 = vmul.f32 %v2918, 1.442695
  %v2943 = vpow.pop %v2942
  %v2944 = vmul.f32 %v2919, 1.442695
  %v2945 = vpow.pop %v2944
  %v2946 = vmul.f32 %v2920, 1.442695
  %v2947 = vpow.pop %v2946
  %v2948 = vmul.f32 %v2921, 1.442695
  %v2949 = vpow.pop %v2948
  %v2950 = vmul.f32 %v2922, 1.442695
  %v2951 = vpow.pop %v2950
  %v2952 = vmul.f32 %v2923, 1.442695
  %v2953 = vpow.pop %v2952
  %v2954 = vmul.f32 %v2924, 1.442695
  %v2955 = vpow.pop %v2954
  %v2956 = vmul.f32 %v2925, 1.442695
  %v2957 = vpow.pop %v2956
  %v2958 = vadd.f32 %v2927, 1.0
  %v2959 = vadd.f32 %v2929, 1.0
  %v2960 = vadd.f32 %v2931, 1.0
  %v2961 = vadd.f32 %v2933, 1.0
  %v2962 = vadd.f32 %v2935, 1.0
  %v2963 = vadd.f32 %v2937, 1.0
  %v2964 = vadd.f32 %v2939, 1.0
  %v2965 = vadd.f32 %v2941, 1.0
  %v2966 = vadd.f32 %v2943, 1.0
  %v2967 = vadd.f32 %v2945, 1.0
  %v2968 = vadd.f32 %v2947, 1.0
  %v2969 = vadd.f32 %v2949, 1.0
  %v2970 = vadd.f32 %v2951, 1.0
  %v2971 = vadd.f32 %v2953, 1.0
  %v2972 = vadd.f32 %v2955, 1.0
  %v2973 = vadd.f32 %v2957, 1.0
  %v2974 = vrcp.pop %v2958
  %v2975 = vrcp.pop %v2959
  %v2976 = vrcp.pop %v2960
  %v2977 = vrcp.pop %v2961
  %v2978 = vrcp.pop %v2962
  %v2979 = vrcp.pop %v2963
  %v2980 = vrcp.pop %v2964
  %v2981 = vrcp.pop %v2965
  %v2982 = vrcp.pop %v2966
  %v2983 = vrcp.pop %v2967
  %v2984 = vrcp.pop %v2968
  %v2985 = vrcp.pop %v2969
  %v2986 = vrcp.pop %v2970
  %v2987 = vrcp.pop %v2971
  %v2988 = vrcp.pop %v2972
  %v2989 = vrcp.pop %v2973
  %v2990 = vmul.f32 %v2894, %v2974
  %v2991 = vmul.f32 %v2895, %v2975
  %v2992 = vmul.f32 %v2896, %v2976
  %v2993 = vmul.f32 %v2897, %v2977
  %v2994 = vmul.f32 %v2898, %v2978
  %v2995 = vmul.f32 %v2899, %v2979
  %v2996 = vmul.f32 %v2900, %v2980
  %v2997 = vmul.f32 %v2901, %v2981
  %v2998 = vmul.f32 %v2902, %v2982
  %v2999 = vmul.f32 %v2903, %v2983
  %v3000 = vmul.f32 %v2904, %v2984
  %v3001 = vmul.f32 %v2905, %v2985
  %v3002 = vmul.f32 %v2906, %v2986
  %v3003 = vmul.f32 %v2907, %v2987
  %v3004 = vmul.f32 %v2908, %v2988
  %v3005 = vmul.f32 %v2909, %v2989
  %v3006 = vld [vmem:[%s8] sm:$0xff]
  %v3007 = vld [vmem:[%s8 + $0x8] sm:$0xff]
  %v3008 = vld [vmem:[%s8 + $0x10] sm:$0xff]
  %v3009 = vld [vmem:[%s8 + $0x18] sm:$0xff]
  %v3010 = vld [vmem:[%s8 + $0x20] sm:$0xf]
  %v3011 = vld [vmem:[%s9] sm:$0x1]
  %v3013 = vperm.slane %v3011, 0
  %v3016 = vsel %vm534, %v2990, 0
  %v3019 = vsel %vm534, %v2991, 0
  %v3022 = vsel %vm534, %v2992, 0
  %v3025 = vsel %vm534, %v2993, 0
  %v3028 = vsel %vm534, %v2994, 0
  %v3031 = vsel %vm534, %v2995, 0
  %v3034 = vsel %vm534, %v2996, 0
  %v3037 = vsel %vm534, %v2997, 0
  %v3040 = vsel %vm534, %v2998, 0
  %v3043 = vsel %vm534, %v2999, 0
  %v3046 = vsel %vm534, %v3000, 0
  %v3049 = vsel %vm534, %v3001, 0
  %v3052 = vsel %vm534, %v3002, 0
  %v3055 = vsel %vm534, %v3003, 0
  %v3058 = vsel %vm534, %v3004, 0
  %v3061 = vsel %vm534, %v3005, 0
  %v3064 = vsel %vm969, %v3010, 0
  %3066 = vmatpush.msra.mxu0 0.0
  %3067 = vmatpush.msra.mxu0 0.0
  %3068 = vmatpush.msra.mxu0 0.0
  %3069 = vmatpush.msra.mxu0 0.0
  %3070 = vmatpush.msra.mxu0 0.0
  %3071 = vmatpush.msra.mxu0 0.0
  %3072 = vmatpush.msra.mxu0 0.0
  %3073 = vmatpush.msra.mxu0 0.0
  %3074 = vmatpush.msra.mxu0 0.0
  %3075 = vmatpush.msra.mxu0 0.0
  %3076 = vmatpush.msra.mxu0 0.0
  %3077 = vmatpush.msra.mxu0 %v3064
  %3078 = vmatpush.msra.mxu0 %v3009
  %3079 = vmatpush.msra.mxu0 %v3008
  %3080 = vmatpush.msra.mxu0 %v3007
  %3081 = vmatpush.msra.mxu0 %v3006
  %3082 = vmatmul.f32.gmra.mxu0 %v3016
  %v3083 = vpop.f32.mrf.mxu0
  %v3084 = vadd.f32 %v3013, %v3083
  %3085 = vmatmul.f32.gmra.mxu0 %v3019
  %v3086 = vpop.f32.mrf.mxu0
  %v3087 = vadd.f32 %v3013, %v3086
  %3088 = vmatmul.f32.gmra.mxu0 %v3022
  %v3089 = vpop.f32.mrf.mxu0
  %v3090 = vadd.f32 %v3013, %v3089
  %3091 = vmatmul.f32.gmra.mxu0 %v3025
  %v3092 = vpop.f32.mrf.mxu0
  %v3093 = vadd.f32 %v3013, %v3092
  %3094 = vmatmul.f32.gmra.mxu0 %v3028
  %v3095 = vpop.f32.mrf.mxu0
  %v3096 = vadd.f32 %v3013, %v3095
  %3097 = vmatmul.f32.gmra.mxu0 %v3031
  %v3098 = vpop.f32.mrf.mxu0
  %v3099 = vadd.f32 %v3013, %v3098
  %3100 = vmatmul.f32.gmra.mxu0 %v3034
  %v3101 = vpop.f32.mrf.mxu0
  %v3102 = vadd.f32 %v3013, %v3101
  %3103 = vmatmul.f32.gmra.mxu0 %v3037
  %v3104 = vpop.f32.mrf.mxu0
  %v3105 = vadd.f32 %v3013, %v3104
  %3106 = vmatmul.f32.gmra.mxu0 %v3040
  %v3107 = vpop.f32.mrf.mxu0
  %v3108 = vadd.f32 %v3013, %v3107
  %3109 = vmatmul.f32.gmra.mxu0 %v3043
  %v3110 = vpop.f32.mrf.mxu0
  %v3111 = vadd.f32 %v3013, %v3110
  %3112 = vmatmul.f32.gmra.mxu0 %v3046
  %v3113 = vpop.f32.mrf.mxu0
  %v3114 = vadd.f32 %v3013, %v3113
  %3115 = vmatmul.f32.gmra.mxu0 %v3049
  %v3116 = vpop.f32.mrf.mxu0
  %v3117 = vadd.f32 %v3013, %v3116
  %3118 = vmatmul.f32.gmra.mxu0 %v3052
  %v3119 = vpop.f32.mrf.mxu0
  %v3120 = vadd.f32 %v3013, %v3119
  %3121 = vmatmul.f32.gmra.mxu0 %v3055
  %v3122 = vpop.f32.mrf.mxu0
  %v3123 = vadd.f32 %v3013, %v3122
  %3124 = vmatmul.f32.gmra.mxu0 %v3058
  %v3125 = vpop.f32.mrf.mxu0
  %v3126 = vadd.f32 %v3013, %v3125
  %3127 = vmatmul.f32.gmra.mxu0 %v3061
  %v3128 = vpop.f32.mrf.mxu0
  %v3129 = vadd.f32 %v3013, %v3128
  %3130 = vdwg.mxu0
  %v3131 = vsub.f32 0.0, %v3084
  %v3132 = vsub.f32 0.0, %v3087
  %v3133 = vsub.f32 0.0, %v3090
  %v3134 = vsub.f32 0.0, %v3093
  %v3135 = vsub.f32 0.0, %v3096
  %v3136 = vsub.f32 0.0, %v3099
  %v3137 = vsub.f32 0.0, %v3102
  %v3138 = vsub.f32 0.0, %v3105
  %v3139 = vsub.f32 0.0, %v3108
  %v3140 = vsub.f32 0.0, %v3111
  %v3141 = vsub.f32 0.0, %v3114
  %v3142 = vsub.f32 0.0, %v3117
  %v3143 = vsub.f32 0.0, %v3120
  %v3144 = vsub.f32 0.0, %v3123
  %v3145 = vsub.f32 0.0, %v3126
  %v3146 = vsub.f32 0.0, %v3129
  %v3147 = vmul.f32 %v3131, 1.442695
  %v3148 = vpow.pop %v3147
  %v3149 = vmul.f32 %v3132, 1.442695
  %v3150 = vpow.pop %v3149
  %v3151 = vmul.f32 %v3133, 1.442695
  %v3152 = vpow.pop %v3151
  %v3153 = vmul.f32 %v3134, 1.442695
  %v3154 = vpow.pop %v3153
  %v3155 = vmul.f32 %v3135, 1.442695
  %v3156 = vpow.pop %v3155
  %v3157 = vmul.f32 %v3136, 1.442695
  %v3158 = vpow.pop %v3157
  %v3159 = vmul.f32 %v3137, 1.442695
  %v3160 = vpow.pop %v3159
  %v3161 = vmul.f32 %v3138, 1.442695
  %v3162 = vpow.pop %v3161
  %v3163 = vmul.f32 %v3139, 1.442695
  %v3164 = vpow.pop %v3163
  %v3165 = vmul.f32 %v3140, 1.442695
  %v3166 = vpow.pop %v3165
  %v3167 = vmul.f32 %v3141, 1.442695
  %v3168 = vpow.pop %v3167
  %v3169 = vmul.f32 %v3142, 1.442695
  %v3170 = vpow.pop %v3169
  %v3171 = vmul.f32 %v3143, 1.442695
  %v3172 = vpow.pop %v3171
  %v3173 = vmul.f32 %v3144, 1.442695
  %v3174 = vpow.pop %v3173
  %v3175 = vmul.f32 %v3145, 1.442695
  %v3176 = vpow.pop %v3175
  %v3177 = vmul.f32 %v3146, 1.442695
  %v3178 = vpow.pop %v3177
  %v3179 = vadd.f32 %v3148, 1.0
  %v3180 = vadd.f32 %v3150, 1.0
  %v3181 = vadd.f32 %v3152, 1.0
  %v3182 = vadd.f32 %v3154, 1.0
  %v3183 = vadd.f32 %v3156, 1.0
  %v3184 = vadd.f32 %v3158, 1.0
  %v3185 = vadd.f32 %v3160, 1.0
  %v3186 = vadd.f32 %v3162, 1.0
  %v3187 = vadd.f32 %v3164, 1.0
  %v3188 = vadd.f32 %v3166, 1.0
  %v3189 = vadd.f32 %v3168, 1.0
  %v3190 = vadd.f32 %v3170, 1.0
  %v3191 = vadd.f32 %v3172, 1.0
  %v3192 = vadd.f32 %v3174, 1.0
  %v3193 = vadd.f32 %v3176, 1.0
  %v3194 = vadd.f32 %v3178, 1.0
  %v3195 = vrcp.pop %v3179
  %v3196 = vrcp.pop %v3180
  %v3197 = vrcp.pop %v3181
  %v3198 = vrcp.pop %v3182
  %v3199 = vrcp.pop %v3183
  %v3200 = vrcp.pop %v3184
  %v3201 = vrcp.pop %v3185
  %v3202 = vrcp.pop %v3186
  %v3203 = vrcp.pop %v3187
  %v3204 = vrcp.pop %v3188
  %v3205 = vrcp.pop %v3189
  %v3206 = vrcp.pop %v3190
  %v3207 = vrcp.pop %v3191
  %v3208 = vrcp.pop %v3192
  %v3209 = vrcp.pop %v3193
  %v3210 = vrcp.pop %v3194
  %v3211 = vmul.f32 %v3084, %v3195
  %v3212 = vmul.f32 %v3087, %v3196
  %v3213 = vmul.f32 %v3090, %v3197
  %v3214 = vmul.f32 %v3093, %v3198
  %v3215 = vmul.f32 %v3096, %v3199
  %v3216 = vmul.f32 %v3099, %v3200
  %v3217 = vmul.f32 %v3102, %v3201
  %v3218 = vmul.f32 %v3105, %v3202
  %v3219 = vmul.f32 %v3108, %v3203
  %v3220 = vmul.f32 %v3111, %v3204
  %v3221 = vmul.f32 %v3114, %v3205
  %v3222 = vmul.f32 %v3117, %v3206
  %v3223 = vmul.f32 %v3120, %v3207
  %v3224 = vmul.f32 %v3123, %v3208
  %v3225 = vmul.f32 %v3126, %v3209
  %v3226 = vmul.f32 %v3129, %v3210
  %v3227 = vld [vmem:[%s10] sm:$0x7]
  %v3228 = vld [vmem:[%s11] sm:$0x1]
  %v3230 = vperm.slane %v3228, 0
  %vm3232 = vcmask 23552
  %v3234 = vsel %vm3232, %v3211, 0
  %v3237 = vsel %vm3232, %v3212, 0
  %v3240 = vsel %vm3232, %v3213, 0
  %v3243 = vsel %vm3232, %v3214, 0
  %v3246 = vsel %vm3232, %v3215, 0
  %v3249 = vsel %vm3232, %v3216, 0
  %v3252 = vsel %vm3232, %v3217, 0
  %v3255 = vsel %vm3232, %v3218, 0
  %v3258 = vsel %vm3232, %v3219, 0
  %v3261 = vsel %vm3232, %v3220, 0
  %v3264 = vsel %vm3232, %v3221, 0
  %v3267 = vsel %vm3232, %v3222, 0
  %v3270 = vsel %vm3232, %v3223, 0
  %v3273 = vsel %vm3232, %v3224, 0
  %v3276 = vsel %vm3232, %v3225, 0
  %v3279 = vsel %vm3232, %v3226, 0
  %vm3281 = vcmask 1042432
  %v3283 = vsel %vm3281, %v3227, 0
  %3285 = vmatpush.msra.mxu0 0.0
  %3286 = vmatpush.msra.mxu0 0.0
  %3287 = vmatpush.msra.mxu0 0.0
  %3288 = vmatpush.msra.mxu0 0.0
  %3289 = vmatpush.msra.mxu0 0.0
  %3290 = vmatpush.msra.mxu0 0.0
  %3291 = vmatpush.msra.mxu0 0.0
  %3292 = vmatpush.msra.mxu0 0.0
  %3293 = vmatpush.msra.mxu0 0.0
  %3294 = vmatpush.msra.mxu0 0.0
  %3295 = vmatpush.msra.mxu0 0.0
  %3296 = vmatpush.msra.mxu0 0.0
  %3297 = vmatpush.msra.mxu0 0.0
  %3298 = vmatpush.msra.mxu0 0.0
  %3299 = vmatpush.msra.mxu0 0.0
  %3300 = vmatpush.msra.mxu0 %v3283
  %3301 = vmatmul.f32.gmra.mxu0 %v3234
  %v3302 = vpop.f32.mrf.mxu0
  %v3303 = vadd.f32 %v3230, %v3302
  %3304 = vmatmul.f32.gmra.mxu0 %v3237
  %v3305 = vpop.f32.mrf.mxu0
  %v3306 = vadd.f32 %v3230, %v3305
  %3307 = vmatmul.f32.gmra.mxu0 %v3240
  %v3308 = vpop.f32.mrf.mxu0
  %v3309 = vadd.f32 %v3230, %v3308
  %3310 = vmatmul.f32.gmra.mxu0 %v3243
  %v3311 = vpop.f32.mrf.mxu0
  %v3312 = vadd.f32 %v3230, %v3311
  %3313 = vmatmul.f32.gmra.mxu0 %v3246
  %v3314 = vpop.f32.mrf.mxu0
  %v3315 = vadd.f32 %v3230, %v3314
  %3316 = vmatmul.f32.gmra.mxu0 %v3249
  %v3317 = vpop.f32.mrf.mxu0
  %v3318 = vadd.f32 %v3230, %v3317
  %3319 = vmatmul.f32.gmra.mxu0 %v3252
  %v3320 = vpop.f32.mrf.mxu0
  %v3321 = vadd.f32 %v3230, %v3320
  %3322 = vmatmul.f32.gmra.mxu0 %v3255
  %v3323 = vpop.f32.mrf.mxu0
  %v3324 = vadd.f32 %v3230, %v3323
  %3325 = vmatmul.f32.gmra.mxu0 %v3258
  %v3326 = vpop.f32.mrf.mxu0
  %v3327 = vadd.f32 %v3230, %v3326
  %3328 = vmatmul.f32.gmra.mxu0 %v3261
  %v3329 = vpop.f32.mrf.mxu0
  %v3330 = vadd.f32 %v3230, %v3329
  %3331 = vmatmul.f32.gmra.mxu0 %v3264
  %v3332 = vpop.f32.mrf.mxu0
  %v3333 = vadd.f32 %v3230, %v3332
  %3334 = vmatmul.f32.gmra.mxu0 %v3267
  %v3335 = vpop.f32.mrf.mxu0
  %v3336 = vadd.f32 %v3230, %v3335
  %3337 = vmatmul.f32.gmra.mxu0 %v3270
  %v3338 = vpop.f32.mrf.mxu0
  %v3339 = vadd.f32 %v3230, %v3338
  %3340 = vmatmul.f32.gmra.mxu0 %v3273
  %v3341 = vpop.f32.mrf.mxu0
  %v3342 = vadd.f32 %v3230, %v3341
  %3343 = vmatmul.f32.gmra.mxu0 %v3276
  %v3344 = vpop.f32.mrf.mxu0
  %v3345 = vadd.f32 %v3230, %v3344
  %3346 = vmatmul.f32.gmra.mxu0 %v3279
  %v3347 = vpop.f32.mrf.mxu0
  %v3348 = vadd.f32 %v3230, %v3347
  %3349 = vdwg.mxu0
  %v3350 = vld [vmem:[%s12] sm:$0xff]
  %v3351 = vld [vmem:[%s12 + $0x8] sm:$0xff]
  %v3352 = vld [vmem:[%s12 + $0x10] sm:$0xff]
  %v3353 = vld [vmem:[%s12 + $0x18] sm:$0xff]
  %v3354 = vld [vmem:[%s12 + $0x20] sm:$0xf]
  %v3355 = vsub.f32 0.0, %v3303
  %v3356 = vsub.f32 0.0, %v3306
  %v3357 = vsub.f32 0.0, %v3309
  %v3358 = vsub.f32 0.0, %v3312
  %v3359 = vsub.f32 0.0, %v3315
  %v3360 = vsub.f32 0.0, %v3318
  %v3361 = vsub.f32 0.0, %v3321
  %v3362 = vsub.f32 0.0, %v3324
  %v3363 = vsub.f32 0.0, %v3327
  %v3364 = vsub.f32 0.0, %v3330
  %v3365 = vsub.f32 0.0, %v3333
  %v3366 = vsub.f32 0.0, %v3336
  %v3367 = vsub.f32 0.0, %v3339
  %v3368 = vsub.f32 0.0, %v3342
  %v3369 = vsub.f32 0.0, %v3345
  %v3370 = vsub.f32 0.0, %v3348
  %v3371 = vmul.f32 %v3355, 1.442695
  %v3372 = vpow.pop %v3371
  %v3373 = vmul.f32 %v3356, 1.442695
  %v3374 = vpow.pop %v3373
  %v3375 = vmul.f32 %v3357, 1.442695
  %v3376 = vpow.pop %v3375
  %v3377 = vmul.f32 %v3358, 1.442695
  %v3378 = vpow.pop %v3377
  %v3379 = vmul.f32 %v3359, 1.442695
  %v3380 = vpow.pop %v3379
  %v3381 = vmul.f32 %v3360, 1.442695
  %v3382 = vpow.pop %v3381
  %v3383 = vmul.f32 %v3361, 1.442695
  %v3384 = vpow.pop %v3383
  %v3385 = vmul.f32 %v3362, 1.442695
  %v3386 = vpow.pop %v3385
  %v3387 = vmul.f32 %v3363, 1.442695
  %v3388 = vpow.pop %v3387
  %v3389 = vmul.f32 %v3364, 1.442695
  %v3390 = vpow.pop %v3389
  %v3391 = vmul.f32 %v3365, 1.442695
  %v3392 = vpow.pop %v3391
  %v3393 = vmul.f32 %v3366, 1.442695
  %v3394 = vpow.pop %v3393
  %v3395 = vmul.f32 %v3367, 1.442695
  %v3396 = vpow.pop %v3395
  %v3397 = vmul.f32 %v3368, 1.442695
  %v3398 = vpow.pop %v3397
  %v3399 = vmul.f32 %v3369, 1.442695
  %v3400 = vpow.pop %v3399
  %v3401 = vmul.f32 %v3370, 1.442695
  %v3402 = vpow.pop %v3401
  %v3403 = vadd.f32 %v3372, 1.0
  %v3404 = vadd.f32 %v3374, 1.0
  %v3405 = vadd.f32 %v3376, 1.0
  %v3406 = vadd.f32 %v3378, 1.0
  %v3407 = vadd.f32 %v3380, 1.0
  %v3408 = vadd.f32 %v3382, 1.0
  %v3409 = vadd.f32 %v3384, 1.0
  %v3410 = vadd.f32 %v3386, 1.0
  %v3411 = vadd.f32 %v3388, 1.0
  %v3412 = vadd.f32 %v3390, 1.0
  %v3413 = vadd.f32 %v3392, 1.0
  %v3414 = vadd.f32 %v3394, 1.0
  %v3415 = vadd.f32 %v3396, 1.0
  %v3416 = vadd.f32 %v3398, 1.0
  %v3417 = vadd.f32 %v3400, 1.0
  %v3418 = vadd.f32 %v3402, 1.0
  %v3419 = vrcp.pop %v3403
  %v3420 = vrcp.pop %v3404
  %v3421 = vrcp.pop %v3405
  %v3422 = vrcp.pop %v3406
  %v3423 = vrcp.pop %v3407
  %v3424 = vrcp.pop %v3408
  %v3425 = vrcp.pop %v3409
  %v3426 = vrcp.pop %v3410
  %v3427 = vrcp.pop %v3411
  %v3428 = vrcp.pop %v3412
  %v3429 = vrcp.pop %v3413
  %v3430 = vrcp.pop %v3414
  %v3431 = vrcp.pop %v3415
  %v3432 = vrcp.pop %v3416
  %v3433 = vrcp.pop %v3417
  %v3434 = vrcp.pop %v3418
  %v3435 = vmul.f32 %v3303, %v3419
  %v3436 = vmul.f32 %v3306, %v3420
  %v3437 = vmul.f32 %v3309, %v3421
  %v3438 = vmul.f32 %v3312, %v3422
  %v3439 = vmul.f32 %v3315, %v3423
  %v3440 = vmul.f32 %v3318, %v3424
  %v3441 = vmul.f32 %v3321, %v3425
  %v3442 = vmul.f32 %v3324, %v3426
  %v3443 = vmul.f32 %v3327, %v3427
  %v3444 = vmul.f32 %v3330, %v3428
  %v3445 = vmul.f32 %v3333, %v3429
  %v3446 = vmul.f32 %v3336, %v3430
  %v3447 = vmul.f32 %v3339, %v3431
  %v3448 = vmul.f32 %v3342, %v3432
  %v3449 = vmul.f32 %v3345, %v3433
  %v3450 = vmul.f32 %v3348, %v3434
  %v3451 = vld [vmem:[%s13] sm:$0x7]
  %v3453 = vsel %vm3232, %v3435, 0
  %v3456 = vsel %vm3232, %v3436, 0
  %v3459 = vsel %vm3232, %v3437, 0
  %v3462 = vsel %vm3232, %v3438, 0
  %v3465 = vsel %vm3232, %v3439, 0
  %v3468 = vsel %vm3232, %v3440, 0
  %v3471 = vsel %vm3232, %v3441, 0
  %v3474 = vsel %vm3232, %v3442, 0
  %v3477 = vsel %vm3232, %v3443, 0
  %v3480 = vsel %vm3232, %v3444, 0
  %v3483 = vsel %vm3232, %v3445, 0
  %v3486 = vsel %vm3232, %v3446, 0
  %v3489 = vsel %vm3232, %v3447, 0
  %v3492 = vsel %vm3232, %v3448, 0
  %v3495 = vsel %vm3232, %v3449, 0
  %v3498 = vsel %vm3232, %v3450, 0
  %v3501 = vsel %vm3281, %v3451, 0
  %3503 = vmatpush.msra.mxu0 0.0
  %3504 = vmatpush.msra.mxu0 0.0
  %3505 = vmatpush.msra.mxu0 0.0
  %3506 = vmatpush.msra.mxu0 0.0
  %3507 = vmatpush.msra.mxu0 0.0
  %3508 = vmatpush.msra.mxu0 0.0
  %3509 = vmatpush.msra.mxu0 0.0
  %3510 = vmatpush.msra.mxu0 0.0
  %3511 = vmatpush.msra.mxu0 0.0
  %3512 = vmatpush.msra.mxu0 0.0
  %3513 = vmatpush.msra.mxu0 0.0
  %3514 = vmatpush.msra.mxu0 0.0
  %3515 = vmatpush.msra.mxu0 0.0
  %3516 = vmatpush.msra.mxu0 0.0
  %3517 = vmatpush.msra.mxu0 0.0
  %3518 = vmatpush.msra.mxu0 %v3501
  %3519 = vmatmul.f32.gmra.mxu0 %v3453
  %v3520 = vpop.f32.mrf.mxu0
  %v3521 = vadd.f32 0.0, %v3520
  %3522 = vmatmul.f32.gmra.mxu0 %v3456
  %v3523 = vpop.f32.mrf.mxu0
  %v3524 = vadd.f32 0.0, %v3523
  %3525 = vmatmul.f32.gmra.mxu0 %v3459
  %v3526 = vpop.f32.mrf.mxu0
  %v3527 = vadd.f32 0.0, %v3526
  %3528 = vmatmul.f32.gmra.mxu0 %v3462
  %v3529 = vpop.f32.mrf.mxu0
  %v3530 = vadd.f32 0.0, %v3529
  %3531 = vmatmul.f32.gmra.mxu0 %v3465
  %v3532 = vpop.f32.mrf.mxu0
  %v3533 = vadd.f32 0.0, %v3532
  %3534 = vmatmul.f32.gmra.mxu0 %v3468
  %v3535 = vpop.f32.mrf.mxu0
  %v3536 = vadd.f32 0.0, %v3535
  %3537 = vmatmul.f32.gmra.mxu0 %v3471
  %v3538 = vpop.f32.mrf.mxu0
  %v3539 = vadd.f32 0.0, %v3538
  %3540 = vmatmul.f32.gmra.mxu0 %v3474
  %v3541 = vpop.f32.mrf.mxu0
  %v3542 = vadd.f32 0.0, %v3541
  %3543 = vmatmul.f32.gmra.mxu0 %v3477
  %v3544 = vpop.f32.mrf.mxu0
  %v3545 = vadd.f32 0.0, %v3544
  %3546 = vmatmul.f32.gmra.mxu0 %v3480
  %v3547 = vpop.f32.mrf.mxu0
  %v3548 = vadd.f32 0.0, %v3547
  %3549 = vmatmul.f32.gmra.mxu0 %v3483
  %v3550 = vpop.f32.mrf.mxu0
  %v3551 = vadd.f32 0.0, %v3550
  %3552 = vmatmul.f32.gmra.mxu0 %v3486
  %v3553 = vpop.f32.mrf.mxu0
  %v3554 = vadd.f32 0.0, %v3553
  %3555 = vmatmul.f32.gmra.mxu0 %v3489
  %v3556 = vpop.f32.mrf.mxu0
  %v3557 = vadd.f32 0.0, %v3556
  %3558 = vmatmul.f32.gmra.mxu0 %v3492
  %v3559 = vpop.f32.mrf.mxu0
  %v3560 = vadd.f32 0.0, %v3559
  %3561 = vmatmul.f32.gmra.mxu0 %v3495
  %v3562 = vpop.f32.mrf.mxu0
  %v3563 = vadd.f32 0.0, %v3562
  %3564 = vmatmul.f32.gmra.mxu0 %v3498
  %v3565 = vpop.f32.mrf.mxu0
  %v3566 = vadd.f32 0.0, %v3565
  %3567 = vdwg.mxu0
  %v3569 = vsel %vm969, %v3354, 0
  %3571 = vmatpush.msra.mxu0 0.0
  %3572 = vmatpush.msra.mxu0 0.0
  %3573 = vmatpush.msra.mxu0 0.0
  %3574 = vmatpush.msra.mxu0 0.0
  %3575 = vmatpush.msra.mxu0 0.0
  %3576 = vmatpush.msra.mxu0 0.0
  %3577 = vmatpush.msra.mxu0 0.0
  %3578 = vmatpush.msra.mxu0 0.0
  %3579 = vmatpush.msra.mxu0 0.0
  %3580 = vmatpush.msra.mxu0 0.0
  %3581 = vmatpush.msra.mxu0 0.0
  %3582 = vmatpush.msra.mxu0 %v3569
  %3583 = vmatpush.msra.mxu0 %v3353
  %3584 = vmatpush.msra.mxu0 %v3352
  %3585 = vmatpush.msra.mxu0 %v3351
  %3586 = vmatpush.msra.mxu0 %v3350
  %3587 = vmatmul.f32.gmra.mxu0 %v3016
  %v3588 = vpop.f32.mrf.mxu0
  %v3589 = vadd.f32 %v3521, %v3588
  %3590 = vmatmul.f32.gmra.mxu0 %v3019
  %v3591 = vpop.f32.mrf.mxu0
  %v3592 = vadd.f32 %v3524, %v3591
  %3593 = vmatmul.f32.gmra.mxu0 %v3022
  %v3594 = vpop.f32.mrf.mxu0
  %v3595 = vadd.f32 %v3527, %v3594
  %3596 = vmatmul.f32.gmra.mxu0 %v3025
  %v3597 = vpop.f32.mrf.mxu0
  %v3598 = vadd.f32 %v3530, %v3597
  %3599 = vmatmul.f32.gmra.mxu0 %v3028
  %v3600 = vpop.f32.mrf.mxu0
  %v3601 = vadd.f32 %v3533, %v3600
  %3602 = vmatmul.f32.gmra.mxu0 %v3031
  %v3603 = vpop.f32.mrf.mxu0
  %v3604 = vadd.f32 %v3536, %v3603
  %3605 = vmatmul.f32.gmra.mxu0 %v3034
  %v3606 = vpop.f32.mrf.mxu0
  %v3607 = vadd.f32 %v3539, %v3606
  %3608 = vmatmul.f32.gmra.mxu0 %v3037
  %v3609 = vpop.f32.mrf.mxu0
  %v3610 = vadd.f32 %v3542, %v3609
  %3611 = vmatmul.f32.gmra.mxu0 %v3040
  %v3612 = vpop.f32.mrf.mxu0
  %v3613 = vadd.f32 %v3545, %v3612
  %3614 = vmatmul.f32.gmra.mxu0 %v3043
  %v3615 = vpop.f32.mrf.mxu0
  %v3616 = vadd.f32 %v3548, %v3615
  %3617 = vmatmul.f32.gmra.mxu0 %v3046
  %v3618 = vpop.f32.mrf.mxu0
  %v3619 = vadd.f32 %v3551, %v3618
  %3620 = vmatmul.f32.gmra.mxu0 %v3049
  %v3621 = vpop.f32.mrf.mxu0
  %v3622 = vadd.f32 %v3554, %v3621
  %3623 = vmatmul.f32.gmra.mxu0 %v3052
  %v3624 = vpop.f32.mrf.mxu0
  %v3625 = vadd.f32 %v3557, %v3624
  %3626 = vmatmul.f32.gmra.mxu0 %v3055
  %v3627 = vpop.f32.mrf.mxu0
  %v3628 = vadd.f32 %v3560, %v3627
  %3629 = vmatmul.f32.gmra.mxu0 %v3058
  %v3630 = vpop.f32.mrf.mxu0
  %v3631 = vadd.f32 %v3563, %v3630
  %3632 = vmatmul.f32.gmra.mxu0 %v3061
  %v3633 = vpop.f32.mrf.mxu0
  %v3634 = vadd.f32 %v3566, %v3633
  %3635 = vdwg.mxu0
  %v3636 = vld [vmem:[%s14] sm:$0x1]
  %v3638 = vperm.slane %v3636, 0
  %v3640 = vadd.f32 %v3589, %v3638
  %v3641 = vadd.f32 %v3592, %v3638
  %v3642 = vadd.f32 %v3595, %v3638
  %v3643 = vadd.f32 %v3598, %v3638
  %v3644 = vadd.f32 %v3601, %v3638
  %v3645 = vadd.f32 %v3604, %v3638
  %v3646 = vadd.f32 %v3607, %v3638
  %v3647 = vadd.f32 %v3610, %v3638
  %v3648 = vadd.f32 %v3613, %v3638
  %v3649 = vadd.f32 %v3616, %v3638
  %v3650 = vadd.f32 %v3619, %v3638
  %v3651 = vadd.f32 %v3622, %v3638
  %v3652 = vadd.f32 %v3625, %v3638
  %v3653 = vadd.f32 %v3628, %v3638
  %v3654 = vadd.f32 %v3631, %v3638
  %v3655 = vadd.f32 %v3634, %v3638
  %v3656 = vsub.f32 0.0, %v3640
  %v3657 = vsub.f32 0.0, %v3641
  %v3658 = vsub.f32 0.0, %v3642
  %v3659 = vsub.f32 0.0, %v3643
  %v3660 = vsub.f32 0.0, %v3644
  %v3661 = vsub.f32 0.0, %v3645
  %v3662 = vsub.f32 0.0, %v3646
  %v3663 = vsub.f32 0.0, %v3647
  %v3664 = vsub.f32 0.0, %v3648
  %v3665 = vsub.f32 0.0, %v3649
  %v3666 = vsub.f32 0.0, %v3650
  %v3667 = vsub.f32 0.0, %v3651
  %v3668 = vsub.f32 0.0, %v3652
  %v3669 = vsub.f32 0.0, %v3653
  %v3670 = vsub.f32 0.0, %v3654
  %v3671 = vsub.f32 0.0, %v3655
  %v3672 = vmul.f32 %v3656, 1.442695
  %v3673 = vpow.pop %v3672
  %v3674 = vmul.f32 %v3657, 1.442695
  %v3675 = vpow.pop %v3674
  %v3676 = vmul.f32 %v3658, 1.442695
  %v3677 = vpow.pop %v3676
  %v3678 = vmul.f32 %v3659, 1.442695
  %v3679 = vpow.pop %v3678
  %v3680 = vmul.f32 %v3660, 1.442695
  %v3681 = vpow.pop %v3680
  %v3682 = vmul.f32 %v3661, 1.442695
  %v3683 = vpow.pop %v3682
  %v3684 = vmul.f32 %v3662, 1.442695
  %v3685 = vpow.pop %v3684
  %v3686 = vmul.f32 %v3663, 1.442695
  %v3687 = vpow.pop %v3686
  %v3688 = vmul.f32 %v3664, 1.442695
  %v3689 = vpow.pop %v3688
  %v3690 = vmul.f32 %v3665, 1.442695
  %v3691 = vpow.pop %v3690
  %v3692 = vmul.f32 %v3666, 1.442695
  %v3693 = vpow.pop %v3692
  %v3694 = vmul.f32 %v3667, 1.442695
  %v3695 = vpow.pop %v3694
  %v3696 = vmul.f32 %v3668, 1.442695
  %v3697 = vpow.pop %v3696
  %v3698 = vmul.f32 %v3669, 1.442695
  %v3699 = vpow.pop %v3698
  %v3700 = vmul.f32 %v3670, 1.442695
  %v3701 = vpow.pop %v3700
  %v3702 = vmul.f32 %v3671, 1.442695
  %v3703 = vpow.pop %v3702
  %v3704 = vadd.f32 %v3673, 1.0
  %v3705 = vadd.f32 %v3675, 1.0
  %v3706 = vadd.f32 %v3677, 1.0
  %v3707 = vadd.f32 %v3679, 1.0
  %v3708 = vadd.f32 %v3681, 1.0
  %v3709 = vadd.f32 %v3683, 1.0
  %v3710 = vadd.f32 %v3685, 1.0
  %v3711 = vadd.f32 %v3687, 1.0
  %v3712 = vadd.f32 %v3689, 1.0
  %v3713 = vadd.f32 %v3691, 1.0
  %v3714 = vadd.f32 %v3693, 1.0
  %v3715 = vadd.f32 %v3695, 1.0
  %v3716 = vadd.f32 %v3697, 1.0
  %v3717 = vadd.f32 %v3699, 1.0
  %v3718 = vadd.f32 %v3701, 1.0
  %v3719 = vadd.f32 %v3703, 1.0
  %v3720 = vrcp.pop %v3704
  %v3721 = vrcp.pop %v3705
  %v3722 = vrcp.pop %v3706
  %v3723 = vrcp.pop %v3707
  %v3724 = vrcp.pop %v3708
  %v3725 = vrcp.pop %v3709
  %v3726 = vrcp.pop %v3710
  %v3727 = vrcp.pop %v3711
  %v3728 = vrcp.pop %v3712
  %v3729 = vrcp.pop %v3713
  %v3730 = vrcp.pop %v3714
  %v3731 = vrcp.pop %v3715
  %v3732 = vrcp.pop %v3716
  %v3733 = vrcp.pop %v3717
  %v3734 = vrcp.pop %v3718
  %v3735 = vrcp.pop %v3719
  %v3736 = vmul.f32 %v3640, %v3720
  %v3737 = vmul.f32 %v3641, %v3721
  %v3738 = vmul.f32 %v3642, %v3722
  %v3739 = vmul.f32 %v3643, %v3723
  %v3740 = vmul.f32 %v3644, %v3724
  %v3741 = vmul.f32 %v3645, %v3725
  %v3742 = vmul.f32 %v3646, %v3726
  %v3743 = vmul.f32 %v3647, %v3727
  %v3744 = vmul.f32 %v3648, %v3728
  %v3745 = vmul.f32 %v3649, %v3729
  %v3746 = vmul.f32 %v3650, %v3730
  %v3747 = vmul.f32 %v3651, %v3731
  %v3748 = vmul.f32 %v3652, %v3732
  %v3749 = vmul.f32 %v3653, %v3733
  %v3750 = vmul.f32 %v3654, %v3734
  %v3751 = vmul.f32 %v3655, %v3735
  %v3752 = vld [vmem:[%s15] sm:$0x7]
  %v3753 = vld [vmem:[%s16] sm:$0x1]
  %v3755 = vperm.slane %v3753, 0
  %v3758 = vsel %vm3232, %v3736, 0
  %v3761 = vsel %vm3232, %v3737, 0
  %v3764 = vsel %vm3232, %v3738, 0
  %v3767 = vsel %vm3232, %v3739, 0
  %v3770 = vsel %vm3232, %v3740, 0
  %v3773 = vsel %vm3232, %v3741, 0
  %v3776 = vsel %vm3232, %v3742, 0
  %v3779 = vsel %vm3232, %v3743, 0
  %v3782 = vsel %vm3232, %v3744, 0
  %v3785 = vsel %vm3232, %v3745, 0
  %v3788 = vsel %vm3232, %v3746, 0
  %v3791 = vsel %vm3232, %v3747, 0
  %v3794 = vsel %vm3232, %v3748, 0
  %v3797 = vsel %vm3232, %v3749, 0
  %v3800 = vsel %vm3232, %v3750, 0
  %v3803 = vsel %vm3232, %v3751, 0
  %v3806 = vsel %vm3281, %v3752, 0
  %3808 = vmatpush.msra.mxu0 0.0
  %3809 = vmatpush.msra.mxu0 0.0
  %3810 = vmatpush.msra.mxu0 0.0
  %3811 = vmatpush.msra.mxu0 0.0
  %3812 = vmatpush.msra.mxu0 0.0
  %3813 = vmatpush.msra.mxu0 0.0
  %3814 = vmatpush.msra.mxu0 0.0
  %3815 = vmatpush.msra.mxu0 0.0
  %3816 = vmatpush.msra.mxu0 0.0
  %3817 = vmatpush.msra.mxu0 0.0
  %3818 = vmatpush.msra.mxu0 0.0
  %3819 = vmatpush.msra.mxu0 0.0
  %3820 = vmatpush.msra.mxu0 0.0
  %3821 = vmatpush.msra.mxu0 0.0
  %3822 = vmatpush.msra.mxu0 0.0
  %3823 = vmatpush.msra.mxu0 %v3806
  %3824 = vmatmul.f32.gmra.mxu0 %v3758
  %v3825 = vpop.f32.mrf.mxu0
  %v3826 = vadd.f32 %v3755, %v3825
  %3827 = vmatmul.f32.gmra.mxu0 %v3761
  %v3828 = vpop.f32.mrf.mxu0
  %v3829 = vadd.f32 %v3755, %v3828
  %3830 = vmatmul.f32.gmra.mxu0 %v3764
  %v3831 = vpop.f32.mrf.mxu0
  %v3832 = vadd.f32 %v3755, %v3831
  %3833 = vmatmul.f32.gmra.mxu0 %v3767
  %v3834 = vpop.f32.mrf.mxu0
  %v3835 = vadd.f32 %v3755, %v3834
  %3836 = vmatmul.f32.gmra.mxu0 %v3770
  %v3837 = vpop.f32.mrf.mxu0
  %v3838 = vadd.f32 %v3755, %v3837
  %3839 = vmatmul.f32.gmra.mxu0 %v3773
  %v3840 = vpop.f32.mrf.mxu0
  %v3841 = vadd.f32 %v3755, %v3840
  %3842 = vmatmul.f32.gmra.mxu0 %v3776
  %v3843 = vpop.f32.mrf.mxu0
  %v3844 = vadd.f32 %v3755, %v3843
  %3845 = vmatmul.f32.gmra.mxu0 %v3779
  %v3846 = vpop.f32.mrf.mxu0
  %v3847 = vadd.f32 %v3755, %v3846
  %3848 = vmatmul.f32.gmra.mxu0 %v3782
  %v3849 = vpop.f32.mrf.mxu0
  %v3850 = vadd.f32 %v3755, %v3849
  %3851 = vmatmul.f32.gmra.mxu0 %v3785
  %v3852 = vpop.f32.mrf.mxu0
  %v3853 = vadd.f32 %v3755, %v3852
  %3854 = vmatmul.f32.gmra.mxu0 %v3788
  %v3855 = vpop.f32.mrf.mxu0
  %v3856 = vadd.f32 %v3755, %v3855
  %3857 = vmatmul.f32.gmra.mxu0 %v3791
  %v3858 = vpop.f32.mrf.mxu0
  %v3859 = vadd.f32 %v3755, %v3858
  %3860 = vmatmul.f32.gmra.mxu0 %v3794
  %v3861 = vpop.f32.mrf.mxu0
  %v3862 = vadd.f32 %v3755, %v3861
  %3863 = vmatmul.f32.gmra.mxu0 %v3797
  %v3864 = vpop.f32.mrf.mxu0
  %v3865 = vadd.f32 %v3755, %v3864
  %3866 = vmatmul.f32.gmra.mxu0 %v3800
  %v3867 = vpop.f32.mrf.mxu0
  %v3868 = vadd.f32 %v3755, %v3867
  %3869 = vmatmul.f32.gmra.mxu0 %v3803
  %v3870 = vpop.f32.mrf.mxu0
  %v3871 = vadd.f32 %v3755, %v3870
  %3872 = vdwg.mxu0
  %s3873 = scalar_lea.vmem %s5, 80
  %v3874 = vld [vmem:[%s3873] sm:$0xf]
  %v3875 = vld [vmem:[%s3873 + $0x4] sm:$0xf]
  %v3876 = vld [vmem:[%s3873 + $0x8] sm:$0xf]
  %v3877 = vld [vmem:[%s3873 + $0xc] sm:$0xf]
  %v3878 = vld [vmem:[%s3873 + $0x10] sm:$0x3]
  %v3879 = vpack.c.bf16 %v2991, %v2990
  %v3880 = vpack.c.bf16 %v2993, %v2992
  %v3881 = vpack.c.bf16 %v2995, %v2994
  %v3882 = vpack.c.bf16 %v2997, %v2996
  %v3883 = vpack.c.bf16 %v2999, %v2998
  %v3884 = vpack.c.bf16 %v3001, %v3000
  %v3885 = vpack.c.bf16 %v3003, %v3002
  %v3886 = vpack.c.bf16 %v3005, %v3004
  %v3887 = vperm.slane %v504, 5
  %v3893 = vunpack.c.l.b16 %v3874
  %v3894 = vunpack.c.l.b16 %v3875
  %v3895 = vunpack.c.l.b16 %v3876
  %v3896 = vunpack.c.l.b16 %v3877
  %v3897 = vunpack.c.l.b16 %v3878
  %v3898 = vpack.c.b16 %v3894, %v3893
  %v3899 = vpack.c.b16 %v3896, %v3895
  %v3900 = vpack.c.b16 %v3897, %v3897
  %v3904 = vsel %vm534, %v3879, 0
  %v3907 = vsel %vm534, %v3880, 0
  %v3910 = vsel %vm534, %v3881, 0
  %v3913 = vsel %vm534, %v3882, 0
  %v3916 = vsel %vm534, %v3883, 0
  %v3919 = vsel %vm534, %v3884, 0
  %v3922 = vsel %vm534, %v3885, 0
  %v3925 = vsel %vm534, %v3886, 0
  %v3928 = vsel %vm559, %v3900, 0
  %3930 = vmatpush.bf16.msra.mxu0 0
  %3931 = vmatpush.bf16.msra.mxu0 0
  %3932 = vmatpush.bf16.msra.mxu0 0
  %3933 = vmatpush.bf16.msra.mxu0 0
  %3934 = vmatpush.bf16.msra.mxu0 0
  %3935 = vmatpush.bf16.msra.mxu0 %v3928
  %3936 = vmatpush.bf16.msra.mxu0 %v3899
  %3937 = vmatpush.bf16.msra.mxu0 %v3898
  %3938 = vmatmul.bf16.gmra.mxu0 %v3904
  %v3939 = vpop.f32.mrf.mxu0
  %v3940 = vadd.f32 %v3887, %v3939
  %v3941 = vpop.f32.mrf.mxu0
  %v3942 = vadd.f32 %v3887, %v3941
  %3943 = vmatmul.bf16.gmra.mxu0 %v3907
  %v3944 = vpop.f32.mrf.mxu0
  %v3945 = vadd.f32 %v3887, %v3944
  %v3946 = vpop.f32.mrf.mxu0
  %v3947 = vadd.f32 %v3887, %v3946
  %3948 = vmatmul.bf16.gmra.mxu0 %v3910
  %v3949 = vpop.f32.mrf.mxu0
  %v3950 = vadd.f32 %v3887, %v3949
  %v3951 = vpop.f32.mrf.mxu0
  %v3952 = vadd.f32 %v3887, %v3951
  %3953 = vmatmul.bf16.gmra.mxu0 %v3913
  %v3954 = vpop.f32.mrf.mxu0
  %v3955 = vadd.f32 %v3887, %v3954
  %v3956 = vpop.f32.mrf.mxu0
  %v3957 = vadd.f32 %v3887, %v3956
  %3958 = vmatmul.bf16.gmra.mxu0 %v3916
  %v3959 = vpop.f32.mrf.mxu0
  %v3960 = vadd.f32 %v3887, %v3959
  %v3961 = vpop.f32.mrf.mxu0
  %v3962 = vadd.f32 %v3887, %v3961
  %3963 = vmatmul.bf16.gmra.mxu0 %v3919
  %v3964 = vpop.f32.mrf.mxu0
  %v3965 = vadd.f32 %v3887, %v3964
  %v3966 = vpop.f32.mrf.mxu0
  %v3967 = vadd.f32 %v3887, %v3966
  %3968 = vmatmul.bf16.gmra.mxu0 %v3922
  %v3969 = vpop.f32.mrf.mxu0
  %v3970 = vadd.f32 %v3887, %v3969
  %v3971 = vpop.f32.mrf.mxu0
  %v3972 = vadd.f32 %v3887, %v3971
  %3973 = vmatmul.bf16.gmra.mxu0 %v3925
  %v3974 = vpop.f32.mrf.mxu0
  %v3975 = vadd.f32 %v3887, %v3974
  %v3976 = vpop.f32.mrf.mxu0
  %v3977 = vadd.f32 %v3887, %v3976
  %3978 = vdwg.mxu0
  %v3979 = vsub.f32 0.0, %v3940
  %v3980 = vsub.f32 0.0, %v3942
  %v3981 = vsub.f32 0.0, %v3945
  %v3982 = vsub.f32 0.0, %v3947
  %v3983 = vsub.f32 0.0, %v3950
  %v3984 = vsub.f32 0.0, %v3952
  %v3985 = vsub.f32 0.0, %v3955
  %v3986 = vsub.f32 0.0, %v3957
  %v3987 = vsub.f32 0.0, %v3960
  %v3988 = vsub.f32 0.0, %v3962
  %v3989 = vsub.f32 0.0, %v3965
  %v3990 = vsub.f32 0.0, %v3967
  %v3991 = vsub.f32 0.0, %v3970
  %v3992 = vsub.f32 0.0, %v3972
  %v3993 = vsub.f32 0.0, %v3975
  %v3994 = vsub.f32 0.0, %v3977
  %v3995 = vmul.f32 %v3979, 1.442695
  %v3996 = vpow.pop %v3995
  %v3997 = vmul.f32 %v3980, 1.442695
  %v3998 = vpow.pop %v3997
  %v3999 = vmul.f32 %v3981, 1.442695
  %v4000 = vpow.pop %v3999
  %v4001 = vmul.f32 %v3982, 1.442695
  %v4002 = vpow.pop %v4001
  %v4003 = vmul.f32 %v3983, 1.442695
  %v4004 = vpow.pop %v4003
  %v4005 = vmul.f32 %v3984, 1.442695
  %v4006 = vpow.pop %v4005
  %v4007 = vmul.f32 %v3985, 1.442695
  %v4008 = vpow.pop %v4007
  %v4009 = vmul.f32 %v3986, 1.442695
  %v4010 = vpow.pop %v4009
  %v4011 = vmul.f32 %v3987, 1.442695
  %v4012 = vpow.pop %v4011
  %v4013 = vmul.f32 %v3988, 1.442695
  %v4014 = vpow.pop %v4013
  %v4015 = vmul.f32 %v3989, 1.442695
  %v4016 = vpow.pop %v4015
  %v4017 = vmul.f32 %v3990, 1.442695
  %v4018 = vpow.pop %v4017
  %v4019 = vmul.f32 %v3991, 1.442695
  %v4020 = vpow.pop %v4019
  %v4021 = vmul.f32 %v3992, 1.442695
  %v4022 = vpow.pop %v4021
  %v4023 = vmul.f32 %v3993, 1.442695
  %v4024 = vpow.pop %v4023
  %v4025 = vmul.f32 %v3994, 1.442695
  %v4026 = vpow.pop %v4025
  %v4027 = vadd.f32 %v3996, 1.0
  %v4028 = vadd.f32 %v3998, 1.0
  %v4029 = vadd.f32 %v4000, 1.0
  %v4030 = vadd.f32 %v4002, 1.0
  %v4031 = vadd.f32 %v4004, 1.0
  %v4032 = vadd.f32 %v4006, 1.0
  %v4033 = vadd.f32 %v4008, 1.0
  %v4034 = vadd.f32 %v4010, 1.0
  %v4035 = vadd.f32 %v4012, 1.0
  %v4036 = vadd.f32 %v4014, 1.0
  %v4037 = vadd.f32 %v4016, 1.0
  %v4038 = vadd.f32 %v4018, 1.0
  %v4039 = vadd.f32 %v4020, 1.0
  %v4040 = vadd.f32 %v4022, 1.0
  %v4041 = vadd.f32 %v4024, 1.0
  %v4042 = vadd.f32 %v4026, 1.0
  %v4043 = vrcp.pop %v4027
  %v4044 = vrcp.pop %v4028
  %v4045 = vrcp.pop %v4029
  %v4046 = vrcp.pop %v4030
  %v4047 = vrcp.pop %v4031
  %v4048 = vrcp.pop %v4032
  %v4049 = vrcp.pop %v4033
  %v4050 = vrcp.pop %v4034
  %v4051 = vrcp.pop %v4035
  %v4052 = vrcp.pop %v4036
  %v4053 = vrcp.pop %v4037
  %v4054 = vrcp.pop %v4038
  %v4055 = vrcp.pop %v4039
  %v4056 = vrcp.pop %v4040
  %v4057 = vrcp.pop %v4041
  %v4058 = vrcp.pop %v4042
  %v4059 = vmul.f32 %v3940, %v4043
  %v4060 = vmul.f32 %v3942, %v4044
  %v4061 = vmul.f32 %v3945, %v4045
  %v4062 = vmul.f32 %v3947, %v4046
  %v4063 = vmul.f32 %v3950, %v4047
  %v4064 = vmul.f32 %v3952, %v4048
  %v4065 = vmul.f32 %v3955, %v4049
  %v4066 = vmul.f32 %v3957, %v4050
  %v4067 = vmul.f32 %v3960, %v4051
  %v4068 = vmul.f32 %v3962, %v4052
  %v4069 = vmul.f32 %v3965, %v4053
  %v4070 = vmul.f32 %v3967, %v4054
  %v4071 = vmul.f32 %v3970, %v4055
  %v4072 = vmul.f32 %v3972, %v4056
  %v4073 = vmul.f32 %v3975, %v4057
  %v4074 = vmul.f32 %v3977, %v4058
  %s4075 = scalar_lea.vmem %s5, 100
  %v4076 = vld [vmem:[%s4075] sm:$0xf]
  %v4077 = vld [vmem:[%s4075 + $0x4] sm:$0xf]
  %v4078 = vld [vmem:[%s4075 + $0x8] sm:$0xf]
  %v4079 = vld [vmem:[%s4075 + $0xc] sm:$0xf]
  %v4080 = vld [vmem:[%s4075 + $0x10] sm:$0x3]
  %v4081 = vpack.c.bf16 %v4060, %v4059
  %v4082 = vpack.c.bf16 %v4062, %v4061
  %v4083 = vpack.c.bf16 %v4064, %v4063
  %v4084 = vpack.c.bf16 %v4066, %v4065
  %v4085 = vpack.c.bf16 %v4068, %v4067
  %v4086 = vpack.c.bf16 %v4070, %v4069
  %v4087 = vpack.c.bf16 %v4072, %v4071
  %v4088 = vpack.c.bf16 %v4074, %v4073
  %v4089 = vperm.slane %v504, 6
  %v4095 = vunpack.c.l.b16 %v4076
  %v4096 = vunpack.c.l.b16 %v4077
  %v4097 = vunpack.c.l.b16 %v4078
  %v4098 = vunpack.c.l.b16 %v4079
  %v4099 = vunpack.c.l.b16 %v4080
  %v4100 = vpack.c.b16 %v4096, %v4095
  %v4101 = vpack.c.b16 %v4098, %v4097
  %v4102 = vpack.c.b16 %v4099, %v4099
  %v4106 = vsel %vm534, %v4081, 0
  %v4109 = vsel %vm534, %v4082, 0
  %v4112 = vsel %vm534, %v4083, 0
  %v4115 = vsel %vm534, %v4084, 0
  %v4118 = vsel %vm534, %v4085, 0
  %v4121 = vsel %vm534, %v4086, 0
  %v4124 = vsel %vm534, %v4087, 0
  %v4127 = vsel %vm534, %v4088, 0
  %v4130 = vsel %vm559, %v4102, 0
  %4132 = vmatpush.bf16.msra.mxu0 0
  %4133 = vmatpush.bf16.msra.mxu0 0
  %4134 = vmatpush.bf16.msra.mxu0 0
  %4135 = vmatpush.bf16.msra.mxu0 0
  %4136 = vmatpush.bf16.msra.mxu0 0
  %4137 = vmatpush.bf16.msra.mxu0 %v4130
  %4138 = vmatpush.bf16.msra.mxu0 %v4101
  %4139 = vmatpush.bf16.msra.mxu0 %v4100
  %4140 = vmatmul.bf16.gmra.mxu0 %v4106
  %v4141 = vpop.f32.mrf.mxu0
  %v4142 = vadd.f32 %v4089, %v4141
  %v4143 = vpop.f32.mrf.mxu0
  %v4144 = vadd.f32 %v4089, %v4143
  %4145 = vmatmul.bf16.gmra.mxu0 %v4109
  %v4146 = vpop.f32.mrf.mxu0
  %v4147 = vadd.f32 %v4089, %v4146
  %v4148 = vpop.f32.mrf.mxu0
  %v4149 = vadd.f32 %v4089, %v4148
  %4150 = vmatmul.bf16.gmra.mxu0 %v4112
  %v4151 = vpop.f32.mrf.mxu0
  %v4152 = vadd.f32 %v4089, %v4151
  %v4153 = vpop.f32.mrf.mxu0
  %v4154 = vadd.f32 %v4089, %v4153
  %4155 = vmatmul.bf16.gmra.mxu0 %v4115
  %v4156 = vpop.f32.mrf.mxu0
  %v4157 = vadd.f32 %v4089, %v4156
  %v4158 = vpop.f32.mrf.mxu0
  %v4159 = vadd.f32 %v4089, %v4158
  %4160 = vmatmul.bf16.gmra.mxu0 %v4118
  %v4161 = vpop.f32.mrf.mxu0
  %v4162 = vadd.f32 %v4089, %v4161
  %v4163 = vpop.f32.mrf.mxu0
  %v4164 = vadd.f32 %v4089, %v4163
  %4165 = vmatmul.bf16.gmra.mxu0 %v4121
  %v4166 = vpop.f32.mrf.mxu0
  %v4167 = vadd.f32 %v4089, %v4166
  %v4168 = vpop.f32.mrf.mxu0
  %v4169 = vadd.f32 %v4089, %v4168
  %4170 = vmatmul.bf16.gmra.mxu0 %v4124
  %v4171 = vpop.f32.mrf.mxu0
  %v4172 = vadd.f32 %v4089, %v4171
  %v4173 = vpop.f32.mrf.mxu0
  %v4174 = vadd.f32 %v4089, %v4173
  %4175 = vmatmul.bf16.gmra.mxu0 %v4127
  %v4176 = vpop.f32.mrf.mxu0
  %v4177 = vadd.f32 %v4089, %v4176
  %v4178 = vpop.f32.mrf.mxu0
  %v4179 = vadd.f32 %v4089, %v4178
  %4180 = vdwg.mxu0
  %v4181 = vadd.f32 %v2894, %v4142
  %v4182 = vadd.f32 %v2895, %v4144
  %v4183 = vadd.f32 %v2896, %v4147
  %v4184 = vadd.f32 %v2897, %v4149
  %v4185 = vadd.f32 %v2898, %v4152
  %v4186 = vadd.f32 %v2899, %v4154
  %v4187 = vadd.f32 %v2900, %v4157
  %v4188 = vadd.f32 %v2901, %v4159
  %v4189 = vadd.f32 %v2902, %v4162
  %v4190 = vadd.f32 %v2903, %v4164
  %v4191 = vadd.f32 %v2904, %v4167
  %v4192 = vadd.f32 %v2905, %v4169
  %v4193 = vadd.f32 %v2906, %v4172
  %v4194 = vadd.f32 %v2907, %v4174
  %v4195 = vadd.f32 %v2908, %v4177
  %v4196 = vadd.f32 %v2909, %v4179
  %v4197 = vsub.f32 0.0, %v4181
  %v4198 = vsub.f32 0.0, %v4182
  %v4199 = vsub.f32 0.0, %v4183
  %v4200 = vsub.f32 0.0, %v4184
  %v4201 = vsub.f32 0.0, %v4185
  %v4202 = vsub.f32 0.0, %v4186
  %v4203 = vsub.f32 0.0, %v4187
  %v4204 = vsub.f32 0.0, %v4188
  %v4205 = vsub.f32 0.0, %v4189
  %v4206 = vsub.f32 0.0, %v4190
  %v4207 = vsub.f32 0.0, %v4191
  %v4208 = vsub.f32 0.0, %v4192
  %v4209 = vsub.f32 0.0, %v4193
  %v4210 = vsub.f32 0.0, %v4194
  %v4211 = vsub.f32 0.0, %v4195
  %v4212 = vsub.f32 0.0, %v4196
  %v4213 = vmul.f32 %v4197, 1.442695
  %v4214 = vpow.pop %v4213
  %v4215 = vmul.f32 %v4198, 1.442695
  %v4216 = vpow.pop %v4215
  %v4217 = vmul.f32 %v4199, 1.442695
  %v4218 = vpow.pop %v4217
  %v4219 = vmul.f32 %v4200, 1.442695
  %v4220 = vpow.pop %v4219
  %v4221 = vmul.f32 %v4201, 1.442695
  %v4222 = vpow.pop %v4221
  %v4223 = vmul.f32 %v4202, 1.442695
  %v4224 = vpow.pop %v4223
  %v4225 = vmul.f32 %v4203, 1.442695
  %v4226 = vpow.pop %v4225
  %v4227 = vmul.f32 %v4204, 1.442695
  %v4228 = vpow.pop %v4227
  %v4229 = vmul.f32 %v4205, 1.442695
  %v4230 = vpow.pop %v4229
  %v4231 = vmul.f32 %v4206, 1.442695
  %v4232 = vpow.pop %v4231
  %v4233 = vmul.f32 %v4207, 1.442695
  %v4234 = vpow.pop %v4233
  %v4235 = vmul.f32 %v4208, 1.442695
  %v4236 = vpow.pop %v4235
  %v4237 = vmul.f32 %v4209, 1.442695
  %v4238 = vpow.pop %v4237
  %v4239 = vmul.f32 %v4210, 1.442695
  %v4240 = vpow.pop %v4239
  %v4241 = vmul.f32 %v4211, 1.442695
  %v4242 = vpow.pop %v4241
  %v4243 = vmul.f32 %v4212, 1.442695
  %v4244 = vpow.pop %v4243
  %v4245 = vadd.f32 %v4214, 1.0
  %v4246 = vadd.f32 %v4216, 1.0
  %v4247 = vadd.f32 %v4218, 1.0
  %v4248 = vadd.f32 %v4220, 1.0
  %v4249 = vadd.f32 %v4222, 1.0
  %v4250 = vadd.f32 %v4224, 1.0
  %v4251 = vadd.f32 %v4226, 1.0
  %v4252 = vadd.f32 %v4228, 1.0
  %v4253 = vadd.f32 %v4230, 1.0
  %v4254 = vadd.f32 %v4232, 1.0
  %v4255 = vadd.f32 %v4234, 1.0
  %v4256 = vadd.f32 %v4236, 1.0
  %v4257 = vadd.f32 %v4238, 1.0
  %v4258 = vadd.f32 %v4240, 1.0
  %v4259 = vadd.f32 %v4242, 1.0
  %v4260 = vadd.f32 %v4244, 1.0
  %v4261 = vrcp.pop %v4245
  %v4262 = vrcp.pop %v4246
  %v4263 = vrcp.pop %v4247
  %v4264 = vrcp.pop %v4248
  %v4265 = vrcp.pop %v4249
  %v4266 = vrcp.pop %v4250
  %v4267 = vrcp.pop %v4251
  %v4268 = vrcp.pop %v4252
  %v4269 = vrcp.pop %v4253
  %v4270 = vrcp.pop %v4254
  %v4271 = vrcp.pop %v4255
  %v4272 = vrcp.pop %v4256
  %v4273 = vrcp.pop %v4257
  %v4274 = vrcp.pop %v4258
  %v4275 = vrcp.pop %v4259
  %v4276 = vrcp.pop %v4260
  %v4277 = vmul.f32 %v4181, %v4261
  %v4278 = vmul.f32 %v4182, %v4262
  %v4279 = vmul.f32 %v4183, %v4263
  %v4280 = vmul.f32 %v4184, %v4264
  %v4281 = vmul.f32 %v4185, %v4265
  %v4282 = vmul.f32 %v4186, %v4266
  %v4283 = vmul.f32 %v4187, %v4267
  %v4284 = vmul.f32 %v4188, %v4268
  %v4285 = vmul.f32 %v4189, %v4269
  %v4286 = vmul.f32 %v4190, %v4270
  %v4287 = vmul.f32 %v4191, %v4271
  %v4288 = vmul.f32 %v4192, %v4272
  %v4289 = vmul.f32 %v4193, %v4273
  %v4290 = vmul.f32 %v4194, %v4274
  %v4291 = vmul.f32 %v4195, %v4275
  %v4292 = vmul.f32 %v4196, %v4276
  %s4293 = scalar_lea.vmem %s5, 200
  %v4294 = vld [vmem:[%s4293] sm:$0xf]
  %v4295 = vld [vmem:[%s4293 + $0x4] sm:$0xf]
  %v4296 = vld [vmem:[%s4293 + $0x8] sm:$0xf]
  %v4297 = vld [vmem:[%s4293 + $0xc] sm:$0xf]
  %v4298 = vld [vmem:[%s4293 + $0x10] sm:$0x3]
  %v4299 = vpack.c.bf16 %v4278, %v4277
  %v4300 = vpack.c.bf16 %v4280, %v4279
  %v4301 = vpack.c.bf16 %v4282, %v4281
  %v4302 = vpack.c.bf16 %v4284, %v4283
  %v4303 = vpack.c.bf16 %v4286, %v4285
  %v4304 = vpack.c.bf16 %v4288, %v4287
  %v4305 = vpack.c.bf16 %v4290, %v4289
  %v4306 = vpack.c.bf16 %v4292, %v4291
  %v4307 = vperm.slane %v1826, 5
  %v4313 = vunpack.c.l.b16 %v4294
  %v4314 = vunpack.c.l.b16 %v4295
  %v4315 = vunpack.c.l.b16 %v4296
  %v4316 = vunpack.c.l.b16 %v4297
  %v4317 = vunpack.c.l.b16 %v4298
  %v4318 = vpack.c.b16 %v4314, %v4313
  %v4319 = vpack.c.b16 %v4316, %v4315
  %v4320 = vpack.c.b16 %v4317, %v4317
  %v4324 = vsel %vm534, %v4299, 0
  %v4327 = vsel %vm534, %v4300, 0
  %v4330 = vsel %vm534, %v4301, 0
  %v4333 = vsel %vm534, %v4302, 0
  %v4336 = vsel %vm534, %v4303, 0
  %v4339 = vsel %vm534, %v4304, 0
  %v4342 = vsel %vm534, %v4305, 0
  %v4345 = vsel %vm534, %v4306, 0
  %v4348 = vsel %vm559, %v4320, 0
  %4350 = vmatpush.bf16.msra.mxu0 0
  %4351 = vmatpush.bf16.msra.mxu0 0
  %4352 = vmatpush.bf16.msra.mxu0 0
  %4353 = vmatpush.bf16.msra.mxu0 0
  %4354 = vmatpush.bf16.msra.mxu0 0
  %4355 = vmatpush.bf16.msra.mxu0 %v4348
  %4356 = vmatpush.bf16.msra.mxu0 %v4319
  %4357 = vmatpush.bf16.msra.mxu0 %v4318
  %4358 = vmatmul.bf16.gmra.mxu0 %v4324
  %v4359 = vpop.f32.mrf.mxu0
  %v4360 = vadd.f32 %v4307, %v4359
  %v4361 = vpop.f32.mrf.mxu0
  %v4362 = vadd.f32 %v4307, %v4361
  %4363 = vmatmul.bf16.gmra.mxu0 %v4327
  %v4364 = vpop.f32.mrf.mxu0
  %v4365 = vadd.f32 %v4307, %v4364
  %v4366 = vpop.f32.mrf.mxu0
  %v4367 = vadd.f32 %v4307, %v4366
  %4368 = vmatmul.bf16.gmra.mxu0 %v4330
  %v4369 = vpop.f32.mrf.mxu0
  %v4370 = vadd.f32 %v4307, %v4369
  %v4371 = vpop.f32.mrf.mxu0
  %v4372 = vadd.f32 %v4307, %v4371
  %4373 = vmatmul.bf16.gmra.mxu0 %v4333
  %v4374 = vpop.f32.mrf.mxu0
  %v4375 = vadd.f32 %v4307, %v4374
  %v4376 = vpop.f32.mrf.mxu0
  %v4377 = vadd.f32 %v4307, %v4376
  %4378 = vmatmul.bf16.gmra.mxu0 %v4336
  %v4379 = vpop.f32.mrf.mxu0
  %v4380 = vadd.f32 %v4307, %v4379
  %v4381 = vpop.f32.mrf.mxu0
  %v4382 = vadd.f32 %v4307, %v4381
  %4383 = vmatmul.bf16.gmra.mxu0 %v4339
  %v4384 = vpop.f32.mrf.mxu0
  %v4385 = vadd.f32 %v4307, %v4384
  %v4386 = vpop.f32.mrf.mxu0
  %v4387 = vadd.f32 %v4307, %v4386
  %4388 = vmatmul.bf16.gmra.mxu0 %v4342
  %v4389 = vpop.f32.mrf.mxu0
  %v4390 = vadd.f32 %v4307, %v4389
  %v4391 = vpop.f32.mrf.mxu0
  %v4392 = vadd.f32 %v4307, %v4391
  %4393 = vmatmul.bf16.gmra.mxu0 %v4345
  %v4394 = vpop.f32.mrf.mxu0
  %v4395 = vadd.f32 %v4307, %v4394
  %v4396 = vpop.f32.mrf.mxu0
  %v4397 = vadd.f32 %v4307, %v4396
  %4398 = vdwg.mxu0
  %v4399 = vsub.f32 0.0, %v4360
  %v4400 = vsub.f32 0.0, %v4362
  %v4401 = vsub.f32 0.0, %v4365
  %v4402 = vsub.f32 0.0, %v4367
  %v4403 = vsub.f32 0.0, %v4370
  %v4404 = vsub.f32 0.0, %v4372
  %v4405 = vsub.f32 0.0, %v4375
  %v4406 = vsub.f32 0.0, %v4377
  %v4407 = vsub.f32 0.0, %v4380
  %v4408 = vsub.f32 0.0, %v4382
  %v4409 = vsub.f32 0.0, %v4385
  %v4410 = vsub.f32 0.0, %v4387
  %v4411 = vsub.f32 0.0, %v4390
  %v4412 = vsub.f32 0.0, %v4392
  %v4413 = vsub.f32 0.0, %v4395
  %v4414 = vsub.f32 0.0, %v4397
  %v4415 = vmul.f32 %v4399, 1.442695
  %v4416 = vpow.pop %v4415
  %v4417 = vmul.f32 %v4400, 1.442695
  %v4418 = vpow.pop %v4417
  %v4419 = vmul.f32 %v4401, 1.442695
  %v4420 = vpow.pop %v4419
  %v4421 = vmul.f32 %v4402, 1.442695
  %v4422 = vpow.pop %v4421
  %v4423 = vmul.f32 %v4403, 1.442695
  %v4424 = vpow.pop %v4423
  %v4425 = vmul.f32 %v4404, 1.442695
  %v4426 = vpow.pop %v4425
  %v4427 = vmul.f32 %v4405, 1.442695
  %v4428 = vpow.pop %v4427
  %v4429 = vmul.f32 %v4406, 1.442695
  %v4430 = vpow.pop %v4429
  %v4431 = vmul.f32 %v4407, 1.442695
  %v4432 = vpow.pop %v4431
  %v4433 = vmul.f32 %v4408, 1.442695
  %v4434 = vpow.pop %v4433
  %v4435 = vmul.f32 %v4409, 1.442695
  %v4436 = vpow.pop %v4435
  %v4437 = vmul.f32 %v4410, 1.442695
  %v4438 = vpow.pop %v4437
  %v4439 = vmul.f32 %v4411, 1.442695
  %v4440 = vpow.pop %v4439
  %v4441 = vmul.f32 %v4412, 1.442695
  %v4442 = vpow.pop %v4441
  %v4443 = vmul.f32 %v4413, 1.442695
  %v4444 = vpow.pop %v4443
  %v4445 = vmul.f32 %v4414, 1.442695
  %v4446 = vpow.pop %v4445
  %v4447 = vadd.f32 %v4416, 1.0
  %v4448 = vadd.f32 %v4418, 1.0
  %v4449 = vadd.f32 %v4420, 1.0
  %v4450 = vadd.f32 %v4422, 1.0
  %v4451 = vadd.f32 %v4424, 1.0
  %v4452 = vadd.f32 %v4426, 1.0
  %v4453 = vadd.f32 %v4428, 1.0
  %v4454 = vadd.f32 %v4430, 1.0
  %v4455 = vadd.f32 %v4432, 1.0
  %v4456 = vadd.f32 %v4434, 1.0
  %v4457 = vadd.f32 %v4436, 1.0
  %v4458 = vadd.f32 %v4438, 1.0
  %v4459 = vadd.f32 %v4440, 1.0
  %v4460 = vadd.f32 %v4442, 1.0
  %v4461 = vadd.f32 %v4444, 1.0
  %v4462 = vadd.f32 %v4446, 1.0
  %v4463 = vrcp.pop %v4447
  %v4464 = vrcp.pop %v4448
  %v4465 = vrcp.pop %v4449
  %v4466 = vrcp.pop %v4450
  %v4467 = vrcp.pop %v4451
  %v4468 = vrcp.pop %v4452
  %v4469 = vrcp.pop %v4453
  %v4470 = vrcp.pop %v4454
  %v4471 = vrcp.pop %v4455
  %v4472 = vrcp.pop %v4456
  %v4473 = vrcp.pop %v4457
  %v4474 = vrcp.pop %v4458
  %v4475 = vrcp.pop %v4459
  %v4476 = vrcp.pop %v4460
  %v4477 = vrcp.pop %v4461
  %v4478 = vrcp.pop %v4462
  %v4479 = vmul.f32 %v4360, %v4463
  %v4480 = vmul.f32 %v4362, %v4464
  %v4481 = vmul.f32 %v4365, %v4465
  %v4482 = vmul.f32 %v4367, %v4466
  %v4483 = vmul.f32 %v4370, %v4467
  %v4484 = vmul.f32 %v4372, %v4468
  %v4485 = vmul.f32 %v4375, %v4469
  %v4486 = vmul.f32 %v4377, %v4470
  %v4487 = vmul.f32 %v4380, %v4471
  %v4488 = vmul.f32 %v4382, %v4472
  %v4489 = vmul.f32 %v4385, %v4473
  %v4490 = vmul.f32 %v4387, %v4474
  %v4491 = vmul.f32 %v4390, %v4475
  %v4492 = vmul.f32 %v4392, %v4476
  %v4493 = vmul.f32 %v4395, %v4477
  %v4494 = vmul.f32 %v4397, %v4478
  %s4495 = scalar_lea.vmem %s5, 220
  %v4496 = vld [vmem:[%s4495] sm:$0xf]
  %v4497 = vld [vmem:[%s4495 + $0x4] sm:$0xf]
  %v4498 = vld [vmem:[%s4495 + $0x8] sm:$0xf]
  %v4499 = vld [vmem:[%s4495 + $0xc] sm:$0xf]
  %v4500 = vld [vmem:[%s4495 + $0x10] sm:$0x3]
  %v4501 = vpack.c.bf16 %v4480, %v4479
  %v4502 = vpack.c.bf16 %v4482, %v4481
  %v4503 = vpack.c.bf16 %v4484, %v4483
  %v4504 = vpack.c.bf16 %v4486, %v4485
  %v4505 = vpack.c.bf16 %v4488, %v4487
  %v4506 = vpack.c.bf16 %v4490, %v4489
  %v4507 = vpack.c.bf16 %v4492, %v4491
  %v4508 = vpack.c.bf16 %v4494, %v4493
  %v4509 = vperm.slane %v1826, 6
  %v4515 = vunpack.c.l.b16 %v4496
  %v4516 = vunpack.c.l.b16 %v4497
  %v4517 = vunpack.c.l.b16 %v4498
  %v4518 = vunpack.c.l.b16 %v4499
  %v4519 = vunpack.c.l.b16 %v4500
  %v4520 = vpack.c.b16 %v4516, %v4515
  %v4521 = vpack.c.b16 %v4518, %v4517
  %v4522 = vpack.c.b16 %v4519, %v4519
  %v4526 = vsel %vm534, %v4501, 0
  %v4529 = vsel %vm534, %v4502, 0
  %v4532 = vsel %vm534, %v4503, 0
  %v4535 = vsel %vm534, %v4504, 0
  %v4538 = vsel %vm534, %v4505, 0
  %v4541 = vsel %vm534, %v4506, 0
  %v4544 = vsel %vm534, %v4507, 0
  %v4547 = vsel %vm534, %v4508, 0
  %v4550 = vsel %vm559, %v4522, 0
  %4552 = vmatpush.bf16.msra.mxu0 0
  %4553 = vmatpush.bf16.msra.mxu0 0
  %4554 = vmatpush.bf16.msra.mxu0 0
  %4555 = vmatpush.bf16.msra.mxu0 0
  %4556 = vmatpush.bf16.msra.mxu0 0
  %4557 = vmatpush.bf16.msra.mxu0 %v4550
  %4558 = vmatpush.bf16.msra.mxu0 %v4521
  %4559 = vmatpush.bf16.msra.mxu0 %v4520
  %4560 = vmatmul.bf16.gmra.mxu0 %v4526
  %v4561 = vpop.f32.mrf.mxu0
  %v4562 = vadd.f32 %v4509, %v4561
  %v4563 = vpop.f32.mrf.mxu0
  %v4564 = vadd.f32 %v4509, %v4563
  %4565 = vmatmul.bf16.gmra.mxu0 %v4529
  %v4566 = vpop.f32.mrf.mxu0
  %v4567 = vadd.f32 %v4509, %v4566
  %v4568 = vpop.f32.mrf.mxu0
  %v4569 = vadd.f32 %v4509, %v4568
  %4570 = vmatmul.bf16.gmra.mxu0 %v4532
  %v4571 = vpop.f32.mrf.mxu0
  %v4572 = vadd.f32 %v4509, %v4571
  %v4573 = vpop.f32.mrf.mxu0
  %v4574 = vadd.f32 %v4509, %v4573
  %4575 = vmatmul.bf16.gmra.mxu0 %v4535
  %v4576 = vpop.f32.mrf.mxu0
  %v4577 = vadd.f32 %v4509, %v4576
  %v4578 = vpop.f32.mrf.mxu0
  %v4579 = vadd.f32 %v4509, %v4578
  %4580 = vmatmul.bf16.gmra.mxu0 %v4538
  %v4581 = vpop.f32.mrf.mxu0
  %v4582 = vadd.f32 %v4509, %v4581
  %v4583 = vpop.f32.mrf.mxu0
  %v4584 = vadd.f32 %v4509, %v4583
  %4585 = vmatmul.bf16.gmra.mxu0 %v4541
  %v4586 = vpop.f32.mrf.mxu0
  %v4587 = vadd.f32 %v4509, %v4586
  %v4588 = vpop.f32.mrf.mxu0
  %v4589 = vadd.f32 %v4509, %v4588
  %4590 = vmatmul.bf16.gmra.mxu0 %v4544
  %v4591 = vpop.f32.mrf.mxu0
  %v4592 = vadd.f32 %v4509, %v4591
  %v4593 = vpop.f32.mrf.mxu0
  %v4594 = vadd.f32 %v4509, %v4593
  %4595 = vmatmul.bf16.gmra.mxu0 %v4547
  %v4596 = vpop.f32.mrf.mxu0
  %v4597 = vadd.f32 %v4509, %v4596
  %v4598 = vpop.f32.mrf.mxu0
  %v4599 = vadd.f32 %v4509, %v4598
  %4600 = vdwg.mxu0
  %v4601 = vadd.f32 %v4181, %v4562
  %v4602 = vadd.f32 %v4182, %v4564
  %v4603 = vadd.f32 %v4183, %v4567
  %v4604 = vadd.f32 %v4184, %v4569
  %v4605 = vadd.f32 %v4185, %v4572
  %v4606 = vadd.f32 %v4186, %v4574
  %v4607 = vadd.f32 %v4187, %v4577
  %v4608 = vadd.f32 %v4188, %v4579
  %v4609 = vadd.f32 %v4189, %v4582
  %v4610 = vadd.f32 %v4190, %v4584
  %v4611 = vadd.f32 %v4191, %v4587
  %v4612 = vadd.f32 %v4192, %v4589
  %v4613 = vadd.f32 %v4193, %v4592
  %v4614 = vadd.f32 %v4194, %v4594
  %v4615 = vadd.f32 %v4195, %v4597
  %v4616 = vadd.f32 %v4196, %v4599
  %v4617 = vsub.f32 0.0, %v4601
  %v4618 = vsub.f32 0.0, %v4602
  %v4619 = vsub.f32 0.0, %v4603
  %v4620 = vsub.f32 0.0, %v4604
  %v4621 = vsub.f32 0.0, %v4605
  %v4622 = vsub.f32 0.0, %v4606
  %v4623 = vsub.f32 0.0, %v4607
  %v4624 = vsub.f32 0.0, %v4608
  %v4625 = vsub.f32 0.0, %v4609
  %v4626 = vsub.f32 0.0, %v4610
  %v4627 = vsub.f32 0.0, %v4611
  %v4628 = vsub.f32 0.0, %v4612
  %v4629 = vsub.f32 0.0, %v4613
  %v4630 = vsub.f32 0.0, %v4614
  %v4631 = vsub.f32 0.0, %v4615
  %v4632 = vsub.f32 0.0, %v4616
  %v4633 = vmul.f32 %v4617, 1.442695
  %v4634 = vpow.pop %v4633
  %v4635 = vmul.f32 %v4618, 1.442695
  %v4636 = vpow.pop %v4635
  %v4637 = vmul.f32 %v4619, 1.442695
  %v4638 = vpow.pop %v4637
  %v4639 = vmul.f32 %v4620, 1.442695
  %v4640 = vpow.pop %v4639
  %v4641 = vmul.f32 %v4621, 1.442695
  %v4642 = vpow.pop %v4641
  %v4643 = vmul.f32 %v4622, 1.442695
  %v4644 = vpow.pop %v4643
  %v4645 = vmul.f32 %v4623, 1.442695
  %v4646 = vpow.pop %v4645
  %v4647 = vmul.f32 %v4624, 1.442695
  %v4648 = vpow.pop %v4647
  %v4649 = vmul.f32 %v4625, 1.442695
  %v4650 = vpow.pop %v4649
  %v4651 = vmul.f32 %v4626, 1.442695
  %v4652 = vpow.pop %v4651
  %v4653 = vmul.f32 %v4627, 1.442695
  %v4654 = vpow.pop %v4653
  %v4655 = vmul.f32 %v4628, 1.442695
  %v4656 = vpow.pop %v4655
  %v4657 = vmul.f32 %v4629, 1.442695
  %v4658 = vpow.pop %v4657
  %v4659 = vmul.f32 %v4630, 1.442695
  %v4660 = vpow.pop %v4659
  %v4661 = vmul.f32 %v4631, 1.442695
  %v4662 = vpow.pop %v4661
  %v4663 = vmul.f32 %v4632, 1.442695
  %v4664 = vpow.pop %v4663
  %v4665 = vadd.f32 %v4634, 1.0
  %v4666 = vadd.f32 %v4636, 1.0
  %v4667 = vadd.f32 %v4638, 1.0
  %v4668 = vadd.f32 %v4640, 1.0
  %v4669 = vadd.f32 %v4642, 1.0
  %v4670 = vadd.f32 %v4644, 1.0
  %v4671 = vadd.f32 %v4646, 1.0
  %v4672 = vadd.f32 %v4648, 1.0
  %v4673 = vadd.f32 %v4650, 1.0
  %v4674 = vadd.f32 %v4652, 1.0
  %v4675 = vadd.f32 %v4654, 1.0
  %v4676 = vadd.f32 %v4656, 1.0
  %v4677 = vadd.f32 %v4658, 1.0
  %v4678 = vadd.f32 %v4660, 1.0
  %v4679 = vadd.f32 %v4662, 1.0
  %v4680 = vadd.f32 %v4664, 1.0
  %v4681 = vrcp.pop %v4665
  %v4682 = vrcp.pop %v4666
  %v4683 = vrcp.pop %v4667
  %v4684 = vrcp.pop %v4668
  %v4685 = vrcp.pop %v4669
  %v4686 = vrcp.pop %v4670
  %v4687 = vrcp.pop %v4671
  %v4688 = vrcp.pop %v4672
  %v4689 = vrcp.pop %v4673
  %v4690 = vrcp.pop %v4674
  %v4691 = vrcp.pop %v4675
  %v4692 = vrcp.pop %v4676
  %v4693 = vrcp.pop %v4677
  %v4694 = vrcp.pop %v4678
  %v4695 = vrcp.pop %v4679
  %v4696 = vrcp.pop %v4680
  %v4697 = vmul.f32 %v4601, %v4681
  %v4698 = vmul.f32 %v4602, %v4682
  %v4699 = vmul.f32 %v4603, %v4683
  %v4700 = vmul.f32 %v4604, %v4684
  %v4701 = vmul.f32 %v4605, %v4685
  %v4702 = vmul.f32 %v4606, %v4686
  %v4703 = vmul.f32 %v4607, %v4687
  %v4704 = vmul.f32 %v4608, %v4688
  %v4705 = vmul.f32 %v4609, %v4689
  %v4706 = vmul.f32 %v4610, %v4690
  %v4707 = vmul.f32 %v4611, %v4691
  %v4708 = vmul.f32 %v4612, %v4692
  %v4709 = vmul.f32 %v4613, %v4693
  %v4710 = vmul.f32 %v4614, %v4694
  %v4711 = vmul.f32 %v4615, %v4695
  %v4712 = vmul.f32 %v4616, %v4696
  %v4713 = vld [vmem:[%s17] sm:$0xff]
  %v4714 = vld [vmem:[%s17 + $0x8] sm:$0xff]
  %v4715 = vld [vmem:[%s17 + $0x10] sm:$0xff]
  %v4716 = vld [vmem:[%s17 + $0x18] sm:$0xff]
  %v4717 = vld [vmem:[%s17 + $0x20] sm:$0xf]
  %v4718 = vld [vmem:[%s18] sm:$0x1]
  %v4720 = vperm.slane %v4718, 0
  %v4723 = vsel %vm534, %v4697, 0
  %v4726 = vsel %vm534, %v4698, 0
  %v4729 = vsel %vm534, %v4699, 0
  %v4732 = vsel %vm534, %v4700, 0
  %v4735 = vsel %vm534, %v4701, 0
  %v4738 = vsel %vm534, %v4702, 0
  %v4741 = vsel %vm534, %v4703, 0
  %v4744 = vsel %vm534, %v4704, 0
  %v4747 = vsel %vm534, %v4705, 0
  %v4750 = vsel %vm534, %v4706, 0
  %v4753 = vsel %vm534, %v4707, 0
  %v4756 = vsel %vm534, %v4708, 0
  %v4759 = vsel %vm534, %v4709, 0
  %v4762 = vsel %vm534, %v4710, 0
  %v4765 = vsel %vm534, %v4711, 0
  %v4768 = vsel %vm534, %v4712, 0
  %v4771 = vsel %vm969, %v4717, 0
  %4773 = vmatpush.msra.mxu0 0.0
  %4774 = vmatpush.msra.mxu0 0.0
  %4775 = vmatpush.msra.mxu0 0.0
  %4776 = vmatpush.msra.mxu0 0.0
  %4777 = vmatpush.msra.mxu0 0.0
  %4778 = vmatpush.msra.mxu0 0.0
  %4779 = vmatpush.msra.mxu0 0.0
  %4780 = vmatpush.msra.mxu0 0.0
  %4781 = vmatpush.msra.mxu0 0.0
  %4782 = vmatpush.msra.mxu0 0.0
  %4783 = vmatpush.msra.mxu0 0.0
  %4784 = vmatpush.msra.mxu0 %v4771
  %4785 = vmatpush.msra.mxu0 %v4716
  %4786 = vmatpush.msra.mxu0 %v4715
  %4787 = vmatpush.msra.mxu0 %v4714
  %4788 = vmatpush.msra.mxu0 %v4713
  %4789 = vmatmul.f32.gmra.mxu0 %v4723
  %v4790 = vpop.f32.mrf.mxu0
  %v4791 = vadd.f32 %v4720, %v4790
  %4792 = vmatmul.f32.gmra.mxu0 %v4726
  %v4793 = vpop.f32.mrf.mxu0
  %v4794 = vadd.f32 %v4720, %v4793
  %4795 = vmatmul.f32.gmra.mxu0 %v4729
  %v4796 = vpop.f32.mrf.mxu0
  %v4797 = vadd.f32 %v4720, %v4796
  %4798 = vmatmul.f32.gmra.mxu0 %v4732
  %v4799 = vpop.f32.mrf.mxu0
  %v4800 = vadd.f32 %v4720, %v4799
  %4801 = vmatmul.f32.gmra.mxu0 %v4735
  %v4802 = vpop.f32.mrf.mxu0
  %v4803 = vadd.f32 %v4720, %v4802
  %4804 = vmatmul.f32.gmra.mxu0 %v4738
  %v4805 = vpop.f32.mrf.mxu0
  %v4806 = vadd.f32 %v4720, %v4805
  %4807 = vmatmul.f32.gmra.mxu0 %v4741
  %v4808 = vpop.f32.mrf.mxu0
  %v4809 = vadd.f32 %v4720, %v4808
  %4810 = vmatmul.f32.gmra.mxu0 %v4744
  %v4811 = vpop.f32.mrf.mxu0
  %v4812 = vadd.f32 %v4720, %v4811
  %4813 = vmatmul.f32.gmra.mxu0 %v4747
  %v4814 = vpop.f32.mrf.mxu0
  %v4815 = vadd.f32 %v4720, %v4814
  %4816 = vmatmul.f32.gmra.mxu0 %v4750
  %v4817 = vpop.f32.mrf.mxu0
  %v4818 = vadd.f32 %v4720, %v4817
  %4819 = vmatmul.f32.gmra.mxu0 %v4753
  %v4820 = vpop.f32.mrf.mxu0
  %v4821 = vadd.f32 %v4720, %v4820
  %4822 = vmatmul.f32.gmra.mxu0 %v4756
  %v4823 = vpop.f32.mrf.mxu0
  %v4824 = vadd.f32 %v4720, %v4823
  %4825 = vmatmul.f32.gmra.mxu0 %v4759
  %v4826 = vpop.f32.mrf.mxu0
  %v4827 = vadd.f32 %v4720, %v4826
  %4828 = vmatmul.f32.gmra.mxu0 %v4762
  %v4829 = vpop.f32.mrf.mxu0
  %v4830 = vadd.f32 %v4720, %v4829
  %4831 = vmatmul.f32.gmra.mxu0 %v4765
  %v4832 = vpop.f32.mrf.mxu0
  %v4833 = vadd.f32 %v4720, %v4832
  %4834 = vmatmul.f32.gmra.mxu0 %v4768
  %v4835 = vpop.f32.mrf.mxu0
  %v4836 = vadd.f32 %v4720, %v4835
  %4837 = vdwg.mxu0
  %v4838 = vsub.f32 0.0, %v4791
  %v4839 = vsub.f32 0.0, %v4794
  %v4840 = vsub.f32 0.0, %v4797
  %v4841 = vsub.f32 0.0, %v4800
  %v4842 = vsub.f32 0.0, %v4803
  %v4843 = vsub.f32 0.0, %v4806
  %v4844 = vsub.f32 0.0, %v4809
  %v4845 = vsub.f32 0.0, %v4812
  %v4846 = vsub.f32 0.0, %v4815
  %v4847 = vsub.f32 0.0, %v4818
  %v4848 = vsub.f32 0.0, %v4821
  %v4849 = vsub.f32 0.0, %v4824
  %v4850 = vsub.f32 0.0, %v4827
  %v4851 = vsub.f32 0.0, %v4830
  %v4852 = vsub.f32 0.0, %v4833
  %v4853 = vsub.f32 0.0, %v4836
  %v4854 = vmul.f32 %v4838, 1.442695
  %v4855 = vpow.pop %v4854
  %v4856 = vmul.f32 %v4839, 1.442695
  %v4857 = vpow.pop %v4856
  %v4858 = vmul.f32 %v4840, 1.442695
  %v4859 = vpow.pop %v4858
  %v4860 = vmul.f32 %v4841, 1.442695
  %v4861 = vpow.pop %v4860
  %v4862 = vmul.f32 %v4842, 1.442695
  %v4863 = vpow.pop %v4862
  %v4864 = vmul.f32 %v4843, 1.442695
  %v4865 = vpow.pop %v4864
  %v4866 = vmul.f32 %v4844, 1.442695
  %v4867 = vpow.pop %v4866
  %v4868 = vmul.f32 %v4845, 1.442695
  %v4869 = vpow.pop %v4868
  %v4870 = vmul.f32 %v4846, 1.442695
  %v4871 = vpow.pop %v4870
  %v4872 = vmul.f32 %v4847, 1.442695
  %v4873 = vpow.pop %v4872
  %v4874 = vmul.f32 %v4848, 1.442695
  %v4875 = vpow.pop %v4874
  %v4876 = vmul.f32 %v4849, 1.442695
  %v4877 = vpow.pop %v4876
  %v4878 = vmul.f32 %v4850, 1.442695
  %v4879 = vpow.pop %v4878
  %v4880 = vmul.f32 %v4851, 1.442695
  %v4881 = vpow.pop %v4880
  %v4882 = vmul.f32 %v4852, 1.442695
  %v4883 = vpow.pop %v4882
  %v4884 = vmul.f32 %v4853, 1.442695
  %v4885 = vpow.pop %v4884
  %v4886 = vadd.f32 %v4855, 1.0
  %v4887 = vadd.f32 %v4857, 1.0
  %v4888 = vadd.f32 %v4859, 1.0
  %v4889 = vadd.f32 %v4861, 1.0
  %v4890 = vadd.f32 %v4863, 1.0
  %v4891 = vadd.f32 %v4865, 1.0
  %v4892 = vadd.f32 %v4867, 1.0
  %v4893 = vadd.f32 %v4869, 1.0
  %v4894 = vadd.f32 %v4871, 1.0
  %v4895 = vadd.f32 %v4873, 1.0
  %v4896 = vadd.f32 %v4875, 1.0
  %v4897 = vadd.f32 %v4877, 1.0
  %v4898 = vadd.f32 %v4879, 1.0
  %v4899 = vadd.f32 %v4881, 1.0
  %v4900 = vadd.f32 %v4883, 1.0
  %v4901 = vadd.f32 %v4885, 1.0
  %v4902 = vrcp.pop %v4886
  %v4903 = vrcp.pop %v4887
  %v4904 = vrcp.pop %v4888
  %v4905 = vrcp.pop %v4889
  %v4906 = vrcp.pop %v4890
  %v4907 = vrcp.pop %v4891
  %v4908 = vrcp.pop %v4892
  %v4909 = vrcp.pop %v4893
  %v4910 = vrcp.pop %v4894
  %v4911 = vrcp.pop %v4895
  %v4912 = vrcp.pop %v4896
  %v4913 = vrcp.pop %v4897
  %v4914 = vrcp.pop %v4898
  %v4915 = vrcp.pop %v4899
  %v4916 = vrcp.pop %v4900
  %v4917 = vrcp.pop %v4901
  %v4918 = vmul.f32 %v4791, %v4902
  %v4919 = vmul.f32 %v4794, %v4903
  %v4920 = vmul.f32 %v4797, %v4904
  %v4921 = vmul.f32 %v4800, %v4905
  %v4922 = vmul.f32 %v4803, %v4906
  %v4923 = vmul.f32 %v4806, %v4907
  %v4924 = vmul.f32 %v4809, %v4908
  %v4925 = vmul.f32 %v4812, %v4909
  %v4926 = vmul.f32 %v4815, %v4910
  %v4927 = vmul.f32 %v4818, %v4911
  %v4928 = vmul.f32 %v4821, %v4912
  %v4929 = vmul.f32 %v4824, %v4913
  %v4930 = vmul.f32 %v4827, %v4914
  %v4931 = vmul.f32 %v4830, %v4915
  %v4932 = vmul.f32 %v4833, %v4916
  %v4933 = vmul.f32 %v4836, %v4917
  %v4934 = vld [vmem:[%s19] sm:$0xff]
  %v4935 = vld [vmem:[%s19 + $0x8] sm:$0x3]
  %v4936 = vld [vmem:[%s20] sm:$0x1]
  %v4938 = vperm.slane %v4936, 0
  %vm4940 = vcmask 80896
  %v4942 = vsel %vm4940, %v4918, 0
  %v4945 = vsel %vm4940, %v4919, 0
  %v4948 = vsel %vm4940, %v4920, 0
  %v4951 = vsel %vm4940, %v4921, 0
  %v4954 = vsel %vm4940, %v4922, 0
  %v4957 = vsel %vm4940, %v4923, 0
  %v4960 = vsel %vm4940, %v4924, 0
  %v4963 = vsel %vm4940, %v4925, 0
  %v4966 = vsel %vm4940, %v4926, 0
  %v4969 = vsel %vm4940, %v4927, 0
  %v4972 = vsel %vm4940, %v4928, 0
  %v4975 = vsel %vm4940, %v4929, 0
  %v4978 = vsel %vm4940, %v4930, 0
  %v4981 = vsel %vm4940, %v4931, 0
  %v4984 = vsel %vm4940, %v4932, 0
  %v4987 = vsel %vm4940, %v4933, 0
  %v4990 = vsel %vm559, %v4935, 0
  %4992 = vmatpush.msra.mxu0 0.0
  %4993 = vmatpush.msra.mxu0 0.0
  %4994 = vmatpush.msra.mxu0 0.0
  %4995 = vmatpush.msra.mxu0 0.0
  %4996 = vmatpush.msra.mxu0 0.0
  %4997 = vmatpush.msra.mxu0 0.0
  %4998 = vmatpush.msra.mxu0 0.0
  %4999 = vmatpush.msra.mxu0 0.0
  %5000 = vmatpush.msra.mxu0 0.0
  %5001 = vmatpush.msra.mxu0 0.0
  %5002 = vmatpush.msra.mxu0 0.0
  %5003 = vmatpush.msra.mxu0 0.0
  %5004 = vmatpush.msra.mxu0 0.0
  %5005 = vmatpush.msra.mxu0 0.0
  %5006 = vmatpush.msra.mxu0 %v4990
  %5007 = vmatpush.msra.mxu0 %v4934
  %5008 = vmatmul.f32.gmra.mxu0 %v4942
  %v5009 = vpop.f32.mrf.mxu0
  %v5010 = vadd.f32 %v4938, %v5009
  %5011 = vmatmul.f32.gmra.mxu0 %v4945
  %v5012 = vpop.f32.mrf.mxu0
  %v5013 = vadd.f32 %v4938, %v5012
  %5014 = vmatmul.f32.gmra.mxu0 %v4948
  %v5015 = vpop.f32.mrf.mxu0
  %v5016 = vadd.f32 %v4938, %v5015
  %5017 = vmatmul.f32.gmra.mxu0 %v4951
  %v5018 = vpop.f32.mrf.mxu0
  %v5019 = vadd.f32 %v4938, %v5018
  %5020 = vmatmul.f32.gmra.mxu0 %v4954
  %v5021 = vpop.f32.mrf.mxu0
  %v5022 = vadd.f32 %v4938, %v5021
  %5023 = vmatmul.f32.gmra.mxu0 %v4957
  %v5024 = vpop.f32.mrf.mxu0
  %v5025 = vadd.f32 %v4938, %v5024
  %5026 = vmatmul.f32.gmra.mxu0 %v4960
  %v5027 = vpop.f32.mrf.mxu0
  %v5028 = vadd.f32 %v4938, %v5027
  %5029 = vmatmul.f32.gmra.mxu0 %v4963
  %v5030 = vpop.f32.mrf.mxu0
  %v5031 = vadd.f32 %v4938, %v5030
  %5032 = vmatmul.f32.gmra.mxu0 %v4966
  %v5033 = vpop.f32.mrf.mxu0
  %v5034 = vadd.f32 %v4938, %v5033
  %5035 = vmatmul.f32.gmra.mxu0 %v4969
  %v5036 = vpop.f32.mrf.mxu0
  %v5037 = vadd.f32 %v4938, %v5036
  %5038 = vmatmul.f32.gmra.mxu0 %v4972
  %v5039 = vpop.f32.mrf.mxu0
  %v5040 = vadd.f32 %v4938, %v5039
  %5041 = vmatmul.f32.gmra.mxu0 %v4975
  %v5042 = vpop.f32.mrf.mxu0
  %v5043 = vadd.f32 %v4938, %v5042
  %5044 = vmatmul.f32.gmra.mxu0 %v4978
  %v5045 = vpop.f32.mrf.mxu0
  %v5046 = vadd.f32 %v4938, %v5045
  %5047 = vmatmul.f32.gmra.mxu0 %v4981
  %v5048 = vpop.f32.mrf.mxu0
  %v5049 = vadd.f32 %v4938, %v5048
  %5050 = vmatmul.f32.gmra.mxu0 %v4984
  %v5051 = vpop.f32.mrf.mxu0
  %v5052 = vadd.f32 %v4938, %v5051
  %5053 = vmatmul.f32.gmra.mxu0 %v4987
  %v5054 = vpop.f32.mrf.mxu0
  %v5055 = vadd.f32 %v4938, %v5054
  %5056 = vdwg.mxu0
  %5057 = vst.msk [vmem:[%s21] sm:$0xff] %vm3232, %v3303
  %5058 = vst.msk [vmem:[%s21 + $0x8] sm:$0xff] %vm3232, %v3306
  %5059 = vst.msk [vmem:[%s21 + $0x10] sm:$0xff] %vm3232, %v3309
  %5060 = vst.msk [vmem:[%s21 + $0x18] sm:$0xff] %vm3232, %v3312
  %5061 = vst.msk [vmem:[%s21 + $0x20] sm:$0xff] %vm3232, %v3315
  %5062 = vst.msk [vmem:[%s21 + $0x28] sm:$0xff] %vm3232, %v3318
  %5063 = vst.msk [vmem:[%s21 + $0x30] sm:$0xff] %vm3232, %v3321
  %5064 = vst.msk [vmem:[%s21 + $0x38] sm:$0xff] %vm3232, %v3324
  %5065 = vst.msk [vmem:[%s21 + $0x40] sm:$0xff] %vm3232, %v3327
  %5066 = vst.msk [vmem:[%s21 + $0x48] sm:$0xff] %vm3232, %v3330
  %5067 = vst.msk [vmem:[%s21 + $0x50] sm:$0xff] %vm3232, %v3333
  %5068 = vst.msk [vmem:[%s21 + $0x58] sm:$0xff] %vm3232, %v3336
  %5069 = vst.msk [vmem:[%s21 + $0x60] sm:$0xff] %vm3232, %v3339
  %5070 = vst.msk [vmem:[%s21 + $0x68] sm:$0xff] %vm3232, %v3342
  %5071 = vst.msk [vmem:[%s21 + $0x70] sm:$0xff] %vm3232, %v3345
  %5072 = vst.msk [vmem:[%s21 + $0x78] sm:$0xff] %vm3232, %v3348
  %5089 = vrot.lane.b32.xlu0 %v3826, 3
  %v5090 = vpop.permute.xlu0 %5089
  %5091 = vrot.lane.b32.xlu0 %v3829, 3
  %v5092 = vpop.permute.xlu0 %5091
  %5093 = vrot.lane.b32.xlu0 %v3832, 3
  %v5094 = vpop.permute.xlu0 %5093
  %5095 = vrot.lane.b32.xlu0 %v3835, 3
  %v5096 = vpop.permute.xlu0 %5095
  %5097 = vrot.lane.b32.xlu0 %v3838, 3
  %v5098 = vpop.permute.xlu0 %5097
  %5099 = vrot.lane.b32.xlu0 %v3841, 3
  %v5100 = vpop.permute.xlu0 %5099
  %5101 = vrot.lane.b32.xlu0 %v3844, 3
  %v5102 = vpop.permute.xlu0 %5101
  %5103 = vrot.lane.b32.xlu0 %v3847, 3
  %v5104 = vpop.permute.xlu0 %5103
  %5105 = vrot.lane.b32.xlu0 %v3850, 3
  %v5106 = vpop.permute.xlu0 %5105
  %5107 = vrot.lane.b32.xlu0 %v3853, 3
  %v5108 = vpop.permute.xlu0 %5107
  %5109 = vrot.lane.b32.xlu0 %v3856, 3
  %v5110 = vpop.permute.xlu0 %5109
  %5111 = vrot.lane.b32.xlu0 %v3859, 3
  %v5112 = vpop.permute.xlu0 %5111
  %5113 = vrot.lane.b32.xlu0 %v3862, 3
  %v5114 = vpop.permute.xlu0 %5113
  %5115 = vrot.lane.b32.xlu0 %v3865, 3
  %v5116 = vpop.permute.xlu0 %5115
  %5117 = vrot.lane.b32.xlu0 %v3868, 3
  %v5118 = vpop.permute.xlu0 %5117
  %5119 = vrot.lane.b32.xlu0 %v3871, 3
  %v5120 = vpop.permute.xlu0 %5119
  %vm5137 = vcmask 48152
  %5138 = vst.msk [vmem:[%s21] sm:$0xff] %vm5137, %v5090
  %5139 = vst.msk [vmem:[%s21 + $0x8] sm:$0xff] %vm5137, %v5092
  %5140 = vst.msk [vmem:[%s21 + $0x10] sm:$0xff] %vm5137, %v5094
  %5141 = vst.msk [vmem:[%s21 + $0x18] sm:$0xff] %vm5137, %v5096
  %5142 = vst.msk [vmem:[%s21 + $0x20] sm:$0xff] %vm5137, %v5098
  %5143 = vst.msk [vmem:[%s21 + $0x28] sm:$0xff] %vm5137, %v5100
  %5144 = vst.msk [vmem:[%s21 + $0x30] sm:$0xff] %vm5137, %v5102
  %5145 = vst.msk [vmem:[%s21 + $0x38] sm:$0xff] %vm5137, %v5104
  %5146 = vst.msk [vmem:[%s21 + $0x40] sm:$0xff] %vm5137, %v5106
  %5147 = vst.msk [vmem:[%s21 + $0x48] sm:$0xff] %vm5137, %v5108
  %5148 = vst.msk [vmem:[%s21 + $0x50] sm:$0xff] %vm5137, %v5110
  %5149 = vst.msk [vmem:[%s21 + $0x58] sm:$0xff] %vm5137, %v5112
  %5150 = vst.msk [vmem:[%s21 + $0x60] sm:$0xff] %vm5137, %v5114
  %5151 = vst.msk [vmem:[%s21 + $0x68] sm:$0xff] %vm5137, %v5116
  %5152 = vst.msk [vmem:[%s21 + $0x70] sm:$0xff] %vm5137, %v5118
  %5153 = vst.msk [vmem:[%s21 + $0x78] sm:$0xff] %vm5137, %v5120
  %5170 = vrot.lane.b32.xlu0 %v5010, 6
  %v5171 = vpop.permute.xlu0 %5170
  %5172 = vrot.lane.b32.xlu0 %v5013, 6
  %v5173 = vpop.permute.xlu0 %5172
  %5174 = vrot.lane.b32.xlu0 %v5016, 6
  %v5175 = vpop.permute.xlu0 %5174
  %5176 = vrot.lane.b32.xlu0 %v5019, 6
  %v5177 = vpop.permute.xlu0 %5176
  %5178 = vrot.lane.b32.xlu0 %v5022, 6
  %v5179 = vpop.permute.xlu0 %5178
  %5180 = vrot.lane.b32.xlu0 %v5025, 6
  %v5181 = vpop.permute.xlu0 %5180
  %5182 = vrot.lane.b32.xlu0 %v5028, 6
  %v5183 = vpop.permute.xlu0 %5182
  %5184 = vrot.lane.b32.xlu0 %v5031, 6
  %v5185 = vpop.permute.xlu0 %5184
  %5186 = vrot.lane.b32.xlu0 %v5034, 6
  %v5187 = vpop.permute.xlu0 %5186
  %5188 = vrot.lane.b32.xlu0 %v5037, 6
  %v5189 = vpop.permute.xlu0 %5188
  %5190 = vrot.lane.b32.xlu0 %v5040, 6
  %v5191 = vpop.permute.xlu0 %5190
  %5192 = vrot.lane.b32.xlu0 %v5043, 6
  %v5193 = vpop.permute.xlu0 %5192
  %5194 = vrot.lane.b32.xlu0 %v5046, 6
  %v5195 = vpop.permute.xlu0 %5194
  %5196 = vrot.lane.b32.xlu0 %v5049, 6
  %v5197 = vpop.permute.xlu0 %5196
  %5198 = vrot.lane.b32.xlu0 %v5052, 6
  %v5199 = vpop.permute.xlu0 %5198
  %5200 = vrot.lane.b32.xlu0 %v5055, 6
  %v5201 = vpop.permute.xlu0 %5200
  %vm5218 = vcmask 130096
  %5219 = vst.msk [vmem:[%s21] sm:$0xff] %vm5218, %v5171
  %5220 = vst.msk [vmem:[%s21 + $0x8] sm:$0xff] %vm5218, %v5173
  %5221 = vst.msk [vmem:[%s21 + $0x10] sm:$0xff] %vm5218, %v5175
  %5222 = vst.msk [vmem:[%s21 + $0x18] sm:$0xff] %vm5218, %v5177
  %5223 = vst.msk [vmem:[%s21 + $0x20] sm:$0xff] %vm5218, %v5179
  %5224 = vst.msk [vmem:[%s21 + $0x28] sm:$0xff] %vm5218, %v5181
  %5225 = vst.msk [vmem:[%s21 + $0x30] sm:$0xff] %vm5218, %v5183
  %5226 = vst.msk [vmem:[%s21 + $0x38] sm:$0xff] %vm5218, %v5185
  %5227 = vst.msk [vmem:[%s21 + $0x40] sm:$0xff] %vm5218, %v5187
  %5228 = vst.msk [vmem:[%s21 + $0x48] sm:$0xff] %vm5218, %v5189
  %5229 = vst.msk [vmem:[%s21 + $0x50] sm:$0xff] %vm5218, %v5191
  %5230 = vst.msk [vmem:[%s21 + $0x58] sm:$0xff] %vm5218, %v5193
  %5231 = vst.msk [vmem:[%s21 + $0x60] sm:$0xff] %vm5218, %v5195
  %5232 = vst.msk [vmem:[%s21 + $0x68] sm:$0xff] %vm5218, %v5197
  %5233 = vst.msk [vmem:[%s21 + $0x70] sm:$0xff] %vm5218, %v5199
  %5234 = vst.msk [vmem:[%s21 + $0x78] sm:$0xff] %vm5218, %v5201
  // Predicated region
  $region86: #{tpu_custom_call.1} parent=0 // pred_check
    _
  $region87: #{tpu_custom_call.1} parent=0 // pred_check_branch
    %5236 = sbr.rel (0) target = $region89
  $region88: #{tpu_custom_call.1} parent=0 // pred_region
    _
  $region89: #{tpu_custom_call.1} parent=0 // pred_fallthru
    _
  // Predicated region
  $region90: #{tpu_custom_call.1} parent=0 // pred_check
    _
  $region91: #{tpu_custom_call.1} parent=0 // pred_check_branch
    %5238 = sbr.rel (0) target = $region93
  $region92: #{tpu_custom_call.1} parent=0 // pred_region
    _
  $region93: #{tpu_custom_call.1} parent=0 // pred_fallthru
    _

</llo_original>
